<compile_context>
chip_gen: v6e
topology: v6e:2x2x1
jax: 0.10.0
libtpu: 0.0.40
codegen_flags: <defaults>
</compile_context>

<pallas_src>
import jax
import jax.numpy as jnp
from jax.experimental import pallas as pl
from jax.experimental.pallas import tpu as pltpu

# ---------------- small synthetic EVA02 config ----------------
BATCH = 8                        # B*S = 40 rows -> multiple of 8 sublanes
IN_CH = 3                        # module default in_channels=3
IMG = 16
PATCH = 8
GRID_HW = IMG // PATCH           # 2
NUM_PATCHES = GRID_HW * GRID_HW  # 4
SEQ = NUM_PATCHES + 1            # + cls token = 5
DIM = 32
HEADS = 4
HEAD_DIM = DIM // HEADS          # 8
MLP_HIDDEN = 64                  # SwiGLU hidden width
DEPTH = 2
NUM_CLASSES = 1                  # module replaces head with Linear(in_features, 1)
EPS = 1e-6
NEG_INF = -1e30
N_TOK = BATCH * SEQ              # 40

APPROX_RECIP = True              # False -> exact 1/x for bit-level validation

_VMEM = pl.BlockSpec(memory_space=pltpu.MemorySpace.VMEM)
_BF16 = jnp.bfloat16


# ---------------- the single fused forward kernel ----------------
def _eva02_fused_kernel(
    # inputs / constants
    xp_ref, patch_w_ref, pos_add_ref, rope_cos_ref, rope_sin_ref,
    # stacked per-block weights (leading axis = DEPTH)
    ln1_g_ref, ln1_b_ref, qkvr_w_ref, qkvr_b_ref, proj_w_ref, proj_b_ref,
    ln2_g_ref, ln2_b_ref, w12_ref, b12_ref, mng_ref, mnb_ref, w3_ref, b3_ref,
    # final norm + head
    fng_ref, fnb_ref, head_w_ref, head_b_ref,
    # output
    o_ref,
):
    f32 = jnp.float32
    N = N_TOK
    HN = HEADS * N

    def layer_norm(x, g, b):
        mu = jnp.mean(x, axis=-1, keepdims=True)
        var = jnp.mean(jnp.square(x - mu), axis=-1, keepdims=True)
        return (x - mu) * jax.lax.rsqrt(var + EPS) * g + b

    def recip(x):
        return pl.reciprocal(x, approx=True) if APPROX_RECIP else 1.0 / x

    # ======== hoisted in-kernel constants (generated, never DMA'd) ==========
    # batch one-hot A[i, b] = 1 iff token row i belongs to image b
    ar = jax.lax.broadcasted_iota(jnp.int32, (N, BATCH), 0)
    ac = jax.lax.broadcasted_iota(jnp.int32, (N, BATCH), 1)
    a_onehot = jnp.where((ar >= ac * SEQ) & (ar < (ac + 1) * SEQ), 1.0, 0.0).astype(f32)

    # same-batch indicator (N, N) = A @ A^T ; tiled along lanes over heads
    same_batch = jax.lax.dot_general(a_onehot, a_onehot, (((1,), (1,)), ((), ())),
                                     preferred_element_type=f32)
    m_add = jnp.where(same_batch > 0.5, 0.0, NEG_INF).astype(f32)          # (N, N)
    batch_mask = jnp.concatenate([m_add] * HEADS, axis=1)                   # (N, H*N)

    # head-block mask (H*N, D): 1 where score-row head == feature-column head
    rr = jax.lax.broadcasted_iota(jnp.int32, (HN, HEADS), 0)
    rc = jax.lax.broadcasted_iota(jnp.int32, (HN, HEADS), 1)
    r_onehot = jnp.where((rr >= rc * N) & (rr < (rc + 1) * N), 1.0, 0.0).astype(f32)
    cr = jax.lax.broadcasted_iota(jnp.int32, (DIM, HEADS), 0)
    cc = jax.lax.broadcasted_iota(jnp.int32, (DIM, HEADS), 1)
    c_onehot = jnp.where((cr >= cc * HEAD_DIM) & (cr < (cc + 1) * HEAD_DIM),
                         1.0, 0.0).astype(f32)
    head_mask = jax.lax.dot_general(r_onehot, c_onehot, (((1,), (1,)), ((), ())),
                                    preferred_element_type=f32)             # (H*N, D)
    head_mask_b = head_mask.astype(_BF16)

    # position one-hot P[i, s] = 1 iff token i is at sequence position s
    # (division-free: batch start per row comes from the batch one-hot matmul)
    starts = (jax.lax.broadcasted_iota(jnp.int32, (BATCH, 1), 0) * SEQ).astype(f32)
    start_per_row = jnp.dot(a_onehot, starts, preferred_element_type=f32)   # (N, 1)
    row_f = jax.lax.broadcasted_iota(jnp.int32, (N, 1), 0).astype(f32)
    pos_idx = row_f - start_per_row                                         # (N, 1)
    s_pos = jax.lax.broadcasted_iota(jnp.int32, (N, SEQ), 1).astype(f32)
    p_onehot = jnp.where(s_pos == pos_idx, 1.0, 0.0).astype(f32)            # (N, S)

    # batch-broadcast the (S, D) tables with tiny one-hot matmuls (hoisted)
    pos_b = jnp.dot(p_onehot, pos_add_ref[...], preferred_element_type=f32)  # (N, D)
    cos_b = jnp.dot(p_onehot, rope_cos_ref[...], preferred_element_type=f32)
    sin_b = jnp.dot(p_onehot, rope_sin_ref[...], preferred_element_type=f32)

    # cls-token selection one-hot (B, N) -- first row of each image
    sr = jax.lax.broadcasted_iota(jnp.int32, (BATCH, N), 0)
    sc = jax.lax.broadcasted_iota(jnp.int32, (BATCH, N), 1)
    sel = jnp.where(sc == sr * SEQ, 1.0, 0.0).astype(f32)

    # ======== patch embed (cls rows of xp are zero; cls/pos/patch_b folded
    #          into pos_add at init) ========
    h = jnp.dot(xp_ref[...], patch_w_ref[...], preferred_element_type=f32) + pos_b

    for d in range(DEPTH):
        # ---------------- attention branch ----------------
        hn = layer_norm(h, ln1_g_ref[d], ln1_b_ref[d]).astype(_BF16)
        qkvr = jnp.dot(hn, qkvr_w_ref[d], preferred_element_type=f32) + qkvr_b_ref[d]
        q = qkvr[:, 0 * DIM:1 * DIM]     # pre-scaled by head_dim**-0.5 at init
        qr = qkvr[:, 1 * DIM:2 * DIM]    # rotate_half(q), folded into weight columns
        k = qkvr[:, 2 * DIM:3 * DIM]
        kr = qkvr[:, 3 * DIM:4 * DIM]
        v = qkvr[:, 4 * DIM:5 * DIM]

        # 2D RoPE on patch tokens (cls rows: cos=1, sin=0) -> pure VPU mul/add
        q = q * cos_b + qr * sin_b
        k = k * cos_b + kr * sin_b

        # lane-packed multi-head attention: ONE masked softmax for all heads.
        # block-diagonal K/V built by aligned sublane tile + head mask.
        k_bd = (jnp.concatenate([k] * HEADS, axis=0) * head_mask).astype(_BF16)  # (H*N, D)
        v_bd = (jnp.concatenate([v] * HEADS, axis=0) * head_mask).astype(_BF16)  # (H*N, D)
        s = jax.lax.dot_general(q.astype(_BF16), k_bd, (((1,), (1,)), ((), ())),
                                preferred_element_type=f32)                 # (N, H*N)
        s = s + batch_mask
        s = s - jnp.max(s, axis=-1, keepdims=True)
        p = jnp.exp(s).astype(_BF16)
        num = jnp.dot(p, v_bd, preferred_element_type=f32)                  # (N, D)
        den = jnp.dot(p, head_mask_b, preferred_element_type=f32)           # per-head sums
        attn = (num * recip(den)).astype(_BF16)
        attn = jnp.dot(attn, proj_w_ref[d], preferred_element_type=f32) + proj_b_ref[d]
        h = h + attn

        # ---------------- SwiGLU MLP branch (fused lane-dense w1|w2) --------
        hn = layer_norm(h, ln2_g_ref[d], ln2_b_ref[d]).astype(_BF16)
        h12 = jnp.dot(hn, w12_ref[d], preferred_element_type=f32) + b12_ref[d]
        gate = h12[:, :MLP_HIDDEN]
        val = h12[:, MLP_HIDDEN:]
        hid = (gate * jax.nn.sigmoid(gate)) * val                           # SiLU(gate)*value
        hid = layer_norm(hid, mng_ref[d], mnb_ref[d]).astype(_BF16)         # inner LN
        h = h + jnp.dot(hid, w3_ref[d], preferred_element_type=f32) + b3_ref[d]

    # ---- cls pooling (one-hot selection matmul), final LN, head + sigmoid ----
    cls = jnp.dot(sel, h, preferred_element_type=f32)                       # (B, D)
    cls = layer_norm(cls, fng_ref[...], fnb_ref[...])
    logits = jnp.dot(cls.astype(_BF16), head_w_ref[...],
                     preferred_element_type=f32) + head_b_ref[...]
    o_ref[...] = jax.nn.sigmoid(logits).astype(o_ref.dtype)


# ---------------- RoPE tables (half-split, cls row = identity) --------------
def build_rope_tables():
    n_pairs = HEAD_DIM // 2                  # 4 rotation pairs per head
    per_axis = n_pairs // 2                  # half encode rows, half columns
    freqs = 1.0 / (100.0 ** (jnp.arange(per_axis, dtype=jnp.float32)
                             / max(per_axis, 1)))
    ys, xs = jnp.meshgrid(jnp.arange(GRID_HW, dtype=jnp.float32),
                          jnp.arange(GRID_HW, dtype=jnp.float32), indexing="ij")
    ang = jnp.concatenate([ys.reshape(-1, 1) * freqs[None, :],
                           xs.reshape(-1, 1) * freqs[None, :]], axis=-1)    # (P, n_pairs)
    cos_h = jnp.concatenate([jnp.cos(ang), jnp.cos(ang)], axis=-1)          # (P, Dh)
    sin_h = jnp.concatenate([jnp.sin(ang), jnp.sin(ang)], axis=-1)
    cos = jnp.concatenate([jnp.ones((1, HEAD_DIM), jnp.float32), cos_h], axis=0)
    sin = jnp.concatenate([jnp.zeros((1, HEAD_DIM), jnp.float32), sin_h], axis=0)
    return jnp.tile(cos, (1, HEADS)), jnp.tile(sin, (1, HEADS))             # (S, D)


# ---------------- parameters (deterministic synthetic init) ----------------
def init_params(key):
    kit = iter(jax.random.split(key, 64))

    def nrm(shape, scale=0.02):
        return scale * jax.random.normal(next(kit), shape, dtype=jnp.float32)

    scale = HEAD_DIM ** -0.5

    # rotate-half as a column permutation/sign matrix: x @ rot == rotate_half(x).
    # Applied to q/k weight columns ONCE here so the kernel needs no per-layer
    # permutation matmul / lane roll.
    half = HEAD_DIM // 2
    eye = jnp.eye(half, dtype=jnp.float32)
    zero = jnp.zeros((half, half), jnp.float32)
    rot_head = jnp.block([[zero, eye], [-eye, zero]])                       # (Dh, Dh)
    rot = jnp.kron(jnp.eye(HEADS, dtype=jnp.float32), rot_head)             # (D, D)

    patch_w = nrm((IN_CH * PATCH * PATCH, DIM))       # conv(DIM, C, p, p) as matmul
    patch_b = jnp.zeros((1, DIM), jnp.float32)
    cls_token = nrm((1, DIM))
    pos_embed = nrm((SEQ, DIM))
    # additive (S, D) table folding cls insertion + pos embed + patch bias:
    #   row 0   -> cls + pos[0]           (cls rows of xp are zero)
    #   rows 1+ -> pos[1:] + patch_b
    pos_add = jnp.concatenate([cls_token + pos_embed[:1],
                               pos_embed[1:] + patch_b], axis=0)

    rope_cos, rope_sin = build_rope_tables()

    block_names = ("ln1_g", "ln1_b", "qkvr_w", "qkvr_b", "proj_w", "proj_b",
                   "ln2_g", "ln2_b", "w12", "b12", "mnorm_g", "mnorm_b", "w3", "b3")
    blocks = {k: [] for k in block_names}
    for _ in range(DEPTH):
        wq, wk, wv = nrm((DIM, DIM)), nrm((DIM, DIM)), nrm((DIM, DIM))
        bq, bv = nrm((DIM,)), nrm((DIM,))
        bk = jnp.zeros((DIM,), jnp.float32)            # EVA: learnable q/v bias, zero k bias
        # fused [q, rot(q), k, rot(k), v] projection; attention scale folded into q cols
        qkvr_w = jnp.concatenate(
            [scale * wq, scale * (wq @ rot), wk, wk @ rot, wv], axis=1)     # (D, 5D)
        qkvr_b = jnp.concatenate(
            [scale * bq, scale * (bq @ rot), bk, bk @ rot, bv]).reshape(1, 5 * DIM)
        w1, w2 = nrm((DIM, MLP_HIDDEN)), nrm((DIM, MLP_HIDDEN))
        blocks["ln1_g"].append(jnp.ones((1, DIM), jnp.float32))
        blocks["ln1_b"].append(jnp.zeros((1, DIM), jnp.float32))
        blocks["qkvr_w"].append(qkvr_w)
        blocks["qkvr_b"].append(qkvr_b)
        blocks["proj_w"].append(nrm((DIM, DIM)))
        blocks["proj_b"].append(jnp.zeros((1, DIM), jnp.float32))
        blocks["ln2_g"].append(jnp.ones((1, DIM), jnp.float32))
        blocks["ln2_b"].append(jnp.zeros((1, DIM), jnp.float32))
        blocks["w12"].append(jnp.concatenate([w1, w2], axis=-1))            # (D, 128)
        blocks["b12"].append(jnp.zeros((1, 2 * MLP_HIDDEN), jnp.float32))
        blocks["mnorm_g"].append(jnp.ones((1, MLP_HIDDEN), jnp.float32))
        blocks["mnorm_b"].append(jnp.zeros((1, MLP_HIDDEN), jnp.float32))
        blocks["w3"].append(nrm((MLP_HIDDEN, DIM)))
        blocks["b3"].append(jnp.zeros((1, DIM), jnp.float32))

    params = dict(
        patch_w=patch_w.astype(_BF16),                 # bf16 MXU operand
        pos_add=pos_add,
        rope_cos=rope_cos, rope_sin=rope_sin,
        final_g=jnp.ones((1, DIM), jnp.float32),
        final_b=jnp.zeros((1, DIM), jnp.float32),
        head_w=nrm((DIM, NUM_CLASSES)).astype(_BF16),  # replaced head: Linear(D, 1)
        head_b=jnp.zeros((1, NUM_CLASSES), jnp.float32),
    )
    mxu_weights = {"qkvr_w", "proj_w", "w12", "w3"}
    for k in block_names:
        stacked = jnp.stack(blocks[k], axis=0)         # leading DEPTH axis
        params[k] = stacked.astype(_BF16) if k in mxu_weights else stacked
    return params


# ---------------- forward ----------------
def eva02_forward(params, x):
    B = x.shape[0]
    assert B == BATCH, "kernel is specialized for BATCH images per call"
    cpp = IN_CH * PATCH * PATCH

    # host-side layout prep only (im2col + zero cls rows); all compute is fused
    xp = x.reshape(B, IN_CH, GRID_HW, PATCH, GRID_HW, PATCH)
    xp = xp.transpose(0, 2, 4, 1, 3, 5).reshape(B, NUM_PATCHES, cpp)
    xp = jnp.concatenate([jnp.zeros((B, 1, cpp), x.dtype), xp], axis=1)
    xp = xp.reshape(B * SEQ, cpp).astype(_BF16)        # bf16 MXU operand

    n_in = 23
    return pl.pallas_call(
        _eva02_fused_kernel,
        out_shape=jax.ShapeDtypeStruct((B, NUM_CLASSES), jnp.float32),
        in_specs=[_VMEM] * n_in,
        out_specs=_VMEM,
        compiler_params=pltpu.CompilerParams(vmem_limit_bytes=64 * 1024 * 1024),
    )(
        xp, params["patch_w"], params["pos_add"], params["rope_cos"], params["rope_sin"],
        params["ln1_g"], params["ln1_b"], params["qkvr_w"], params["qkvr_b"],
        params["proj_w"], params["proj_b"], params["ln2_g"], params["ln2_b"],
        params["w12"], params["b12"], params["mnorm_g"], params["mnorm_b"],
        params["w3"], params["b3"],
        params["final_g"], params["final_b"], params["head_w"], params["head_b"],
    )


if __name__ == "__main__":
    key = jax.random.PRNGKey(0)
    pkey, xkey = jax.random.split(key)
    params = init_params(pkey)
    x = jax.random.normal(xkey, (BATCH, IN_CH, IMG, IMG), dtype=jnp.float32)

    fwd = jax.jit(eva02_forward)
    y = fwd(params, x)
    y = jax.block_until_ready(y)

    assert y.shape == (BATCH, NUM_CLASSES), y.shape
    assert bool(jnp.all(jnp.isfinite(y)))
    assert bool(jnp.all((y >= 0.0) & (y <= 1.0)))
    print("KERNEL_OK")
</pallas_src>

<mosaic_0001>
module attributes {stable_mosaic.version = 11 : i64} {
  func.func @_eva02_fused_kernel(%arg0: memref<40x192xbf16, #tpu.memory_space<vmem>>, %arg1: memref<192x32xbf16, #tpu.memory_space<vmem>>, %arg2: memref<5x32xf32, #tpu.memory_space<vmem>>, %arg3: memref<5x32xf32, #tpu.memory_space<vmem>>, %arg4: memref<5x32xf32, #tpu.memory_space<vmem>>, %arg5: memref<2x1x32xf32, #tpu.memory_space<vmem>>, %arg6: memref<2x1x32xf32, #tpu.memory_space<vmem>>, %arg7: memref<2x32x160xbf16, #tpu.memory_space<vmem>>, %arg8: memref<2x1x160xf32, #tpu.memory_space<vmem>>, %arg9: memref<2x32x32xbf16, #tpu.memory_space<vmem>>, %arg10: memref<2x1x32xf32, #tpu.memory_space<vmem>>, %arg11: memref<2x1x32xf32, #tpu.memory_space<vmem>>, %arg12: memref<2x1x32xf32, #tpu.memory_space<vmem>>, %arg13: memref<2x32x128xbf16, #tpu.memory_space<vmem>>, %arg14: memref<2x1x128xf32, #tpu.memory_space<vmem>>, %arg15: memref<2x1x64xf32, #tpu.memory_space<vmem>>, %arg16: memref<2x1x64xf32, #tpu.memory_space<vmem>>, %arg17: memref<2x64x32xbf16, #tpu.memory_space<vmem>>, %arg18: memref<2x1x32xf32, #tpu.memory_space<vmem>>, %arg19: memref<1x32xf32, #tpu.memory_space<vmem>>, %arg20: memref<1x32xf32, #tpu.memory_space<vmem>>, %arg21: memref<32x1xbf16, #tpu.memory_space<vmem>>, %arg22: memref<1x1xf32, #tpu.memory_space<vmem>>, %arg23: memref<8x1xf32, #tpu.memory_space<vmem>>) attributes {dimension_semantics = [], scalar_prefetch = 0 : i64, scratch_operands = 0 : i64, tpu.core_type = #tpu.core_type<tc>} {
    %0 = tpu.iota {dimensions = array<i32: 0>} : vector<40x8xi32>
    %1 = tpu.iota {dimensions = array<i32: 1>} : vector<40x8xi32>
    %c5_i32 = arith.constant 5 : i32
    %2 = vector.broadcast %c5_i32 : i32 to vector<40x8xi32>
    %3 = arith.muli %1, %2 : vector<40x8xi32>
    %4 = arith.cmpi sge, %0, %3 : vector<40x8xi32>
    %c1_i32 = arith.constant 1 : i32
    %5 = vector.broadcast %c1_i32 : i32 to vector<40x8xi32>
    %6 = arith.addi %1, %5 : vector<40x8xi32>
    %c5_i32_0 = arith.constant 5 : i32
    %7 = vector.broadcast %c5_i32_0 : i32 to vector<40x8xi32>
    %8 = arith.muli %6, %7 : vector<40x8xi32>
    %9 = arith.cmpi slt, %0, %8 : vector<40x8xi32>
    %10 = arith.andi %4, %9 : vector<40x8xi1>
    %cst = arith.constant 1.000000e+00 : f32
    %cst_1 = arith.constant 0.000000e+00 : f32
    %11 = vector.broadcast %cst : f32 to vector<40x8xf32>
    %12 = vector.broadcast %cst_1 : f32 to vector<40x8xf32>
    %13 = arith.select %10, %11, %12 : vector<40x8xi1>, vector<40x8xf32>
    %cst_2 = arith.constant dense<0.000000e+00> : vector<40x40xf32>
    %14 = tpu.matmul %13, %13, %cst_2 {dimension_numbers = #tpu.dot_dimension_numbers<[1], [1], [0], [0], [0, 0, 1, 0], [], []>} : vector<40x8xf32>, vector<40x8xf32>, vector<40x40xf32> -> vector<40x40xf32>
    %cst_3 = arith.constant 5.000000e-01 : f32
    %15 = vector.broadcast %cst_3 : f32 to vector<40x40xf32>
    %16 = arith.cmpf ogt, %14, %15 : vector<40x40xf32>
    %cst_4 = arith.constant 0.000000e+00 : f32
    %cst_5 = arith.constant -1.000000e+30 : f32
    %17 = vector.broadcast %cst_4 : f32 to vector<40x40xf32>
    %18 = vector.broadcast %cst_5 : f32 to vector<40x40xf32>
    %19 = arith.select %16, %17, %18 : vector<40x40xi1>, vector<40x40xf32>
    %20 = tpu.concatenate %19, %19, %19, %19 in 1 : vector<40x40xf32>, vector<40x40xf32>, vector<40x40xf32>, vector<40x40xf32> -> vector<40x160xf32>
    %21 = tpu.iota {dimensions = array<i32: 0>} : vector<160x4xi32>
    %22 = tpu.iota {dimensions = array<i32: 1>} : vector<160x4xi32>
    %c40_i32 = arith.constant 40 : i32
    %23 = vector.broadcast %c40_i32 : i32 to vector<160x4xi32>
    %24 = arith.muli %22, %23 : vector<160x4xi32>
    %25 = arith.cmpi sge, %21, %24 : vector<160x4xi32>
    %c1_i32_6 = arith.constant 1 : i32
    %26 = vector.broadcast %c1_i32_6 : i32 to vector<160x4xi32>
    %27 = arith.addi %22, %26 : vector<160x4xi32>
    %c40_i32_7 = arith.constant 40 : i32
    %28 = vector.broadcast %c40_i32_7 : i32 to vector<160x4xi32>
    %29 = arith.muli %27, %28 : vector<160x4xi32>
    %30 = arith.cmpi slt, %21, %29 : vector<160x4xi32>
    %31 = arith.andi %25, %30 : vector<160x4xi1>
    %cst_8 = arith.constant 1.000000e+00 : f32
    %cst_9 = arith.constant 0.000000e+00 : f32
    %32 = vector.broadcast %cst_8 : f32 to vector<160x4xf32>
    %33 = vector.broadcast %cst_9 : f32 to vector<160x4xf32>
    %34 = arith.select %31, %32, %33 : vector<160x4xi1>, vector<160x4xf32>
    %35 = tpu.iota {dimensions = array<i32: 0>} : vector<32x4xi32>
    %36 = tpu.iota {dimensions = array<i32: 1>} : vector<32x4xi32>
    %c8_i32 = arith.constant 8 : i32
    %37 = vector.broadcast %c8_i32 : i32 to vector<32x4xi32>
    %38 = arith.muli %36, %37 : vector<32x4xi32>
    %39 = arith.cmpi sge, %35, %38 : vector<32x4xi32>
    %c1_i32_10 = arith.constant 1 : i32
    %40 = vector.broadcast %c1_i32_10 : i32 to vector<32x4xi32>
    %41 = arith.addi %36, %40 : vector<32x4xi32>
    %c8_i32_11 = arith.constant 8 : i32
    %42 = vector.broadcast %c8_i32_11 : i32 to vector<32x4xi32>
    %43 = arith.muli %41, %42 : vector<32x4xi32>
    %44 = arith.cmpi slt, %35, %43 : vector<32x4xi32>
    %45 = arith.andi %39, %44 : vector<32x4xi1>
    %cst_12 = arith.constant 1.000000e+00 : f32
    %cst_13 = arith.constant 0.000000e+00 : f32
    %46 = vector.broadcast %cst_12 : f32 to vector<32x4xf32>
    %47 = vector.broadcast %cst_13 : f32 to vector<32x4xf32>
    %48 = arith.select %45, %46, %47 : vector<32x4xi1>, vector<32x4xf32>
    %cst_14 = arith.constant dense<0.000000e+00> : vector<160x32xf32>
    %49 = tpu.matmul %34, %48, %cst_14 {dimension_numbers = #tpu.dot_dimension_numbers<[1], [1], [0], [0], [0, 0, 1, 0], [], []>} : vector<160x4xf32>, vector<32x4xf32>, vector<160x32xf32> -> vector<160x32xf32>
    %50 = arith.truncf %49 : vector<160x32xf32> to vector<160x32xbf16>
    %51 = tpu.iota {dimensions = array<i32: 0>} : vector<8x1xi32>
    %c5_i32_15 = arith.constant 5 : i32
    %52 = vector.broadcast %c5_i32_15 : i32 to vector<8x1xi32>
    %53 = arith.muli %51, %52 : vector<8x1xi32>
    %54 = arith.sitofp %53 : vector<8x1xi32> to vector<8x1xf32>
    %cst_16 = arith.constant dense<0.000000e+00> : vector<40x1xf32>
    %55 = tpu.matmul %13, %54, %cst_16 {dimension_numbers = #tpu.dot_dimension_numbers<[1], [0], [0], [1], [0, 0, 1, 1], [], []>} : vector<40x8xf32>, vector<8x1xf32>, vector<40x1xf32> -> vector<40x1xf32>
    %56 = tpu.iota {dimensions = array<i32: 0>} : vector<40x1xi32>
    %57 = arith.sitofp %56 : vector<40x1xi32> to vector<40x1xf32>
    %58 = arith.subf %57, %55 : vector<40x1xf32>
    %59 = tpu.iota {dimensions = array<i32: 1>} : vector<40x5xi32>
    %60 = arith.sitofp %59 : vector<40x5xi32> to vector<40x5xf32>
    %61 = vector.broadcast %58 : vector<40x1xf32> to vector<40x5xf32>
    %62 = arith.cmpf oeq, %60, %61 : vector<40x5xf32>
    %cst_17 = arith.constant 1.000000e+00 : f32
    %cst_18 = arith.constant 0.000000e+00 : f32
    %63 = vector.broadcast %cst_17 : f32 to vector<40x5xf32>
    %64 = vector.broadcast %cst_18 : f32 to vector<40x5xf32>
    %65 = arith.select %62, %63, %64 : vector<40x5xi1>, vector<40x5xf32>
    %c0 = arith.constant 0 : index
    %c0_19 = arith.constant 0 : index
    %66 = vector.load %arg2[%c0, %c0_19] : memref<5x32xf32, #tpu.memory_space<vmem>>, vector<5x32xf32>
    %cst_20 = arith.constant dense<0.000000e+00> : vector<40x32xf32>
    %67 = tpu.matmul %65, %66, %cst_20 {dimension_numbers = #tpu.dot_dimension_numbers<[1], [0], [0], [1], [0, 0, 1, 1], [], []>} : vector<40x5xf32>, vector<5x32xf32>, vector<40x32xf32> -> vector<40x32xf32>
    %c0_21 = arith.constant 0 : index
    %c0_22 = arith.constant 0 : index
    %68 = vector.load %arg3[%c0_21, %c0_22] : memref<5x32xf32, #tpu.memory_space<vmem>>, vector<5x32xf32>
    %cst_23 = arith.constant dense<0.000000e+00> : vector<40x32xf32>
    %69 = tpu.matmul %65, %68, %cst_23 {dimension_numbers = #tpu.dot_dimension_numbers<[1], [0], [0], [1], [0, 0, 1, 1], [], []>} : vector<40x5xf32>, vector<5x32xf32>, vector<40x32xf32> -> vector<40x32xf32>
    %c0_24 = arith.constant 0 : index
    %c0_25 = arith.constant 0 : index
    %70 = vector.load %arg4[%c0_24, %c0_25] : memref<5x32xf32, #tpu.memory_space<vmem>>, vector<5x32xf32>
    %cst_26 = arith.constant dense<0.000000e+00> : vector<40x32xf32>
    %71 = tpu.matmul %65, %70, %cst_26 {dimension_numbers = #tpu.dot_dimension_numbers<[1], [0], [0], [1], [0, 0, 1, 1], [], []>} : vector<40x5xf32>, vector<5x32xf32>, vector<40x32xf32> -> vector<40x32xf32>
    %72 = tpu.iota {dimensions = array<i32: 0>} : vector<8x40xi32>
    %73 = tpu.iota {dimensions = array<i32: 1>} : vector<8x40xi32>
    %c5_i32_27 = arith.constant 5 : i32
    %74 = vector.broadcast %c5_i32_27 : i32 to vector<8x40xi32>
    %75 = arith.muli %72, %74 : vector<8x40xi32>
    %76 = arith.cmpi eq, %73, %75 : vector<8x40xi32>
    %cst_28 = arith.constant 1.000000e+00 : f32
    %cst_29 = arith.constant 0.000000e+00 : f32
    %77 = vector.broadcast %cst_28 : f32 to vector<8x40xf32>
    %78 = vector.broadcast %cst_29 : f32 to vector<8x40xf32>
    %79 = arith.select %76, %77, %78 : vector<8x40xi1>, vector<8x40xf32>
    %c0_30 = arith.constant 0 : index
    %c0_31 = arith.constant 0 : index
    %80 = vector.load %arg0[%c0_30, %c0_31] : memref<40x192xbf16, #tpu.memory_space<vmem>>, vector<40x192xbf16>
    %c0_32 = arith.constant 0 : index
    %c0_33 = arith.constant 0 : index
    %81 = vector.load %arg1[%c0_32, %c0_33] : memref<192x32xbf16, #tpu.memory_space<vmem>>, vector<192x32xbf16>
    %cst_34 = arith.constant dense<0.000000e+00> : vector<40x32xf32>
    %82 = tpu.matmul %80, %81, %cst_34 {dimension_numbers = #tpu.dot_dimension_numbers<[1], [0], [0], [1], [0, 0, 1, 1], [], []>} : vector<40x192xbf16>, vector<192x32xbf16>, vector<40x32xf32> -> vector<40x32xf32>
    %83 = arith.addf %82, %67 : vector<40x32xf32>
    %c0_35 = arith.constant 0 : index
    %c0_36 = arith.constant 0 : index
    %c0_37 = arith.constant 0 : index
    %84 = vector.load %arg5[%c0_35, %c0_36, %c0_37] : memref<2x1x32xf32, #tpu.memory_space<vmem>>, vector<1x1x32xf32>
    %85 = vector.shape_cast %84 : vector<1x1x32xf32> to vector<1x32xf32>
    %c0_38 = arith.constant 0 : index
    %c0_39 = arith.constant 0 : index
    %c0_40 = arith.constant 0 : index
    %86 = vector.load %arg6[%c0_38, %c0_39, %c0_40] : memref<2x1x32xf32, #tpu.memory_space<vmem>>, vector<1x1x32xf32>
    %87 = vector.shape_cast %86 : vector<1x1x32xf32> to vector<1x32xf32>
    %cst_41 = arith.constant dense<0.000000e+00> : vector<40xf32>
    %88 = vector.multi_reduction <add>, %83, %cst_41 [1] : vector<40x32xf32> to vector<40xf32>
    %89 = vector.shape_cast %88 : vector<40xf32> to vector<40x1xf32>
    %cst_42 = arith.constant 3.200000e+01 : f32
    %90 = vector.broadcast %cst_42 : f32 to vector<40x1xf32>
    %91 = arith.divf %89, %90 : vector<40x1xf32>
    %92 = vector.broadcast %91 : vector<40x1xf32> to vector<40x32xf32>
    %93 = arith.subf %83, %92 : vector<40x32xf32>
    %94 = arith.mulf %93, %93 : vector<40x32xf32>
    %cst_43 = arith.constant dense<0.000000e+00> : vector<40xf32>
    %95 = vector.multi_reduction <add>, %94, %cst_43 [1] : vector<40x32xf32> to vector<40xf32>
    %96 = vector.shape_cast %95 : vector<40xf32> to vector<40x1xf32>
    %cst_44 = arith.constant 3.200000e+01 : f32
    %97 = vector.broadcast %cst_44 : f32 to vector<40x1xf32>
    %98 = arith.divf %96, %97 : vector<40x1xf32>
    %99 = vector.broadcast %91 : vector<40x1xf32> to vector<40x32xf32>
    %100 = arith.subf %83, %99 : vector<40x32xf32>
    %cst_45 = arith.constant 9.99999997E-7 : f32
    %101 = vector.broadcast %cst_45 : f32 to vector<40x1xf32>
    %102 = arith.addf %98, %101 : vector<40x1xf32>
    %103 = math.rsqrt %102 : vector<40x1xf32>
    %104 = vector.broadcast %103 : vector<40x1xf32> to vector<40x32xf32>
    %105 = arith.mulf %100, %104 : vector<40x32xf32>
    %106 = vector.broadcast %85 : vector<1x32xf32> to vector<40x32xf32>
    %107 = arith.mulf %105, %106 : vector<40x32xf32>
    %108 = vector.broadcast %87 : vector<1x32xf32> to vector<40x32xf32>
    %109 = arith.addf %107, %108 : vector<40x32xf32>
    %110 = arith.truncf %109 : vector<40x32xf32> to vector<40x32xbf16>
    %c0_46 = arith.constant 0 : index
    %c0_47 = arith.constant 0 : index
    %c0_48 = arith.constant 0 : index
    %111 = vector.load %arg7[%c0_46, %c0_47, %c0_48] : memref<2x32x160xbf16, #tpu.memory_space<vmem>>, vector<1x32x160xbf16>
    %112 = vector.shape_cast %111 : vector<1x32x160xbf16> to vector<32x160xbf16>
    %cst_49 = arith.constant dense<0.000000e+00> : vector<40x160xf32>
    %113 = tpu.matmul %110, %112, %cst_49 {dimension_numbers = #tpu.dot_dimension_numbers<[1], [0], [0], [1], [0, 0, 1, 1], [], []>} : vector<40x32xbf16>, vector<32x160xbf16>, vector<40x160xf32> -> vector<40x160xf32>
    %c0_50 = arith.constant 0 : index
    %c0_51 = arith.constant 0 : index
    %c0_52 = arith.constant 0 : index
    %114 = vector.load %arg8[%c0_50, %c0_51, %c0_52] : memref<2x1x160xf32, #tpu.memory_space<vmem>>, vector<1x1x160xf32>
    %115 = vector.shape_cast %114 : vector<1x1x160xf32> to vector<1x160xf32>
    %116 = vector.broadcast %115 : vector<1x160xf32> to vector<40x160xf32>
    %117 = arith.addf %113, %116 : vector<40x160xf32>
    %118 = vector.extract_strided_slice %117 {offsets = [0, 0], sizes = [40, 32], strides = [1, 1]} : vector<40x160xf32> to vector<40x32xf32>
    %119 = vector.extract_strided_slice %117 {offsets = [0, 32], sizes = [40, 32], strides = [1, 1]} : vector<40x160xf32> to vector<40x32xf32>
    %120 = vector.extract_strided_slice %117 {offsets = [0, 64], sizes = [40, 32], strides = [1, 1]} : vector<40x160xf32> to vector<40x32xf32>
    %121 = vector.extract_strided_slice %117 {offsets = [0, 96], sizes = [40, 32], strides = [1, 1]} : vector<40x160xf32> to vector<40x32xf32>
    %122 = vector.extract_strided_slice %117 {offsets = [0, 128], sizes = [40, 32], strides = [1, 1]} : vector<40x160xf32> to vector<40x32xf32>
    %123 = arith.mulf %118, %69 : vector<40x32xf32>
    %124 = arith.mulf %119, %71 : vector<40x32xf32>
    %125 = arith.addf %123, %124 : vector<40x32xf32>
    %126 = arith.mulf %120, %69 : vector<40x32xf32>
    %127 = arith.mulf %121, %71 : vector<40x32xf32>
    %128 = arith.addf %126, %127 : vector<40x32xf32>
    %129 = tpu.concatenate %128, %128, %128, %128 in 0 : vector<40x32xf32>, vector<40x32xf32>, vector<40x32xf32>, vector<40x32xf32> -> vector<160x32xf32>
    %130 = arith.mulf %129, %49 : vector<160x32xf32>
    %131 = arith.truncf %130 : vector<160x32xf32> to vector<160x32xbf16>
    %132 = tpu.concatenate %122, %122, %122, %122 in 0 : vector<40x32xf32>, vector<40x32xf32>, vector<40x32xf32>, vector<40x32xf32> -> vector<160x32xf32>
    %133 = arith.mulf %132, %49 : vector<160x32xf32>
    %134 = arith.truncf %133 : vector<160x32xf32> to vector<160x32xbf16>
    %135 = arith.truncf %125 : vector<40x32xf32> to vector<40x32xbf16>
    %cst_53 = arith.constant dense<0.000000e+00> : vector<40x160xf32>
    %136 = tpu.matmul %135, %131, %cst_53 {dimension_numbers = #tpu.dot_dimension_numbers<[1], [1], [0], [0], [0, 0, 1, 0], [], []>} : vector<40x32xbf16>, vector<160x32xbf16>, vector<40x160xf32> -> vector<40x160xf32>
    %137 = arith.addf %136, %20 : vector<40x160xf32>
    %cst_54 = arith.constant dense<0xFF800000> : vector<40xf32>
    %138 = vector.multi_reduction <maximumf>, %137, %cst_54 [1] : vector<40x160xf32> to vector<40xf32>
    %139 = vector.shape_cast %138 : vector<40xf32> to vector<40x1xf32>
    %140 = vector.broadcast %139 : vector<40x1xf32> to vector<40x160xf32>
    %141 = arith.subf %137, %140 : vector<40x160xf32>
    %142 = math.exp %141 : vector<40x160xf32>
    %143 = arith.truncf %142 : vector<40x160xf32> to vector<40x160xbf16>
    %cst_55 = arith.constant dense<0.000000e+00> : vector<40x32xf32>
    %144 = tpu.matmul %143, %134, %cst_55 {dimension_numbers = #tpu.dot_dimension_numbers<[1], [0], [0], [1], [0, 0, 1, 1], [], []>} : vector<40x160xbf16>, vector<160x32xbf16>, vector<40x32xf32> -> vector<40x32xf32>
    %cst_56 = arith.constant dense<0.000000e+00> : vector<40x32xf32>
    %145 = tpu.matmul %143, %50, %cst_56 {dimension_numbers = #tpu.dot_dimension_numbers<[1], [0], [0], [1], [0, 0, 1, 1], [], []>} : vector<40x160xbf16>, vector<160x32xbf16>, vector<40x32xf32> -> vector<40x32xf32>
    %146 = tpu.reciprocal %145 {approx = true} : vector<40x32xf32> -> vector<40x32xf32>
    %147 = arith.mulf %144, %146 : vector<40x32xf32>
    %148 = arith.truncf %147 : vector<40x32xf32> to vector<40x32xbf16>
    %c0_57 = arith.constant 0 : index
    %c0_58 = arith.constant 0 : index
    %c0_59 = arith.constant 0 : index
    %149 = vector.load %arg9[%c0_57, %c0_58, %c0_59] : memref<2x32x32xbf16, #tpu.memory_space<vmem>>, vector<1x32x32xbf16>
    %150 = vector.shape_cast %149 : vector<1x32x32xbf16> to vector<32x32xbf16>
    %cst_60 = arith.constant dense<0.000000e+00> : vector<40x32xf32>
    %151 = tpu.matmul %148, %150, %cst_60 {dimension_numbers = #tpu.dot_dimension_numbers<[1], [0], [0], [1], [0, 0, 1, 1], [], []>} : vector<40x32xbf16>, vector<32x32xbf16>, vector<40x32xf32> -> vector<40x32xf32>
    %c0_61 = arith.constant 0 : index
    %c0_62 = arith.constant 0 : index
    %c0_63 = arith.constant 0 : index
    %152 = vector.load %arg10[%c0_61, %c0_62, %c0_63] : memref<2x1x32xf32, #tpu.memory_space<vmem>>, vector<1x1x32xf32>
    %153 = vector.shape_cast %152 : vector<1x1x32xf32> to vector<1x32xf32>
    %154 = vector.broadcast %153 : vector<1x32xf32> to vector<40x32xf32>
    %155 = arith.addf %151, %154 : vector<40x32xf32>
    %156 = arith.addf %83, %155 : vector<40x32xf32>
    %c0_64 = arith.constant 0 : index
    %c0_65 = arith.constant 0 : index
    %c0_66 = arith.constant 0 : index
    %157 = vector.load %arg11[%c0_64, %c0_65, %c0_66] : memref<2x1x32xf32, #tpu.memory_space<vmem>>, vector<1x1x32xf32>
    %158 = vector.shape_cast %157 : vector<1x1x32xf32> to vector<1x32xf32>
    %c0_67 = arith.constant 0 : index
    %c0_68 = arith.constant 0 : index
    %c0_69 = arith.constant 0 : index
    %159 = vector.load %arg12[%c0_67, %c0_68, %c0_69] : memref<2x1x32xf32, #tpu.memory_space<vmem>>, vector<1x1x32xf32>
    %160 = vector.shape_cast %159 : vector<1x1x32xf32> to vector<1x32xf32>
    %cst_70 = arith.constant dense<0.000000e+00> : vector<40xf32>
    %161 = vector.multi_reduction <add>, %156, %cst_70 [1] : vector<40x32xf32> to vector<40xf32>
    %162 = vector.shape_cast %161 : vector<40xf32> to vector<40x1xf32>
    %cst_71 = arith.constant 3.200000e+01 : f32
    %163 = vector.broadcast %cst_71 : f32 to vector<40x1xf32>
    %164 = arith.divf %162, %163 : vector<40x1xf32>
    %165 = vector.broadcast %164 : vector<40x1xf32> to vector<40x32xf32>
    %166 = arith.subf %156, %165 : vector<40x32xf32>
    %167 = arith.mulf %166, %166 : vector<40x32xf32>
    %cst_72 = arith.constant dense<0.000000e+00> : vector<40xf32>
    %168 = vector.multi_reduction <add>, %167, %cst_72 [1] : vector<40x32xf32> to vector<40xf32>
    %169 = vector.shape_cast %168 : vector<40xf32> to vector<40x1xf32>
    %cst_73 = arith.constant 3.200000e+01 : f32
    %170 = vector.broadcast %cst_73 : f32 to vector<40x1xf32>
    %171 = arith.divf %169, %170 : vector<40x1xf32>
    %172 = vector.broadcast %164 : vector<40x1xf32> to vector<40x32xf32>
    %173 = arith.subf %156, %172 : vector<40x32xf32>
    %cst_74 = arith.constant 9.99999997E-7 : f32
    %174 = vector.broadcast %cst_74 : f32 to vector<40x1xf32>
    %175 = arith.addf %171, %174 : vector<40x1xf32>
    %176 = math.rsqrt %175 : vector<40x1xf32>
    %177 = vector.broadcast %176 : vector<40x1xf32> to vector<40x32xf32>
    %178 = arith.mulf %173, %177 : vector<40x32xf32>
    %179 = vector.broadcast %158 : vector<1x32xf32> to vector<40x32xf32>
    %180 = arith.mulf %178, %179 : vector<40x32xf32>
    %181 = vector.broadcast %160 : vector<1x32xf32> to vector<40x32xf32>
    %182 = arith.addf %180, %181 : vector<40x32xf32>
    %183 = arith.truncf %182 : vector<40x32xf32> to vector<40x32xbf16>
    %c0_75 = arith.constant 0 : index
    %c0_76 = arith.constant 0 : index
    %c0_77 = arith.constant 0 : index
    %184 = vector.load %arg13[%c0_75, %c0_76, %c0_77] : memref<2x32x128xbf16, #tpu.memory_space<vmem>>, vector<1x32x128xbf16>
    %185 = vector.shape_cast %184 : vector<1x32x128xbf16> to vector<32x128xbf16>
    %cst_78 = arith.constant dense<0.000000e+00> : vector<40x128xf32>
    %186 = tpu.matmul %183, %185, %cst_78 {dimension_numbers = #tpu.dot_dimension_numbers<[1], [0], [0], [1], [0, 0, 1, 1], [], []>} : vector<40x32xbf16>, vector<32x128xbf16>, vector<40x128xf32> -> vector<40x128xf32>
    %c0_79 = arith.constant 0 : index
    %c0_80 = arith.constant 0 : index
    %c0_81 = arith.constant 0 : index
    %187 = vector.load %arg14[%c0_79, %c0_80, %c0_81] : memref<2x1x128xf32, #tpu.memory_space<vmem>>, vector<1x1x128xf32>
    %188 = vector.shape_cast %187 : vector<1x1x128xf32> to vector<1x128xf32>
    %189 = vector.broadcast %188 : vector<1x128xf32> to vector<40x128xf32>
    %190 = arith.addf %186, %189 : vector<40x128xf32>
    %191 = vector.extract_strided_slice %190 {offsets = [0, 0], sizes = [40, 64], strides = [1, 1]} : vector<40x128xf32> to vector<40x64xf32>
    %192 = vector.extract_strided_slice %190 {offsets = [0, 64], sizes = [40, 64], strides = [1, 1]} : vector<40x128xf32> to vector<40x64xf32>
    %193 = arith.negf %191 : vector<40x64xf32>
    %194 = math.exp %193 : vector<40x64xf32>
    %cst_82 = arith.constant 1.000000e+00 : f32
    %195 = vector.broadcast %cst_82 : f32 to vector<40x64xf32>
    %196 = arith.addf %195, %194 : vector<40x64xf32>
    %197 = arith.divf %195, %196 : vector<40x64xf32>
    %198 = arith.mulf %191, %197 : vector<40x64xf32>
    %199 = arith.mulf %198, %192 : vector<40x64xf32>
    %c0_83 = arith.constant 0 : index
    %c0_84 = arith.constant 0 : index
    %c0_85 = arith.constant 0 : index
    %200 = vector.load %arg15[%c0_83, %c0_84, %c0_85] : memref<2x1x64xf32, #tpu.memory_space<vmem>>, vector<1x1x64xf32>
    %201 = vector.shape_cast %200 : vector<1x1x64xf32> to vector<1x64xf32>
    %c0_86 = arith.constant 0 : index
    %c0_87 = arith.constant 0 : index
    %c0_88 = arith.constant 0 : index
    %202 = vector.load %arg16[%c0_86, %c0_87, %c0_88] : memref<2x1x64xf32, #tpu.memory_space<vmem>>, vector<1x1x64xf32>
    %203 = vector.shape_cast %202 : vector<1x1x64xf32> to vector<1x64xf32>
    %cst_89 = arith.constant dense<0.000000e+00> : vector<40xf32>
    %204 = vector.multi_reduction <add>, %199, %cst_89 [1] : vector<40x64xf32> to vector<40xf32>
    %205 = vector.shape_cast %204 : vector<40xf32> to vector<40x1xf32>
    %cst_90 = arith.constant 6.400000e+01 : f32
    %206 = vector.broadcast %cst_90 : f32 to vector<40x1xf32>
    %207 = arith.divf %205, %206 : vector<40x1xf32>
    %208 = vector.broadcast %207 : vector<40x1xf32> to vector<40x64xf32>
    %209 = arith.subf %199, %208 : vector<40x64xf32>
    %210 = arith.mulf %209, %209 : vector<40x64xf32>
    %cst_91 = arith.constant dense<0.000000e+00> : vector<40xf32>
    %211 = vector.multi_reduction <add>, %210, %cst_91 [1] : vector<40x64xf32> to vector<40xf32>
    %212 = vector.shape_cast %211 : vector<40xf32> to vector<40x1xf32>
    %cst_92 = arith.constant 6.400000e+01 : f32
    %213 = vector.broadcast %cst_92 : f32 to vector<40x1xf32>
    %214 = arith.divf %212, %213 : vector<40x1xf32>
    %215 = vector.broadcast %207 : vector<40x1xf32> to vector<40x64xf32>
    %216 = arith.subf %199, %215 : vector<40x64xf32>
    %cst_93 = arith.constant 9.99999997E-7 : f32
    %217 = vector.broadcast %cst_93 : f32 to vector<40x1xf32>
    %218 = arith.addf %214, %217 : vector<40x1xf32>
    %219 = math.rsqrt %218 : vector<40x1xf32>
    %220 = vector.broadcast %219 : vector<40x1xf32> to vector<40x64xf32>
    %221 = arith.mulf %216, %220 : vector<40x64xf32>
    %222 = vector.broadcast %201 : vector<1x64xf32> to vector<40x64xf32>
    %223 = arith.mulf %221, %222 : vector<40x64xf32>
    %224 = vector.broadcast %203 : vector<1x64xf32> to vector<40x64xf32>
    %225 = arith.addf %223, %224 : vector<40x64xf32>
    %226 = arith.truncf %225 : vector<40x64xf32> to vector<40x64xbf16>
    %c0_94 = arith.constant 0 : index
    %c0_95 = arith.constant 0 : index
    %c0_96 = arith.constant 0 : index
    %227 = vector.load %arg17[%c0_94, %c0_95, %c0_96] : memref<2x64x32xbf16, #tpu.memory_space<vmem>>, vector<1x64x32xbf16>
    %228 = vector.shape_cast %227 : vector<1x64x32xbf16> to vector<64x32xbf16>
    %cst_97 = arith.constant dense<0.000000e+00> : vector<40x32xf32>
    %229 = tpu.matmul %226, %228, %cst_97 {dimension_numbers = #tpu.dot_dimension_numbers<[1], [0], [0], [1], [0, 0, 1, 1], [], []>} : vector<40x64xbf16>, vector<64x32xbf16>, vector<40x32xf32> -> vector<40x32xf32>
    %230 = arith.addf %156, %229 : vector<40x32xf32>
    %c0_98 = arith.constant 0 : index
    %c0_99 = arith.constant 0 : index
    %c0_100 = arith.constant 0 : index
    %231 = vector.load %arg18[%c0_98, %c0_99, %c0_100] : memref<2x1x32xf32, #tpu.memory_space<vmem>>, vector<1x1x32xf32>
    %232 = vector.shape_cast %231 : vector<1x1x32xf32> to vector<1x32xf32>
    %233 = vector.broadcast %232 : vector<1x32xf32> to vector<40x32xf32>
    %234 = arith.addf %230, %233 : vector<40x32xf32>
    %c1 = arith.constant 1 : index
    %c0_101 = arith.constant 0 : index
    %c0_102 = arith.constant 0 : index
    %235 = vector.load %arg5[%c1, %c0_101, %c0_102] : memref<2x1x32xf32, #tpu.memory_space<vmem>>, vector<1x1x32xf32>
    %236 = vector.shape_cast %235 : vector<1x1x32xf32> to vector<1x32xf32>
    %c1_103 = arith.constant 1 : index
    %c0_104 = arith.constant 0 : index
    %c0_105 = arith.constant 0 : index
    %237 = vector.load %arg6[%c1_103, %c0_104, %c0_105] : memref<2x1x32xf32, #tpu.memory_space<vmem>>, vector<1x1x32xf32>
    %238 = vector.shape_cast %237 : vector<1x1x32xf32> to vector<1x32xf32>
    %cst_106 = arith.constant dense<0.000000e+00> : vector<40xf32>
    %239 = vector.multi_reduction <add>, %234, %cst_106 [1] : vector<40x32xf32> to vector<40xf32>
    %240 = vector.shape_cast %239 : vector<40xf32> to vector<40x1xf32>
    %cst_107 = arith.constant 3.200000e+01 : f32
    %241 = vector.broadcast %cst_107 : f32 to vector<40x1xf32>
    %242 = arith.divf %240, %241 : vector<40x1xf32>
    %243 = vector.broadcast %242 : vector<40x1xf32> to vector<40x32xf32>
    %244 = arith.subf %234, %243 : vector<40x32xf32>
    %245 = arith.mulf %244, %244 : vector<40x32xf32>
    %cst_108 = arith.constant dense<0.000000e+00> : vector<40xf32>
    %246 = vector.multi_reduction <add>, %245, %cst_108 [1] : vector<40x32xf32> to vector<40xf32>
    %247 = vector.shape_cast %246 : vector<40xf32> to vector<40x1xf32>
    %cst_109 = arith.constant 3.200000e+01 : f32
    %248 = vector.broadcast %cst_109 : f32 to vector<40x1xf32>
    %249 = arith.divf %247, %248 : vector<40x1xf32>
    %250 = vector.broadcast %242 : vector<40x1xf32> to vector<40x32xf32>
    %251 = arith.subf %234, %250 : vector<40x32xf32>
    %cst_110 = arith.constant 9.99999997E-7 : f32
    %252 = vector.broadcast %cst_110 : f32 to vector<40x1xf32>
    %253 = arith.addf %249, %252 : vector<40x1xf32>
    %254 = math.rsqrt %253 : vector<40x1xf32>
    %255 = vector.broadcast %254 : vector<40x1xf32> to vector<40x32xf32>
    %256 = arith.mulf %251, %255 : vector<40x32xf32>
    %257 = vector.broadcast %236 : vector<1x32xf32> to vector<40x32xf32>
    %258 = arith.mulf %256, %257 : vector<40x32xf32>
    %259 = vector.broadcast %238 : vector<1x32xf32> to vector<40x32xf32>
    %260 = arith.addf %258, %259 : vector<40x32xf32>
    %261 = arith.truncf %260 : vector<40x32xf32> to vector<40x32xbf16>
    %c1_111 = arith.constant 1 : index
    %c0_112 = arith.constant 0 : index
    %c0_113 = arith.constant 0 : index
    %262 = vector.load %arg7[%c1_111, %c0_112, %c0_113] : memref<2x32x160xbf16, #tpu.memory_space<vmem>>, vector<1x32x160xbf16>
    %263 = vector.shape_cast %262 : vector<1x32x160xbf16> to vector<32x160xbf16>
    %cst_114 = arith.constant dense<0.000000e+00> : vector<40x160xf32>
    %264 = tpu.matmul %261, %263, %cst_114 {dimension_numbers = #tpu.dot_dimension_numbers<[1], [0], [0], [1], [0, 0, 1, 1], [], []>} : vector<40x32xbf16>, vector<32x160xbf16>, vector<40x160xf32> -> vector<40x160xf32>
    %c1_115 = arith.constant 1 : index
    %c0_116 = arith.constant 0 : index
    %c0_117 = arith.constant 0 : index
    %265 = vector.load %arg8[%c1_115, %c0_116, %c0_117] : memref<2x1x160xf32, #tpu.memory_space<vmem>>, vector<1x1x160xf32>
    %266 = vector.shape_cast %265 : vector<1x1x160xf32> to vector<1x160xf32>
    %267 = vector.broadcast %266 : vector<1x160xf32> to vector<40x160xf32>
    %268 = arith.addf %264, %267 : vector<40x160xf32>
    %269 = vector.extract_strided_slice %268 {offsets = [0, 0], sizes = [40, 32], strides = [1, 1]} : vector<40x160xf32> to vector<40x32xf32>
    %270 = vector.extract_strided_slice %268 {offsets = [0, 32], sizes = [40, 32], strides = [1, 1]} : vector<40x160xf32> to vector<40x32xf32>
    %271 = vector.extract_strided_slice %268 {offsets = [0, 64], sizes = [40, 32], strides = [1, 1]} : vector<40x160xf32> to vector<40x32xf32>
    %272 = vector.extract_strided_slice %268 {offsets = [0, 96], sizes = [40, 32], strides = [1, 1]} : vector<40x160xf32> to vector<40x32xf32>
    %273 = vector.extract_strided_slice %268 {offsets = [0, 128], sizes = [40, 32], strides = [1, 1]} : vector<40x160xf32> to vector<40x32xf32>
    %274 = arith.mulf %269, %69 : vector<40x32xf32>
    %275 = arith.mulf %270, %71 : vector<40x32xf32>
    %276 = arith.addf %274, %275 : vector<40x32xf32>
    %277 = arith.mulf %271, %69 : vector<40x32xf32>
    %278 = arith.mulf %272, %71 : vector<40x32xf32>
    %279 = arith.addf %277, %278 : vector<40x32xf32>
    %280 = tpu.concatenate %279, %279, %279, %279 in 0 : vector<40x32xf32>, vector<40x32xf32>, vector<40x32xf32>, vector<40x32xf32> -> vector<160x32xf32>
    %281 = arith.mulf %280, %49 : vector<160x32xf32>
    %282 = arith.truncf %281 : vector<160x32xf32> to vector<160x32xbf16>
    %283 = tpu.concatenate %273, %273, %273, %273 in 0 : vector<40x32xf32>, vector<40x32xf32>, vector<40x32xf32>, vector<40x32xf32> -> vector<160x32xf32>
    %284 = arith.mulf %283, %49 : vector<160x32xf32>
    %285 = arith.truncf %284 : vector<160x32xf32> to vector<160x32xbf16>
    %286 = arith.truncf %276 : vector<40x32xf32> to vector<40x32xbf16>
    %cst_118 = arith.constant dense<0.000000e+00> : vector<40x160xf32>
    %287 = tpu.matmul %286, %282, %cst_118 {dimension_numbers = #tpu.dot_dimension_numbers<[1], [1], [0], [0], [0, 0, 1, 0], [], []>} : vector<40x32xbf16>, vector<160x32xbf16>, vector<40x160xf32> -> vector<40x160xf32>
    %288 = arith.addf %287, %20 : vector<40x160xf32>
    %cst_119 = arith.constant dense<0xFF800000> : vector<40xf32>
    %289 = vector.multi_reduction <maximumf>, %288, %cst_119 [1] : vector<40x160xf32> to vector<40xf32>
    %290 = vector.shape_cast %289 : vector<40xf32> to vector<40x1xf32>
    %291 = vector.broadcast %290 : vector<40x1xf32> to vector<40x160xf32>
    %292 = arith.subf %288, %291 : vector<40x160xf32>
    %293 = math.exp %292 : vector<40x160xf32>
    %294 = arith.truncf %293 : vector<40x160xf32> to vector<40x160xbf16>
    %cst_120 = arith.constant dense<0.000000e+00> : vector<40x32xf32>
    %295 = tpu.matmul %294, %285, %cst_120 {dimension_numbers = #tpu.dot_dimension_numbers<[1], [0], [0], [1], [0, 0, 1, 1], [], []>} : vector<40x160xbf16>, vector<160x32xbf16>, vector<40x32xf32> -> vector<40x32xf32>
    %cst_121 = arith.constant dense<0.000000e+00> : vector<40x32xf32>
    %296 = tpu.matmul %294, %50, %cst_121 {dimension_numbers = #tpu.dot_dimension_numbers<[1], [0], [0], [1], [0, 0, 1, 1], [], []>} : vector<40x160xbf16>, vector<160x32xbf16>, vector<40x32xf32> -> vector<40x32xf32>
    %297 = tpu.reciprocal %296 {approx = true} : vector<40x32xf32> -> vector<40x32xf32>
    %298 = arith.mulf %295, %297 : vector<40x32xf32>
    %299 = arith.truncf %298 : vector<40x32xf32> to vector<40x32xbf16>
    %c1_122 = arith.constant 1 : index
    %c0_123 = arith.constant 0 : index
    %c0_124 = arith.constant 0 : index
    %300 = vector.load %arg9[%c1_122, %c0_123, %c0_124] : memref<2x32x32xbf16, #tpu.memory_space<vmem>>, vector<1x32x32xbf16>
    %301 = vector.shape_cast %300 : vector<1x32x32xbf16> to vector<32x32xbf16>
    %cst_125 = arith.constant dense<0.000000e+00> : vector<40x32xf32>
    %302 = tpu.matmul %299, %301, %cst_125 {dimension_numbers = #tpu.dot_dimension_numbers<[1], [0], [0], [1], [0, 0, 1, 1], [], []>} : vector<40x32xbf16>, vector<32x32xbf16>, vector<40x32xf32> -> vector<40x32xf32>
    %c1_126 = arith.constant 1 : index
    %c0_127 = arith.constant 0 : index
    %c0_128 = arith.constant 0 : index
    %303 = vector.load %arg10[%c1_126, %c0_127, %c0_128] : memref<2x1x32xf32, #tpu.memory_space<vmem>>, vector<1x1x32xf32>
    %304 = vector.shape_cast %303 : vector<1x1x32xf32> to vector<1x32xf32>
    %305 = vector.broadcast %304 : vector<1x32xf32> to vector<40x32xf32>
    %306 = arith.addf %302, %305 : vector<40x32xf32>
    %307 = arith.addf %234, %306 : vector<40x32xf32>
    %c1_129 = arith.constant 1 : index
    %c0_130 = arith.constant 0 : index
    %c0_131 = arith.constant 0 : index
    %308 = vector.load %arg11[%c1_129, %c0_130, %c0_131] : memref<2x1x32xf32, #tpu.memory_space<vmem>>, vector<1x1x32xf32>
    %309 = vector.shape_cast %308 : vector<1x1x32xf32> to vector<1x32xf32>
    %c1_132 = arith.constant 1 : index
    %c0_133 = arith.constant 0 : index
    %c0_134 = arith.constant 0 : index
    %310 = vector.load %arg12[%c1_132, %c0_133, %c0_134] : memref<2x1x32xf32, #tpu.memory_space<vmem>>, vector<1x1x32xf32>
    %311 = vector.shape_cast %310 : vector<1x1x32xf32> to vector<1x32xf32>
    %cst_135 = arith.constant dense<0.000000e+00> : vector<40xf32>
    %312 = vector.multi_reduction <add>, %307, %cst_135 [1] : vector<40x32xf32> to vector<40xf32>
    %313 = vector.shape_cast %312 : vector<40xf32> to vector<40x1xf32>
    %cst_136 = arith.constant 3.200000e+01 : f32
    %314 = vector.broadcast %cst_136 : f32 to vector<40x1xf32>
    %315 = arith.divf %313, %314 : vector<40x1xf32>
    %316 = vector.broadcast %315 : vector<40x1xf32> to vector<40x32xf32>
    %317 = arith.subf %307, %316 : vector<40x32xf32>
    %318 = arith.mulf %317, %317 : vector<40x32xf32>
    %cst_137 = arith.constant dense<0.000000e+00> : vector<40xf32>
    %319 = vector.multi_reduction <add>, %318, %cst_137 [1] : vector<40x32xf32> to vector<40xf32>
    %320 = vector.shape_cast %319 : vector<40xf32> to vector<40x1xf32>
    %cst_138 = arith.constant 3.200000e+01 : f32
    %321 = vector.broadcast %cst_138 : f32 to vector<40x1xf32>
    %322 = arith.divf %320, %321 : vector<40x1xf32>
    %323 = vector.broadcast %315 : vector<40x1xf32> to vector<40x32xf32>
    %324 = arith.subf %307, %323 : vector<40x32xf32>
    %cst_139 = arith.constant 9.99999997E-7 : f32
    %325 = vector.broadcast %cst_139 : f32 to vector<40x1xf32>
    %326 = arith.addf %322, %325 : vector<40x1xf32>
    %327 = math.rsqrt %326 : vector<40x1xf32>
    %328 = vector.broadcast %327 : vector<40x1xf32> to vector<40x32xf32>
    %329 = arith.mulf %324, %328 : vector<40x32xf32>
    %330 = vector.broadcast %309 : vector<1x32xf32> to vector<40x32xf32>
    %331 = arith.mulf %329, %330 : vector<40x32xf32>
    %332 = vector.broadcast %311 : vector<1x32xf32> to vector<40x32xf32>
    %333 = arith.addf %331, %332 : vector<40x32xf32>
    %334 = arith.truncf %333 : vector<40x32xf32> to vector<40x32xbf16>
    %c1_140 = arith.constant 1 : index
    %c0_141 = arith.constant 0 : index
    %c0_142 = arith.constant 0 : index
    %335 = vector.load %arg13[%c1_140, %c0_141, %c0_142] : memref<2x32x128xbf16, #tpu.memory_space<vmem>>, vector<1x32x128xbf16>
    %336 = vector.shape_cast %335 : vector<1x32x128xbf16> to vector<32x128xbf16>
    %cst_143 = arith.constant dense<0.000000e+00> : vector<40x128xf32>
    %337 = tpu.matmul %334, %336, %cst_143 {dimension_numbers = #tpu.dot_dimension_numbers<[1], [0], [0], [1], [0, 0, 1, 1], [], []>} : vector<40x32xbf16>, vector<32x128xbf16>, vector<40x128xf32> -> vector<40x128xf32>
    %c1_144 = arith.constant 1 : index
    %c0_145 = arith.constant 0 : index
    %c0_146 = arith.constant 0 : index
    %338 = vector.load %arg14[%c1_144, %c0_145, %c0_146] : memref<2x1x128xf32, #tpu.memory_space<vmem>>, vector<1x1x128xf32>
    %339 = vector.shape_cast %338 : vector<1x1x128xf32> to vector<1x128xf32>
    %340 = vector.broadcast %339 : vector<1x128xf32> to vector<40x128xf32>
    %341 = arith.addf %337, %340 : vector<40x128xf32>
    %342 = vector.extract_strided_slice %341 {offsets = [0, 0], sizes = [40, 64], strides = [1, 1]} : vector<40x128xf32> to vector<40x64xf32>
    %343 = vector.extract_strided_slice %341 {offsets = [0, 64], sizes = [40, 64], strides = [1, 1]} : vector<40x128xf32> to vector<40x64xf32>
    %344 = arith.negf %342 : vector<40x64xf32>
    %345 = math.exp %344 : vector<40x64xf32>
    %cst_147 = arith.constant 1.000000e+00 : f32
    %346 = vector.broadcast %cst_147 : f32 to vector<40x64xf32>
    %347 = arith.addf %346, %345 : vector<40x64xf32>
    %348 = arith.divf %346, %347 : vector<40x64xf32>
    %349 = arith.mulf %342, %348 : vector<40x64xf32>
    %350 = arith.mulf %349, %343 : vector<40x64xf32>
    %c1_148 = arith.constant 1 : index
    %c0_149 = arith.constant 0 : index
    %c0_150 = arith.constant 0 : index
    %351 = vector.load %arg15[%c1_148, %c0_149, %c0_150] : memref<2x1x64xf32, #tpu.memory_space<vmem>>, vector<1x1x64xf32>
    %352 = vector.shape_cast %351 : vector<1x1x64xf32> to vector<1x64xf32>
    %c1_151 = arith.constant 1 : index
    %c0_152 = arith.constant 0 : index
    %c0_153 = arith.constant 0 : index
    %353 = vector.load %arg16[%c1_151, %c0_152, %c0_153] : memref<2x1x64xf32, #tpu.memory_space<vmem>>, vector<1x1x64xf32>
    %354 = vector.shape_cast %353 : vector<1x1x64xf32> to vector<1x64xf32>
    %cst_154 = arith.constant dense<0.000000e+00> : vector<40xf32>
    %355 = vector.multi_reduction <add>, %350, %cst_154 [1] : vector<40x64xf32> to vector<40xf32>
    %356 = vector.shape_cast %355 : vector<40xf32> to vector<40x1xf32>
    %cst_155 = arith.constant 6.400000e+01 : f32
    %357 = vector.broadcast %cst_155 : f32 to vector<40x1xf32>
    %358 = arith.divf %356, %357 : vector<40x1xf32>
    %359 = vector.broadcast %358 : vector<40x1xf32> to vector<40x64xf32>
    %360 = arith.subf %350, %359 : vector<40x64xf32>
    %361 = arith.mulf %360, %360 : vector<40x64xf32>
    %cst_156 = arith.constant dense<0.000000e+00> : vector<40xf32>
    %362 = vector.multi_reduction <add>, %361, %cst_156 [1] : vector<40x64xf32> to vector<40xf32>
    %363 = vector.shape_cast %362 : vector<40xf32> to vector<40x1xf32>
    %cst_157 = arith.constant 6.400000e+01 : f32
    %364 = vector.broadcast %cst_157 : f32 to vector<40x1xf32>
    %365 = arith.divf %363, %364 : vector<40x1xf32>
    %366 = vector.broadcast %358 : vector<40x1xf32> to vector<40x64xf32>
    %367 = arith.subf %350, %366 : vector<40x64xf32>
    %cst_158 = arith.constant 9.99999997E-7 : f32
    %368 = vector.broadcast %cst_158 : f32 to vector<40x1xf32>
    %369 = arith.addf %365, %368 : vector<40x1xf32>
    %370 = math.rsqrt %369 : vector<40x1xf32>
    %371 = vector.broadcast %370 : vector<40x1xf32> to vector<40x64xf32>
    %372 = arith.mulf %367, %371 : vector<40x64xf32>
    %373 = vector.broadcast %352 : vector<1x64xf32> to vector<40x64xf32>
    %374 = arith.mulf %372, %373 : vector<40x64xf32>
    %375 = vector.broadcast %354 : vector<1x64xf32> to vector<40x64xf32>
    %376 = arith.addf %374, %375 : vector<40x64xf32>
    %377 = arith.truncf %376 : vector<40x64xf32> to vector<40x64xbf16>
    %c1_159 = arith.constant 1 : index
    %c0_160 = arith.constant 0 : index
    %c0_161 = arith.constant 0 : index
    %378 = vector.load %arg17[%c1_159, %c0_160, %c0_161] : memref<2x64x32xbf16, #tpu.memory_space<vmem>>, vector<1x64x32xbf16>
    %379 = vector.shape_cast %378 : vector<1x64x32xbf16> to vector<64x32xbf16>
    %cst_162 = arith.constant dense<0.000000e+00> : vector<40x32xf32>
    %380 = tpu.matmul %377, %379, %cst_162 {dimension_numbers = #tpu.dot_dimension_numbers<[1], [0], [0], [1], [0, 0, 1, 1], [], []>} : vector<40x64xbf16>, vector<64x32xbf16>, vector<40x32xf32> -> vector<40x32xf32>
    %381 = arith.addf %307, %380 : vector<40x32xf32>
    %c1_163 = arith.constant 1 : index
    %c0_164 = arith.constant 0 : index
    %c0_165 = arith.constant 0 : index
    %382 = vector.load %arg18[%c1_163, %c0_164, %c0_165] : memref<2x1x32xf32, #tpu.memory_space<vmem>>, vector<1x1x32xf32>
    %383 = vector.shape_cast %382 : vector<1x1x32xf32> to vector<1x32xf32>
    %384 = vector.broadcast %383 : vector<1x32xf32> to vector<40x32xf32>
    %385 = arith.addf %381, %384 : vector<40x32xf32>
    %cst_166 = arith.constant dense<0.000000e+00> : vector<8x32xf32>
    %386 = tpu.matmul %79, %385, %cst_166 {dimension_numbers = #tpu.dot_dimension_numbers<[1], [0], [0], [1], [0, 0, 1, 1], [], []>} : vector<8x40xf32>, vector<40x32xf32>, vector<8x32xf32> -> vector<8x32xf32>
    %c0_167 = arith.constant 0 : index
    %c0_168 = arith.constant 0 : index
    %387 = vector.load %arg19[%c0_167, %c0_168] : memref<1x32xf32, #tpu.memory_space<vmem>>, vector<1x32xf32>
    %c0_169 = arith.constant 0 : index
    %c0_170 = arith.constant 0 : index
    %388 = vector.load %arg20[%c0_169, %c0_170] : memref<1x32xf32, #tpu.memory_space<vmem>>, vector<1x32xf32>
    %cst_171 = arith.constant dense<0.000000e+00> : vector<8xf32>
    %389 = vector.multi_reduction <add>, %386, %cst_171 [1] : vector<8x32xf32> to vector<8xf32>
    %390 = vector.shape_cast %389 : vector<8xf32> to vector<8x1xf32>
    %cst_172 = arith.constant 3.200000e+01 : f32
    %391 = vector.broadcast %cst_172 : f32 to vector<8x1xf32>
    %392 = arith.divf %390, %391 : vector<8x1xf32>
    %393 = vector.broadcast %392 : vector<8x1xf32> to vector<8x32xf32>
    %394 = arith.subf %386, %393 : vector<8x32xf32>
    %395 = arith.mulf %394, %394 : vector<8x32xf32>
    %cst_173 = arith.constant dense<0.000000e+00> : vector<8xf32>
    %396 = vector.multi_reduction <add>, %395, %cst_173 [1] : vector<8x32xf32> to vector<8xf32>
    %397 = vector.shape_cast %396 : vector<8xf32> to vector<8x1xf32>
    %cst_174 = arith.constant 3.200000e+01 : f32
    %398 = vector.broadcast %cst_174 : f32 to vector<8x1xf32>
    %399 = arith.divf %397, %398 : vector<8x1xf32>
    %400 = vector.broadcast %392 : vector<8x1xf32> to vector<8x32xf32>
    %401 = arith.subf %386, %400 : vector<8x32xf32>
    %cst_175 = arith.constant 9.99999997E-7 : f32
    %402 = vector.broadcast %cst_175 : f32 to vector<8x1xf32>
    %403 = arith.addf %399, %402 : vector<8x1xf32>
    %404 = math.rsqrt %403 : vector<8x1xf32>
    %405 = vector.broadcast %404 : vector<8x1xf32> to vector<8x32xf32>
    %406 = arith.mulf %401, %405 : vector<8x32xf32>
    %407 = vector.broadcast %387 : vector<1x32xf32> to vector<8x32xf32>
    %408 = arith.mulf %406, %407 : vector<8x32xf32>
    %409 = vector.broadcast %388 : vector<1x32xf32> to vector<8x32xf32>
    %410 = arith.addf %408, %409 : vector<8x32xf32>
    %411 = arith.truncf %410 : vector<8x32xf32> to vector<8x32xbf16>
    %c0_176 = arith.constant 0 : index
    %c0_177 = arith.constant 0 : index
    %412 = vector.load %arg21[%c0_176, %c0_177] : memref<32x1xbf16, #tpu.memory_space<vmem>>, vector<32x1xbf16>
    %cst_178 = arith.constant dense<0.000000e+00> : vector<8x1xf32>
    %413 = tpu.matmul %411, %412, %cst_178 {dimension_numbers = #tpu.dot_dimension_numbers<[1], [0], [0], [1], [0, 0, 1, 1], [], []>} : vector<8x32xbf16>, vector<32x1xbf16>, vector<8x1xf32> -> vector<8x1xf32>
    %c0_179 = arith.constant 0 : index
    %c0_180 = arith.constant 0 : index
    %414 = vector.load %arg22[%c0_179, %c0_180] : memref<1x1xf32, #tpu.memory_space<vmem>>, vector<1x1xf32>
    %415 = vector.broadcast %414 : vector<1x1xf32> to vector<8x1xf32>
    %416 = arith.addf %413, %415 : vector<8x1xf32>
    %417 = arith.negf %416 : vector<8x1xf32>
    %418 = math.exp %417 : vector<8x1xf32>
    %cst_181 = arith.constant 1.000000e+00 : f32
    %419 = vector.broadcast %cst_181 : f32 to vector<8x1xf32>
    %420 = arith.addf %419, %418 : vector<8x1xf32>
    %421 = arith.divf %419, %420 : vector<8x1xf32>
    %c0_182 = arith.constant 0 : index
    %c0_183 = arith.constant 0 : index
    %422 = vector.load %arg23[%c0_182, %c0_183] : memref<8x1xf32, #tpu.memory_space<vmem>>, vector<8x1xf32>
    tpu.vector_store %arg23[%c0_182, %c0_183], %421 {strides = array<i32>} : memref<8x1xf32, #tpu.memory_space<vmem>>, vector<8x1xf32>,
    return
  }
}

</mosaic_0001>

<llo_original>
// kernel: eva02_forward.1
$region0: #{eva02_forward.1}
  #allocation0 [shape = 'u32[]', space=smem, size = 0x4, offset = 0x4, fixed_abs, tag = 'smem constant byte address 0x4 - core index']
  #allocation1 [shape = 'u32[144,128]{1,0:T(1,128)}', space=vmem, size = 0x12000, scoped, tag = 'internal scratch']
  #allocation2 [shape = 'f32[1,1]{1,0:T(1,128)S(1)}', space=vmem, size = 0x200, scoped, tag = 'scoped memory for eva02_forward.1']
  %s0 = inlined_call_operand.vmem [shape: bf16[40,192], index: 0, kind: input, shape index: {}]
  %s1 = inlined_call_operand.vmem [shape: bf16[192,32], index: 1, kind: input, shape index: {}]
  %s2 = inlined_call_operand.vmem [shape: f32[5,32], index: 2, kind: input, shape index: {}]
  %s3 = inlined_call_operand.vmem [shape: f32[5,32], index: 3, kind: input, shape index: {}]
  %s4 = inlined_call_operand.vmem [shape: f32[5,32], index: 4, kind: input, shape index: {}]
  %s5 = inlined_call_operand.vmem [shape: f32[2,1,32], index: 5, kind: input, shape index: {}]
  %s6 = inlined_call_operand.vmem [shape: f32[2,1,32], index: 6, kind: input, shape index: {}]
  %s7 = inlined_call_operand.vmem [shape: bf16[2,32,160], index: 7, kind: input, shape index: {}]
  %s8 = inlined_call_operand.vmem [shape: f32[2,1,160], index: 8, kind: input, shape index: {}]
  %s9 = inlined_call_operand.vmem [shape: bf16[2,32,32], index: 9, kind: input, shape index: {}]
  %s10 = inlined_call_operand.vmem [shape: f32[2,1,32], index: 10, kind: input, shape index: {}]
  %s11 = inlined_call_operand.vmem [shape: f32[2,1,32], index: 11, kind: input, shape index: {}]
  %s12 = inlined_call_operand.vmem [shape: f32[2,1,32], index: 12, kind: input, shape index: {}]
  %s13 = inlined_call_operand.vmem [shape: bf16[2,32,128], index: 13, kind: input, shape index: {}]
  %s14 = inlined_call_operand.vmem [shape: f32[2,1,128], index: 14, kind: input, shape index: {}]
  %s15 = inlined_call_operand.vmem [shape: f32[2,1,64], index: 15, kind: input, shape index: {}]
  %s16 = inlined_call_operand.vmem [shape: f32[2,1,64], index: 16, kind: input, shape index: {}]
  %s17 = inlined_call_operand.vmem [shape: bf16[2,64,32], index: 17, kind: input, shape index: {}]
  %s18 = inlined_call_operand.vmem [shape: f32[2,1,32], index: 18, kind: input, shape index: {}]
  %s19 = inlined_call_operand.vmem [shape: f32[1,32], index: 19, kind: input, shape index: {}]
  %s20 = inlined_call_operand.vmem [shape: f32[1,32], index: 20, kind: input, shape index: {}]
  %s21 = inlined_call_operand.vmem [shape: bf16[32,1], index: 21, kind: input, shape index: {}]
  %s22 = inlined_call_operand.<no memory space> [shape: f32[1,1], index: 22, kind: input, shape index: {}]
  %s23 = inlined_call_operand.vmem [shape: f32[8,1], index: 23, kind: output, shape index: {}]
  %s24 = sld [smem:[#allocation0]]
  $region102: #{eva02_forward.1} parent=0
    _
  %s26 = ssub.s32 1, %s24
  %s27 = scalar_select 0, %s26, %s24
  %v28 = vstv %s22
  %29 = vst [vmem:[#allocation2] sm:$0x1] %v28
  // Predicated region
  $region2: #{eva02_forward.1} parent=0 // pred_check
    _
  $region3: #{eva02_forward.1} parent=0 // pred_check_branch
    %31 = sbr.rel (0) target = $region5
  $region4: #{eva02_forward.1} parent=0 // pred_region
    _
  $region5: #{eva02_forward.1} parent=0 // pred_fallthru
    _
  // Predicated region
  $region6: #{eva02_forward.1} parent=0 // pred_check
    _
  $region7: #{eva02_forward.1} parent=0 // pred_check_branch
    %33 = sbr.rel (0) target = $region9
  $region8: #{eva02_forward.1} parent=0 // pred_region
    _
  $region9: #{eva02_forward.1} parent=0 // pred_fallthru
    _
  // Predicated region
  $region10: #{eva02_forward.1} parent=0 // pred_check
    _
  $region11: #{eva02_forward.1} parent=0 // pred_check_branch
    %35 = sbr.rel (0) target = $region13
  $region12: #{eva02_forward.1} parent=0 // pred_region
    _
  $region13: #{eva02_forward.1} parent=0 // pred_fallthru
    _
  // Predicated region
  $region14: #{eva02_forward.1} parent=0 // pred_check
    _
  $region15: #{eva02_forward.1} parent=0 // pred_check_branch
    %37 = sbr.rel (0) target = $region17
  $region16: #{eva02_forward.1} parent=0 // pred_region
    _
  $region17: #{eva02_forward.1} parent=0 // pred_fallthru
    _
  // Predicated region
  $region18: #{eva02_forward.1} parent=0 // pred_check
    _
  $region19: #{eva02_forward.1} parent=0 // pred_check_branch
    %39 = sbr.rel (0) target = $region21
  $region20: #{eva02_forward.1} parent=0 // pred_region
    _
  $region21: #{eva02_forward.1} parent=0 // pred_fallthru
    _
  // Predicated region
  $region22: #{eva02_forward.1} parent=0 // pred_check
    _
  $region23: #{eva02_forward.1} parent=0 // pred_check_branch
    %41 = sbr.rel (0) target = $region25
  $region24: #{eva02_forward.1} parent=0 // pred_region
    _
  $region25: #{eva02_forward.1} parent=0 // pred_fallthru
    _
  // Predicated region
  $region26: #{eva02_forward.1} parent=0 // pred_check
    _
  $region27: #{eva02_forward.1} parent=0 // pred_check_branch
    %43 = sbr.rel (0) target = $region29
  $region28: #{eva02_forward.1} parent=0 // pred_region
    _
  $region29: #{eva02_forward.1} parent=0 // pred_fallthru
    _
  // Predicated region
  $region30: #{eva02_forward.1} parent=0 // pred_check
    _
  $region31: #{eva02_forward.1} parent=0 // pred_check_branch
    %45 = sbr.rel (0) target = $region33
  $region32: #{eva02_forward.1} parent=0 // pred_region
    _
  $region33: #{eva02_forward.1} parent=0 // pred_fallthru
    _
  // Predicated region
  $region34: #{eva02_forward.1} parent=0 // pred_check
    _
  $region35: #{eva02_forward.1} parent=0 // pred_check_branch
    %47 = sbr.rel (0) target = $region37
  $region36: #{eva02_forward.1} parent=0 // pred_region
    _
  $region37: #{eva02_forward.1} parent=0 // pred_fallthru
    _
  // Predicated region
  $region38: #{eva02_forward.1} parent=0 // pred_check
    _
  $region39: #{eva02_forward.1} parent=0 // pred_check_branch
    %49 = sbr.rel (0) target = $region41
  $region40: #{eva02_forward.1} parent=0 // pred_region
    _
  $region41: #{eva02_forward.1} parent=0 // pred_fallthru
    _
  // Predicated region
  $region42: #{eva02_forward.1} parent=0 // pred_check
    _
  $region43: #{eva02_forward.1} parent=0 // pred_check_branch
    %51 = sbr.rel (0) target = $region45
  $region44: #{eva02_forward.1} parent=0 // pred_region
    _
  $region45: #{eva02_forward.1} parent=0 // pred_fallthru
    _
  // Predicated region
  $region46: #{eva02_forward.1} parent=0 // pred_check
    _
  $region47: #{eva02_forward.1} parent=0 // pred_check_branch
    %53 = sbr.rel (0) target = $region49
  $region48: #{eva02_forward.1} parent=0 // pred_region
    _
  $region49: #{eva02_forward.1} parent=0 // pred_fallthru
    _
  // Predicated region
  $region50: #{eva02_forward.1} parent=0 // pred_check
    _
  $region51: #{eva02_forward.1} parent=0 // pred_check_branch
    %55 = sbr.rel (0) target = $region53
  $region52: #{eva02_forward.1} parent=0 // pred_region
    _
  $region53: #{eva02_forward.1} parent=0 // pred_fallthru
    _
  // Predicated region
  $region54: #{eva02_forward.1} parent=0 // pred_check
    _
  $region55: #{eva02_forward.1} parent=0 // pred_check_branch
    %57 = sbr.rel (0) target = $region57
  $region56: #{eva02_forward.1} parent=0 // pred_region
    _
  $region57: #{eva02_forward.1} parent=0 // pred_fallthru
    _
  // Predicated region
  $region58: #{eva02_forward.1} parent=0 // pred_check
    _
  $region59: #{eva02_forward.1} parent=0 // pred_check_branch
    %59 = sbr.rel (0) target = $region61
  $region60: #{eva02_forward.1} parent=0 // pred_region
    _
  $region61: #{eva02_forward.1} parent=0 // pred_fallthru
    _
  // Predicated region
  $region62: #{eva02_forward.1} parent=0 // pred_check
    _
  $region63: #{eva02_forward.1} parent=0 // pred_check_branch
    %61 = sbr.rel (0) target = $region65
  $region64: #{eva02_forward.1} parent=0 // pred_region
    _
  $region65: #{eva02_forward.1} parent=0 // pred_fallthru
    _
  // Predicated region
  $region66: #{eva02_forward.1} parent=0 // pred_check
    _
  $region67: #{eva02_forward.1} parent=0 // pred_check_branch
    %63 = sbr.rel (0) target = $region69
  $region68: #{eva02_forward.1} parent=0 // pred_region
    _
  $region69: #{eva02_forward.1} parent=0 // pred_fallthru
    _
  // Predicated region
  $region70: #{eva02_forward.1} parent=0 // pred_check
    _
  $region71: #{eva02_forward.1} parent=0 // pred_check_branch
    %65 = sbr.rel (0) target = $region73
  $region72: #{eva02_forward.1} parent=0 // pred_region
    _
  $region73: #{eva02_forward.1} parent=0 // pred_fallthru
    _
  // Predicated region
  $region74: #{eva02_forward.1} parent=0 // pred_check
    _
  $region75: #{eva02_forward.1} parent=0 // pred_check_branch
    %67 = sbr.rel (0) target = $region77
  $region76: #{eva02_forward.1} parent=0 // pred_region
    _
  $region77: #{eva02_forward.1} parent=0 // pred_fallthru
    _
  // Predicated region
  $region78: #{eva02_forward.1} parent=0 // pred_check
    _
  $region79: #{eva02_forward.1} parent=0 // pred_check_branch
    %69 = sbr.rel (0) target = $region81
  $region80: #{eva02_forward.1} parent=0 // pred_region
    _
  $region81: #{eva02_forward.1} parent=0 // pred_fallthru
    _
  // Predicated region
  $region82: #{eva02_forward.1} parent=0 // pred_check
    _
  $region83: #{eva02_forward.1} parent=0 // pred_check_branch
    %71 = sbr.rel (0) target = $region85
  $region84: #{eva02_forward.1} parent=0 // pred_region
    _
  $region85: #{eva02_forward.1} parent=0 // pred_fallthru
    _
  // Predicated region
  $region86: #{eva02_forward.1} parent=0 // pred_check
    _
  $region87: #{eva02_forward.1} parent=0 // pred_check_branch
    %73 = sbr.rel (0) target = $region89
  $region88: #{eva02_forward.1} parent=0 // pred_region
    _
  $region89: #{eva02_forward.1} parent=0 // pred_fallthru
    _
  // Predicated region
  $region90: #{eva02_forward.1} parent=0 // pred_check
    _
  $region91: #{eva02_forward.1} parent=0 // pred_check_branch
    %75 = sbr.rel (0) target = $region93
  $region92: #{eva02_forward.1} parent=0 // pred_region
    _
  $region93: #{eva02_forward.1} parent=0 // pred_fallthru
    _
  %v77 = vlaneseq
  %v78 = vshrl.u32 %v77, 7
  %v79 = vadd.s32 %v78, 8
  %v80 = vadd.s32 %v78, 16
  %v81 = vadd.s32 %v78, 24
  %v82 = vadd.s32 %v78, 32
  %v83 = vlaneseq
  %v84 = vand.u32 %v83, 127
  %v85 = vmul.u32 %v84, 5
  %vm86 = vcmp.ge.s32.totalorder %v78, %v85
  %vm87 = vcmp.ge.s32.totalorder %v79, %v85
  %vm88 = vcmp.ge.s32.totalorder %v80, %v85
  %vm89 = vcmp.ge.s32.totalorder %v81, %v85
  %vm90 = vcmp.ge.s32.totalorder %v82, %v85
  %v91 = vadd.s32 %v84, 1
  %v92 = vmul.u32 %v91, 5
  %vm93 = vcmp.lt.s32.totalorder %v78, %v92
  %vm94 = vcmp.lt.s32.totalorder %v79, %v92
  %vm95 = vcmp.lt.s32.totalorder %v80, %v92
  %vm96 = vcmp.lt.s32.totalorder %v81, %v92
  %vm97 = vcmp.lt.s32.totalorder %v82, %v92
  %vm98 = vmand %vm86, %vm93
  %vm99 = vmand %vm87, %vm94
  %vm100 = vmand %vm88, %vm95
  %vm101 = vmand %vm89, %vm96
  %vm102 = vmand %vm90, %vm97
  %v103 = vsel %vm98, 1.0, 0.0
  %v104 = vsel %vm99, 1.0, 0.0
  %v105 = vsel %vm100, 1.0, 0.0
  %v106 = vsel %vm101, 1.0, 0.0
  %v107 = vsel %vm102, 1.0, 0.0
  %vm108 = vcmask 64512
  %v110 = vsel %vm108, %v103, 0
  %v113 = vsel %vm108, %v104, 0
  %v116 = vsel %vm108, %v105, 0
  %v119 = vsel %vm108, %v106, 0
  %v122 = vsel %vm108, %v107, 0
  %124 = vmatprep.subr.mxu0 0.0
  %125 = vmatpush1.xpose.msra.mxu0 0.0
  %126 = vmatprep.subr.mxu0 0.0
  %127 = vmatpush1.xpose.msra.mxu0 0.0
  %128 = vmatprep.subr.mxu0 0.0
  %129 = vmatpush1.xpose.msra.mxu0 0.0
  %130 = vmatprep.subr.mxu0 0.0
  %131 = vmatpush1.xpose.msra.mxu0 0.0
  %132 = vmatprep.subr.mxu0 0.0
  %133 = vmatpush1.xpose.msra.mxu0 0.0
  %134 = vmatprep.subr.mxu0 0.0
  %135 = vmatpush1.xpose.msra.mxu0 0.0
  %136 = vmatprep.subr.mxu0 0.0
  %137 = vmatpush1.xpose.msra.mxu0 0.0
  %138 = vmatprep.subr.mxu0 0.0
  %139 = vmatpush1.xpose.msra.mxu0 0.0
  %140 = vmatprep.subr.mxu0 0.0
  %141 = vmatpush1.xpose.msra.mxu0 0.0
  %142 = vmatprep.subr.mxu0 0.0
  %143 = vmatpush1.xpose.msra.mxu0 0.0
  %144 = vmatprep.subr.mxu0 0.0
  %145 = vmatpush1.xpose.msra.mxu0 0.0
  %146 = vmatprep.subr.mxu0 0.0
  %147 = vmatpush1.xpose.msra.mxu0 %v122
  %148 = vmatprep.subr.mxu0 0.0
  %149 = vmatpush1.xpose.msra.mxu0 %v119
  %150 = vmatprep.subr.mxu0 0.0
  %151 = vmatpush1.xpose.msra.mxu0 %v116
  %152 = vmatprep.subr.mxu0 0.0
  %153 = vmatpush1.xpose.msra.mxu0 %v113
  %154 = vmatprep.subr.mxu0 0.0
  %155 = vmatpush1.xpose.msra.mxu0 %v110
  %156 = vmatprep.subr.mxu0 0.0
  %157 = vmatpush2.xpose.msra.mxu0 0.0
  %158 = vmatprep.subr.mxu0 0.0
  %159 = vmatpush2.xpose.msra.mxu0 0.0
  %160 = vmatprep.subr.mxu0 0.0
  %161 = vmatpush2.xpose.msra.mxu0 0.0
  %162 = vmatprep.subr.mxu0 0.0
  %163 = vmatpush2.xpose.msra.mxu0 0.0
  %164 = vmatprep.subr.mxu0 0.0
  %165 = vmatpush2.xpose.msra.mxu0 0.0
  %166 = vmatprep.subr.mxu0 0.0
  %167 = vmatpush2.xpose.msra.mxu0 0.0
  %168 = vmatprep.subr.mxu0 0.0
  %169 = vmatpush2.xpose.msra.mxu0 0.0
  %170 = vmatprep.subr.mxu0 0.0
  %171 = vmatpush2.xpose.msra.mxu0 0.0
  %172 = vmatprep.subr.mxu0 0.0
  %173 = vmatpush2.xpose.msra.mxu0 0.0
  %174 = vmatprep.subr.mxu0 0.0
  %175 = vmatpush2.xpose.msra.mxu0 0.0
  %176 = vmatprep.subr.mxu0 0.0
  %177 = vmatpush2.xpose.msra.mxu0 0.0
  %178 = vmatprep.subr.mxu0 0.0
  %179 = vmatpush2.xpose.msra.mxu0 0.0
  %180 = vmatprep.subr.mxu0 0.0
  %181 = vmatpush2.xpose.msra.mxu0 0.0
  %182 = vmatprep.subr.mxu0 0.0
  %183 = vmatpush2.xpose.msra.mxu0 0.0
  %184 = vmatprep.subr.mxu0 0.0
  %185 = vmatpush2.xpose.msra.mxu0 0.0
  %186 = vmatprep.subr.mxu0 0.0
  %187 = vmatpush2.xpose.msra.mxu0 0.0
  %188 = vmatprep.mubr.f32.mxu0 0.0
  %189 = vmatmul.mubr.f32.gmra.mxu0 %v110
  %v190 = vpop.f32.mrf.mxu0
  %v191 = vadd.f32 0.0, %v190
  %v192 = vpop.f32.mrf.mxu0
  %193 = vmatprep.mubr.f32.mxu0 0.0
  %194 = vmatmul.mubr.f32.gmra.mxu0 %v113
  %v195 = vpop.f32.mrf.mxu0
  %v196 = vadd.f32 0.0, %v195
  %v197 = vpop.f32.mrf.mxu0
  %198 = vmatprep.mubr.f32.mxu0 0.0
  %199 = vmatmul.mubr.f32.gmra.mxu0 %v116
  %v200 = vpop.f32.mrf.mxu0
  %v201 = vadd.f32 0.0, %v200
  %v202 = vpop.f32.mrf.mxu0
  %203 = vmatprep.mubr.f32.mxu0 0.0
  %204 = vmatmul.mubr.f32.gmra.mxu0 %v119
  %v205 = vpop.f32.mrf.mxu0
  %v206 = vadd.f32 0.0, %v205
  %v207 = vpop.f32.mrf.mxu0
  %208 = vmatprep.mubr.f32.mxu0 0.0
  %209 = vmatmul.mubr.f32.gmra.mxu0 %v122
  %v210 = vpop.f32.mrf.mxu0
  %v211 = vadd.f32 0.0, %v210
  %v212 = vpop.f32.mrf.mxu0
  %213 = vdwg.mxu0
  %vm214 = vcmp.gt.f32.partialorder %v191, 0.5
  %vm215 = vcmp.gt.f32.partialorder %v196, 0.5
  %vm216 = vcmp.gt.f32.partialorder %v201, 0.5
  %vm217 = vcmp.gt.f32.partialorder %v206, 0.5
  %vm218 = vcmp.gt.f32.partialorder %v211, 0.5
  %v219 = vsel %vm214, 0.0, -1e+30
  %v220 = vsel %vm215, 0.0, -1e+30
  %v221 = vsel %vm216, 0.0, -1e+30
  %v222 = vsel %vm217, 0.0, -1e+30
  %v223 = vsel %vm218, 0.0, -1e+30
  %229 = vrot.lane.b32.xlu0 %v219, 40
  %v230 = vpop.permute.xlu0 %229
  %231 = vrot.lane.b32.xlu0 %v220, 40
  %v232 = vpop.permute.xlu0 %231
  %233 = vrot.lane.b32.xlu0 %v221, 40
  %v234 = vpop.permute.xlu0 %233
  %235 = vrot.lane.b32.xlu0 %v222, 40
  %v236 = vpop.permute.xlu0 %235
  %237 = vrot.lane.b32.xlu0 %v223, 40
  %v238 = vpop.permute.xlu0 %237
  %244 = vrot.lane.b32.xlu0 %v219, 80
  %v245 = vpop.permute.xlu0 %244
  %246 = vrot.lane.b32.xlu0 %v220, 80
  %v247 = vpop.permute.xlu0 %246
  %248 = vrot.lane.b32.xlu0 %v221, 80
  %v249 = vpop.permute.xlu0 %248
  %250 = vrot.lane.b32.xlu0 %v222, 80
  %v251 = vpop.permute.xlu0 %250
  %252 = vrot.lane.b32.xlu0 %v223, 80
  %v253 = vpop.permute.xlu0 %252
  %259 = vrot.lane.b32.xlu0 %v219, 120
  %v260 = vpop.permute.xlu0 %259
  %261 = vrot.lane.b32.xlu0 %v220, 120
  %v262 = vpop.permute.xlu0 %261
  %263 = vrot.lane.b32.xlu0 %v221, 120
  %v264 = vpop.permute.xlu0 %263
  %265 = vrot.lane.b32.xlu0 %v222, 120
  %v266 = vpop.permute.xlu0 %265
  %267 = vrot.lane.b32.xlu0 %v223, 120
  %v268 = vpop.permute.xlu0 %267
  %vm274 = vcmask 326656
  %v275 = vsel %vm274, %v219, %v230
  %v276 = vsel %vm274, %v220, %v232
  %v277 = vsel %vm274, %v221, %v234
  %v278 = vsel %vm274, %v222, %v236
  %v279 = vsel %vm274, %v223, %v238
  %vm280 = vcmask 654336
  %v281 = vsel %vm280, %v275, %v245
  %v282 = vsel %vm280, %v276, %v247
  %v283 = vsel %vm280, %v277, %v249
  %v284 = vsel %vm280, %v278, %v251
  %v285 = vsel %vm280, %v279, %v253
  %vm286 = vcmask 982016
  %v287 = vsel %vm286, %v281, %v260
  %v288 = vsel %vm286, %v282, %v262
  %v289 = vsel %vm286, %v283, %v264
  %v290 = vsel %vm286, %v284, %v266
  %v291 = vsel %vm286, %v285, %v268
  %v292 = vadd.s32 %v78, 40
  %v293 = vadd.s32 %v78, 48
  %v294 = vadd.s32 %v78, 56
  %v295 = vadd.s32 %v78, 64
  %v296 = vadd.s32 %v78, 72
  %v297 = vadd.s32 %v78, 80
  %v298 = vadd.s32 %v78, 88
  %v299 = vadd.s32 %v78, 96
  %v300 = vadd.s32 %v78, 104
  %v301 = vadd.s32 %v78, 112
  %v302 = vadd.s32 %v78, 120
  %v303 = vadd.s32 %v78, 128
  %v304 = vadd.s32 %v78, 136
  %v305 = vadd.s32 %v78, 144
  %v306 = vadd.s32 %v78, 152
  %v307 = vmul.u32 %v84, 40
  %vm308 = vcmp.ge.s32.totalorder %v78, %v307
  %vm309 = vcmp.ge.s32.totalorder %v79, %v307
  %vm310 = vcmp.ge.s32.totalorder %v80, %v307
  %vm311 = vcmp.ge.s32.totalorder %v81, %v307
  %vm312 = vcmp.ge.s32.totalorder %v82, %v307
  %vm313 = vcmp.ge.s32.totalorder %v292, %v307
  %vm314 = vcmp.ge.s32.totalorder %v293, %v307
  %vm315 = vcmp.ge.s32.totalorder %v294, %v307
  %vm316 = vcmp.ge.s32.totalorder %v295, %v307
  %vm317 = vcmp.ge.s32.totalorder %v296, %v307
  %vm318 = vcmp.ge.s32.totalorder %v297, %v307
  %vm319 = vcmp.ge.s32.totalorder %v298, %v307
  %vm320 = vcmp.ge.s32.totalorder %v299, %v307
  %vm321 = vcmp.ge.s32.totalorder %v300, %v307
  %vm322 = vcmp.ge.s32.totalorder %v301, %v307
  %vm323 = vcmp.ge.s32.totalorder %v302, %v307
  %vm324 = vcmp.ge.s32.totalorder %v303, %v307
  %vm325 = vcmp.ge.s32.totalorder %v304, %v307
  %vm326 = vcmp.ge.s32.totalorder %v305, %v307
  %vm327 = vcmp.ge.s32.totalorder %v306, %v307
  %v328 = vmul.u32 %v91, 40
  %vm329 = vcmp.lt.s32.totalorder %v78, %v328
  %vm330 = vcmp.lt.s32.totalorder %v79, %v328
  %vm331 = vcmp.lt.s32.totalorder %v80, %v328
  %vm332 = vcmp.lt.s32.totalorder %v81, %v328
  %vm333 = vcmp.lt.s32.totalorder %v82, %v328
  %vm334 = vcmp.lt.s32.totalorder %v292, %v328
  %vm335 = vcmp.lt.s32.totalorder %v293, %v328
  %vm336 = vcmp.lt.s32.totalorder %v294, %v328
  %vm337 = vcmp.lt.s32.totalorder %v295, %v328
  %vm338 = vcmp.lt.s32.totalorder %v296, %v328
  %vm339 = vcmp.lt.s32.totalorder %v297, %v328
  %vm340 = vcmp.lt.s32.totalorder %v298, %v328
  %vm341 = vcmp.lt.s32.totalorder %v299, %v328
  %vm342 = vcmp.lt.s32.totalorder %v300, %v328
  %vm343 = vcmp.lt.s32.totalorder %v301, %v328
  %vm344 = vcmp.lt.s32.totalorder %v302, %v328
  %vm345 = vcmp.lt.s32.totalorder %v303, %v328
  %vm346 = vcmp.lt.s32.totalorder %v304, %v328
  %vm347 = vcmp.lt.s32.totalorder %v305, %v328
  %vm348 = vcmp.lt.s32.totalorder %v306, %v328
  %vm349 = vmand %vm308, %vm329
  %vm350 = vmand %vm309, %vm330
  %vm351 = vmand %vm310, %vm331
  %vm352 = vmand %vm311, %vm332
  %vm353 = vmand %vm312, %vm333
  %vm354 = vmand %vm313, %vm334
  %vm355 = vmand %vm314, %vm335
  %vm356 = vmand %vm315, %vm336
  %vm357 = vmand %vm316, %vm337
  %vm358 = vmand %vm317, %vm338
  %vm359 = vmand %vm318, %vm339
  %vm360 = vmand %vm319, %vm340
  %vm361 = vmand %vm320, %vm341
  %vm362 = vmand %vm321, %vm342
  %vm363 = vmand %vm322, %vm343
  %vm364 = vmand %vm323, %vm344
  %vm365 = vmand %vm324, %vm345
  %vm366 = vmand %vm325, %vm346
  %vm367 = vmand %vm326, %vm347
  %vm368 = vmand %vm327, %vm348
  %v369 = vsel %vm349, 1.0, 0.0
  %v370 = vsel %vm350, 1.0, 0.0
  %v371 = vsel %vm351, 1.0, 0.0
  %v372 = vsel %vm352, 1.0, 0.0
  %v373 = vsel %vm353, 1.0, 0.0
  %v374 = vsel %vm354, 1.0, 0.0
  %v375 = vsel %vm355, 1.0, 0.0
  %v376 = vsel %vm356, 1.0, 0.0
  %v377 = vsel %vm357, 1.0, 0.0
  %v378 = vsel %vm358, 1.0, 0.0
  %v379 = vsel %vm359, 1.0, 0.0
  %v380 = vsel %vm360, 1.0, 0.0
  %v381 = vsel %vm361, 1.0, 0.0
  %v382 = vsel %vm362, 1.0, 0.0
  %v383 = vsel %vm363, 1.0, 0.0
  %v384 = vsel %vm364, 1.0, 0.0
  %v385 = vsel %vm365, 1.0, 0.0
  %v386 = vsel %vm366, 1.0, 0.0
  %v387 = vsel %vm367, 1.0, 0.0
  %v388 = vsel %vm368, 1.0, 0.0
  %v389 = vmul.u32 %v84, 8
  %vm390 = vcmp.ge.s32.totalorder %v78, %v389
  %vm391 = vcmp.ge.s32.totalorder %v79, %v389
  %vm392 = vcmp.ge.s32.totalorder %v80, %v389
  %vm393 = vcmp.ge.s32.totalorder %v81, %v389
  %v394 = vmul.u32 %v91, 8
  %vm395 = vcmp.lt.s32.totalorder %v78, %v394
  %vm396 = vcmp.lt.s32.totalorder %v79, %v394
  %vm397 = vcmp.lt.s32.totalorder %v80, %v394
  %vm398 = vcmp.lt.s32.totalorder %v81, %v394
  %vm399 = vmand %vm390, %vm395
  %vm400 = vmand %vm391, %vm396
  %vm401 = vmand %vm392, %vm397
  %vm402 = vmand %vm393, %vm398
  %v403 = vsel %vm399, 1.0, 0.0
  %v404 = vsel %vm400, 1.0, 0.0
  %v405 = vsel %vm401, 1.0, 0.0
  %v406 = vsel %vm402, 1.0, 0.0
  %vm407 = vcmask 31744
  %v409 = vsel %vm407, %v369, 0
  %v412 = vsel %vm407, %v370, 0
  %v415 = vsel %vm407, %v371, 0
  %v418 = vsel %vm407, %v372, 0
  %v421 = vsel %vm407, %v373, 0
  %v424 = vsel %vm407, %v374, 0
  %v427 = vsel %vm407, %v375, 0
  %v430 = vsel %vm407, %v376, 0
  %v433 = vsel %vm407, %v377, 0
  %v436 = vsel %vm407, %v378, 0
  %v439 = vsel %vm407, %v379, 0
  %v442 = vsel %vm407, %v380, 0
  %v445 = vsel %vm407, %v381, 0
  %v448 = vsel %vm407, %v382, 0
  %v451 = vsel %vm407, %v383, 0
  %v454 = vsel %vm407, %v384, 0
  %v457 = vsel %vm407, %v385, 0
  %v460 = vsel %vm407, %v386, 0
  %v463 = vsel %vm407, %v387, 0
  %v466 = vsel %vm407, %v388, 0
  %v469 = vsel %vm407, %v403, 0
  %v472 = vsel %vm407, %v404, 0
  %v475 = vsel %vm407, %v405, 0
  %v478 = vsel %vm407, %v406, 0
  %480 = vmatprep.subr.mxu0 0.0
  %481 = vmatpush1.xpose.msra.mxu0 0.0
  %482 = vmatprep.subr.mxu0 0.0
  %483 = vmatpush1.xpose.msra.mxu0 0.0
  %484 = vmatprep.subr.mxu0 0.0
  %485 = vmatpush1.xpose.msra.mxu0 0.0
  %486 = vmatprep.subr.mxu0 0.0
  %487 = vmatpush1.xpose.msra.mxu0 0.0
  %488 = vmatprep.subr.mxu0 0.0
  %489 = vmatpush1.xpose.msra.mxu0 0.0
  %490 = vmatprep.subr.mxu0 0.0
  %491 = vmatpush1.xpose.msra.mxu0 0.0
  %492 = vmatprep.subr.mxu0 0.0
  %493 = vmatpush1.xpose.msra.mxu0 0.0
  %494 = vmatprep.subr.mxu0 0.0
  %495 = vmatpush1.xpose.msra.mxu0 0.0
  %496 = vmatprep.subr.mxu0 0.0
  %497 = vmatpush1.xpose.msra.mxu0 0.0
  %498 = vmatprep.subr.mxu0 0.0
  %499 = vmatpush1.xpose.msra.mxu0 0.0
  %500 = vmatprep.subr.mxu0 0.0
  %501 = vmatpush1.xpose.msra.mxu0 0.0
  %502 = vmatprep.subr.mxu0 0.0
  %503 = vmatpush1.xpose.msra.mxu0 0.0
  %504 = vmatprep.subr.mxu0 0.0
  %505 = vmatpush1.xpose.msra.mxu0 %v478
  %506 = vmatprep.subr.mxu0 0.0
  %507 = vmatpush1.xpose.msra.mxu0 %v475
  %508 = vmatprep.subr.mxu0 0.0
  %509 = vmatpush1.xpose.msra.mxu0 %v472
  %510 = vmatprep.subr.mxu0 0.0
  %511 = vmatpush1.xpose.msra.mxu0 %v469
  %512 = vmatprep.subr.mxu0 0.0
  %513 = vmatpush2.xpose.msra.mxu0 0.0
  %514 = vmatprep.subr.mxu0 0.0
  %515 = vmatpush2.xpose.msra.mxu0 0.0
  %516 = vmatprep.subr.mxu0 0.0
  %517 = vmatpush2.xpose.msra.mxu0 0.0
  %518 = vmatprep.subr.mxu0 0.0
  %519 = vmatpush2.xpose.msra.mxu0 0.0
  %520 = vmatprep.subr.mxu0 0.0
  %521 = vmatpush2.xpose.msra.mxu0 0.0
  %522 = vmatprep.subr.mxu0 0.0
  %523 = vmatpush2.xpose.msra.mxu0 0.0
  %524 = vmatprep.subr.mxu0 0.0
  %525 = vmatpush2.xpose.msra.mxu0 0.0
  %526 = vmatprep.subr.mxu0 0.0
  %527 = vmatpush2.xpose.msra.mxu0 0.0
  %528 = vmatprep.subr.mxu0 0.0
  %529 = vmatpush2.xpose.msra.mxu0 0.0
  %530 = vmatprep.subr.mxu0 0.0
  %531 = vmatpush2.xpose.msra.mxu0 0.0
  %532 = vmatprep.subr.mxu0 0.0
  %533 = vmatpush2.xpose.msra.mxu0 0.0
  %534 = vmatprep.subr.mxu0 0.0
  %535 = vmatpush2.xpose.msra.mxu0 0.0
  %536 = vmatprep.subr.mxu0 0.0
  %537 = vmatpush2.xpose.msra.mxu0 0.0
  %538 = vmatprep.subr.mxu0 0.0
  %539 = vmatpush2.xpose.msra.mxu0 0.0
  %540 = vmatprep.subr.mxu0 0.0
  %541 = vmatpush2.xpose.msra.mxu0 0.0
  %542 = vmatprep.subr.mxu0 0.0
  %543 = vmatpush2.xpose.msra.mxu0 0.0
  %544 = vmatprep.mubr.f32.mxu0 0.0
  %545 = vmatmul.mubr.f32.gmra.mxu0 %v409
  %v546 = vpop.f32.mrf.mxu0
  %v547 = vadd.f32 0.0, %v546
  %v548 = vpop.f32.mrf.mxu0
  %549 = vmatprep.mubr.f32.mxu0 0.0
  %550 = vmatmul.mubr.f32.gmra.mxu0 %v412
  %v551 = vpop.f32.mrf.mxu0
  %v552 = vadd.f32 0.0, %v551
  %v553 = vpop.f32.mrf.mxu0
  %554 = vmatprep.mubr.f32.mxu0 0.0
  %555 = vmatmul.mubr.f32.gmra.mxu0 %v415
  %v556 = vpop.f32.mrf.mxu0
  %v557 = vadd.f32 0.0, %v556
  %v558 = vpop.f32.mrf.mxu0
  %559 = vmatprep.mubr.f32.mxu0 0.0
  %560 = vmatmul.mubr.f32.gmra.mxu0 %v418
  %v561 = vpop.f32.mrf.mxu0
  %v562 = vadd.f32 0.0, %v561
  %v563 = vpop.f32.mrf.mxu0
  %564 = vmatprep.mubr.f32.mxu0 0.0
  %565 = vmatmul.mubr.f32.gmra.mxu0 %v421
  %v566 = vpop.f32.mrf.mxu0
  %v567 = vadd.f32 0.0, %v566
  %v568 = vpop.f32.mrf.mxu0
  %569 = vmatprep.mubr.f32.mxu0 0.0
  %570 = vmatmul.mubr.f32.gmra.mxu0 %v424
  %v571 = vpop.f32.mrf.mxu0
  %v572 = vadd.f32 0.0, %v571
  %v573 = vpop.f32.mrf.mxu0
  %574 = vmatprep.mubr.f32.mxu0 0.0
  %575 = vmatmul.mubr.f32.gmra.mxu0 %v427
  %v576 = vpop.f32.mrf.mxu0
  %v577 = vadd.f32 0.0, %v576
  %v578 = vpop.f32.mrf.mxu0
  %579 = vmatprep.mubr.f32.mxu0 0.0
  %580 = vmatmul.mubr.f32.gmra.mxu0 %v430
  %v581 = vpop.f32.mrf.mxu0
  %v582 = vadd.f32 0.0, %v581
  %v583 = vpop.f32.mrf.mxu0
  %584 = vmatprep.mubr.f32.mxu0 0.0
  %585 = vmatmul.mubr.f32.gmra.mxu0 %v433
  %v586 = vpop.f32.mrf.mxu0
  %v587 = vadd.f32 0.0, %v586
  %v588 = vpop.f32.mrf.mxu0
  %589 = vmatprep.mubr.f32.mxu0 0.0
  %590 = vmatmul.mubr.f32.gmra.mxu0 %v436
  %v591 = vpop.f32.mrf.mxu0
  %v592 = vadd.f32 0.0, %v591
  %v593 = vpop.f32.mrf.mxu0
  %594 = vmatprep.mubr.f32.mxu0 0.0
  %595 = vmatmul.mubr.f32.gmra.mxu0 %v439
  %v596 = vpop.f32.mrf.mxu0
  %v597 = vadd.f32 0.0, %v596
  %v598 = vpop.f32.mrf.mxu0
  %599 = vmatprep.mubr.f32.mxu0 0.0
  %600 = vmatmul.mubr.f32.gmra.mxu0 %v442
  %v601 = vpop.f32.mrf.mxu0
  %v602 = vadd.f32 0.0, %v601
  %v603 = vpop.f32.mrf.mxu0
  %604 = vmatprep.mubr.f32.mxu0 0.0
  %605 = vmatmul.mubr.f32.gmra.mxu0 %v445
  %v606 = vpop.f32.mrf.mxu0
  %v607 = vadd.f32 0.0, %v606
  %v608 = vpop.f32.mrf.mxu0
  %609 = vmatprep.mubr.f32.mxu0 0.0
  %610 = vmatmul.mubr.f32.gmra.mxu0 %v448
  %v611 = vpop.f32.mrf.mxu0
  %v612 = vadd.f32 0.0, %v611
  %v613 = vpop.f32.mrf.mxu0
  %614 = vmatprep.mubr.f32.mxu0 0.0
  %615 = vmatmul.mubr.f32.gmra.mxu0 %v451
  %v616 = vpop.f32.mrf.mxu0
  %v617 = vadd.f32 0.0, %v616
  %v618 = vpop.f32.mrf.mxu0
  %619 = vmatprep.mubr.f32.mxu0 0.0
  %620 = vmatmul.mubr.f32.gmra.mxu0 %v454
  %v621 = vpop.f32.mrf.mxu0
  %v622 = vadd.f32 0.0, %v621
  %v623 = vpop.f32.mrf.mxu0
  %624 = vmatprep.mubr.f32.mxu0 0.0
  %625 = vmatmul.mubr.f32.gmra.mxu0 %v457
  %v626 = vpop.f32.mrf.mxu0
  %v627 = vadd.f32 0.0, %v626
  %v628 = vpop.f32.mrf.mxu0
  %629 = vmatprep.mubr.f32.mxu0 0.0
  %630 = vmatmul.mubr.f32.gmra.mxu0 %v460
  %v631 = vpop.f32.mrf.mxu0
  %v632 = vadd.f32 0.0, %v631
  %v633 = vpop.f32.mrf.mxu0
  %634 = vmatprep.mubr.f32.mxu0 0.0
  %635 = vmatmul.mubr.f32.gmra.mxu0 %v463
  %v636 = vpop.f32.mrf.mxu0
  %v637 = vadd.f32 0.0, %v636
  %v638 = vpop.f32.mrf.mxu0
  %639 = vmatprep.mubr.f32.mxu0 0.0
  %640 = vmatmul.mubr.f32.gmra.mxu0 %v466
  %v641 = vpop.f32.mrf.mxu0
  %v642 = vadd.f32 0.0, %v641
  %v643 = vpop.f32.mrf.mxu0
  %644 = vdwg.mxu0
  %v645 = vpack.c.bf16 %v552, %v547
  %v646 = vpack.c.bf16 %v562, %v557
  %v647 = vpack.c.bf16 %v572, %v567
  %v648 = vpack.c.bf16 %v582, %v577
  %v649 = vpack.c.bf16 %v592, %v587
  %v650 = vpack.c.bf16 %v602, %v597
  %v651 = vpack.c.bf16 %v612, %v607
  %v652 = vpack.c.bf16 %v622, %v617
  %v653 = vpack.c.bf16 %v632, %v627
  %v654 = vpack.c.bf16 %v642, %v637
  %v655 = vmul.u32 %v78, 5
  %v656 = vcvt.s32.f32 %v655
  %657 = vmatprep.subr.mxu0 0.0
  %658 = vmatpush1.msra.mxu0 0.0
  %659 = vmatprep.subr.mxu0 0.0
  %660 = vmatpush1.msra.mxu0 0.0
  %661 = vmatprep.subr.mxu0 0.0
  %662 = vmatpush1.msra.mxu0 0.0
  %663 = vmatprep.subr.mxu0 0.0
  %664 = vmatpush1.msra.mxu0 0.0
  %665 = vmatprep.subr.mxu0 0.0
  %666 = vmatpush1.msra.mxu0 0.0
  %667 = vmatprep.subr.mxu0 0.0
  %668 = vmatpush1.msra.mxu0 0.0
  %669 = vmatprep.subr.mxu0 0.0
  %670 = vmatpush1.msra.mxu0 0.0
  %671 = vmatprep.subr.mxu0 0.0
  %672 = vmatpush1.msra.mxu0 0.0
  %673 = vmatprep.subr.mxu0 0.0
  %674 = vmatpush1.msra.mxu0 0.0
  %675 = vmatprep.subr.mxu0 0.0
  %676 = vmatpush1.msra.mxu0 0.0
  %677 = vmatprep.subr.mxu0 0.0
  %678 = vmatpush1.msra.mxu0 0.0
  %679 = vmatprep.subr.mxu0 0.0
  %680 = vmatpush1.msra.mxu0 0.0
  %681 = vmatprep.subr.mxu0 0.0
  %682 = vmatpush1.msra.mxu0 0.0
  %683 = vmatprep.subr.mxu0 0.0
  %684 = vmatpush1.msra.mxu0 0.0
  %685 = vmatprep.subr.mxu0 0.0
  %686 = vmatpush1.msra.mxu0 0.0
  %687 = vmatprep.subr.mxu0 0.0
  %688 = vmatpush1.msra.mxu0 %v656
  %689 = vmatprep.subr.mxu0 0.0
  %690 = vmatpush2.msra.mxu0 0.0
  %691 = vmatprep.subr.mxu0 0.0
  %692 = vmatpush2.msra.mxu0 0.0
  %693 = vmatprep.subr.mxu0 0.0
  %694 = vmatpush2.msra.mxu0 0.0
  %695 = vmatprep.subr.mxu0 0.0
  %696 = vmatpush2.msra.mxu0 0.0
  %697 = vmatprep.subr.mxu0 0.0
  %698 = vmatpush2.msra.mxu0 0.0
  %699 = vmatprep.subr.mxu0 0.0
  %700 = vmatpush2.msra.mxu0 0.0
  %701 = vmatprep.subr.mxu0 0.0
  %702 = vmatpush2.msra.mxu0 0.0
  %703 = vmatprep.subr.mxu0 0.0
  %704 = vmatpush2.msra.mxu0 0.0
  %705 = vmatprep.subr.mxu0 0.0
  %706 = vmatpush2.msra.mxu0 0.0
  %707 = vmatprep.subr.mxu0 0.0
  %708 = vmatpush2.msra.mxu0 0.0
  %709 = vmatprep.subr.mxu0 0.0
  %710 = vmatpush2.msra.mxu0 0.0
  %711 = vmatprep.subr.mxu0 0.0
  %712 = vmatpush2.msra.mxu0 0.0
  %713 = vmatprep.subr.mxu0 0.0
  %714 = vmatpush2.msra.mxu0 0.0
  %715 = vmatprep.subr.mxu0 0.0
  %716 = vmatpush2.msra.mxu0 0.0
  %717 = vmatprep.subr.mxu0 0.0
  %718 = vmatpush2.msra.mxu0 0.0
  %719 = vmatprep.subr.mxu0 0.0
  %720 = vmatpush2.msra.mxu0 0.0
  %721 = vmatprep.mubr.f32.mxu0 0.0
  %722 = vmatmul.mubr.f32.gmra.mxu0 %v110
  %v723 = vpop.f32.mrf.mxu0
  %v724 = vadd.f32 0.0, %v723
  %v725 = vpop.f32.mrf.mxu0
  %726 = vmatprep.mubr.f32.mxu0 0.0
  %727 = vmatmul.mubr.f32.gmra.mxu0 %v113
  %v728 = vpop.f32.mrf.mxu0
  %v729 = vadd.f32 0.0, %v728
  %v730 = vpop.f32.mrf.mxu0
  %731 = vmatprep.mubr.f32.mxu0 0.0
  %732 = vmatmul.mubr.f32.gmra.mxu0 %v116
  %v733 = vpop.f32.mrf.mxu0
  %v734 = vadd.f32 0.0, %v733
  %v735 = vpop.f32.mrf.mxu0
  %736 = vmatprep.mubr.f32.mxu0 0.0
  %737 = vmatmul.mubr.f32.gmra.mxu0 %v119
  %v738 = vpop.f32.mrf.mxu0
  %v739 = vadd.f32 0.0, %v738
  %v740 = vpop.f32.mrf.mxu0
  %741 = vmatprep.mubr.f32.mxu0 0.0
  %742 = vmatmul.mubr.f32.gmra.mxu0 %v122
  %v743 = vpop.f32.mrf.mxu0
  %v744 = vadd.f32 0.0, %v743
  %v745 = vpop.f32.mrf.mxu0
  %746 = vdwg.mxu0
  %v747 = vcvt.s32.f32 %v78
  %v748 = vcvt.s32.f32 %v79
  %v749 = vcvt.s32.f32 %v80
  %v750 = vcvt.s32.f32 %v81
  %v751 = vcvt.s32.f32 %v82
  %v752 = vsub.f32 %v747, %v724
  %v753 = vsub.f32 %v748, %v729
  %v754 = vsub.f32 %v749, %v734
  %v755 = vsub.f32 %v750, %v739
  %v756 = vsub.f32 %v751, %v744
  %v757 = vcvt.s32.f32 %v84
  %759 = vset.pattern.permute.xlu0 0
  %760 = vperm.xlu0 %759, %v752
  %v761 = vpop.permute.xlu0 %760
  %764 = vset.pattern.permute.xlu0 0
  %765 = vperm.xlu0 %764, %v753
  %v766 = vpop.permute.xlu0 %765
  %769 = vset.pattern.permute.xlu0 0
  %770 = vperm.xlu0 %769, %v754
  %v771 = vpop.permute.xlu0 %770
  %774 = vset.pattern.permute.xlu0 0
  %775 = vperm.xlu0 %774, %v755
  %v776 = vpop.permute.xlu0 %775
  %779 = vset.pattern.permute.xlu0 0
  %780 = vperm.xlu0 %779, %v756
  %v781 = vpop.permute.xlu0 %780
  %vm783 = vcmp.eq.f32.partialorder %v757, %v761
  %vm784 = vcmp.eq.f32.partialorder %v757, %v766
  %vm785 = vcmp.eq.f32.partialorder %v757, %v771
  %vm786 = vcmp.eq.f32.partialorder %v757, %v776
  %vm787 = vcmp.eq.f32.partialorder %v757, %v781
  %v788 = vsel %vm783, 1.0, 0.0
  %v789 = vsel %vm784, 1.0, 0.0
  %v790 = vsel %vm785, 1.0, 0.0
  %v791 = vsel %vm786, 1.0, 0.0
  %v792 = vsel %vm787, 1.0, 0.0
  %v793 = vld [vmem:[%s2] sm:$0x1f]
  %vm794 = vcmask 39936
  %v796 = vsel %vm794, %v788, 0
  %v799 = vsel %vm794, %v789, 0
  %v802 = vsel %vm794, %v790, 0
  %v805 = vsel %vm794, %v791, 0
  %v808 = vsel %vm794, %v792, 0
  %vm810 = vcmask 1044480
  %v812 = vsel %vm810, %v793, 0
  %814 = vmatprep.subr.mxu0 0.0
  %815 = vmatpush1.msra.mxu0 0.0
  %816 = vmatprep.subr.mxu0 0.0
  %817 = vmatpush1.msra.mxu0 0.0
  %818 = vmatprep.subr.mxu0 0.0
  %819 = vmatpush1.msra.mxu0 0.0
  %820 = vmatprep.subr.mxu0 0.0
  %821 = vmatpush1.msra.mxu0 0.0
  %822 = vmatprep.subr.mxu0 0.0
  %823 = vmatpush1.msra.mxu0 0.0
  %824 = vmatprep.subr.mxu0 0.0
  %825 = vmatpush1.msra.mxu0 0.0
  %826 = vmatprep.subr.mxu0 0.0
  %827 = vmatpush1.msra.mxu0 0.0
  %828 = vmatprep.subr.mxu0 0.0
  %829 = vmatpush1.msra.mxu0 0.0
  %830 = vmatprep.subr.mxu0 0.0
  %831 = vmatpush1.msra.mxu0 0.0
  %832 = vmatprep.subr.mxu0 0.0
  %833 = vmatpush1.msra.mxu0 0.0
  %834 = vmatprep.subr.mxu0 0.0
  %835 = vmatpush1.msra.mxu0 0.0
  %836 = vmatprep.subr.mxu0 0.0
  %837 = vmatpush1.msra.mxu0 0.0
  %838 = vmatprep.subr.mxu0 0.0
  %839 = vmatpush1.msra.mxu0 0.0
  %840 = vmatprep.subr.mxu0 0.0
  %841 = vmatpush1.msra.mxu0 0.0
  %842 = vmatprep.subr.mxu0 0.0
  %843 = vmatpush1.msra.mxu0 0.0
  %844 = vmatprep.subr.mxu0 0.0
  %845 = vmatpush1.msra.mxu0 %v812
  %846 = vmatprep.subr.mxu0 0.0
  %847 = vmatpush2.msra.mxu0 0.0
  %848 = vmatprep.subr.mxu0 0.0
  %849 = vmatpush2.msra.mxu0 0.0
  %850 = vmatprep.subr.mxu0 0.0
  %851 = vmatpush2.msra.mxu0 0.0
  %852 = vmatprep.subr.mxu0 0.0
  %853 = vmatpush2.msra.mxu0 0.0
  %854 = vmatprep.subr.mxu0 0.0
  %855 = vmatpush2.msra.mxu0 0.0
  %856 = vmatprep.subr.mxu0 0.0
  %857 = vmatpush2.msra.mxu0 0.0
  %858 = vmatprep.subr.mxu0 0.0
  %859 = vmatpush2.msra.mxu0 0.0
  %860 = vmatprep.subr.mxu0 0.0
  %861 = vmatpush2.msra.mxu0 0.0
  %862 = vmatprep.subr.mxu0 0.0
  %863 = vmatpush2.msra.mxu0 0.0
  %864 = vmatprep.subr.mxu0 0.0
  %865 = vmatpush2.msra.mxu0 0.0
  %866 = vmatprep.subr.mxu0 0.0
  %867 = vmatpush2.msra.mxu0 0.0
  %868 = vmatprep.subr.mxu0 0.0
  %869 = vmatpush2.msra.mxu0 0.0
  %870 = vmatprep.subr.mxu0 0.0
  %871 = vmatpush2.msra.mxu0 0.0
  %872 = vmatprep.subr.mxu0 0.0
  %873 = vmatpush2.msra.mxu0 0.0
  %874 = vmatprep.subr.mxu0 0.0
  %875 = vmatpush2.msra.mxu0 0.0
  %876 = vmatprep.subr.mxu0 0.0
  %877 = vmatpush2.msra.mxu0 0.0
  %878 = vmatprep.mubr.f32.mxu0 0.0
  %879 = vmatmul.mubr.f32.gmra.mxu0 %v796
  %v880 = vpop.f32.mrf.mxu0
  %v881 = vadd.f32 0.0, %v880
  %v882 = vpop.f32.mrf.mxu0
  %883 = vmatprep.mubr.f32.mxu0 0.0
  %884 = vmatmul.mubr.f32.gmra.mxu0 %v799
  %v885 = vpop.f32.mrf.mxu0
  %v886 = vadd.f32 0.0, %v885
  %v887 = vpop.f32.mrf.mxu0
  %888 = vmatprep.mubr.f32.mxu0 0.0
  %889 = vmatmul.mubr.f32.gmra.mxu0 %v802
  %v890 = vpop.f32.mrf.mxu0
  %v891 = vadd.f32 0.0, %v890
  %v892 = vpop.f32.mrf.mxu0
  %893 = vmatprep.mubr.f32.mxu0 0.0
  %894 = vmatmul.mubr.f32.gmra.mxu0 %v805
  %v895 = vpop.f32.mrf.mxu0
  %v896 = vadd.f32 0.0, %v895
  %v897 = vpop.f32.mrf.mxu0
  %898 = vmatprep.mubr.f32.mxu0 0.0
  %899 = vmatmul.mubr.f32.gmra.mxu0 %v808
  %v900 = vpop.f32.mrf.mxu0
  %v901 = vadd.f32 0.0, %v900
  %v902 = vpop.f32.mrf.mxu0
  %903 = vdwg.mxu0
  %v904 = vld [vmem:[%s3] sm:$0x1f]
  %v906 = vsel %vm810, %v904, 0
  %908 = vmatprep.subr.mxu0 0.0
  %909 = vmatpush1.msra.mxu0 0.0
  %910 = vmatprep.subr.mxu0 0.0
  %911 = vmatpush1.msra.mxu0 0.0
  %912 = vmatprep.subr.mxu0 0.0
  %913 = vmatpush1.msra.mxu0 0.0
  %914 = vmatprep.subr.mxu0 0.0
  %915 = vmatpush1.msra.mxu0 0.0
  %916 = vmatprep.subr.mxu0 0.0
  %917 = vmatpush1.msra.mxu0 0.0
  %918 = vmatprep.subr.mxu0 0.0
  %919 = vmatpush1.msra.mxu0 0.0
  %920 = vmatprep.subr.mxu0 0.0
  %921 = vmatpush1.msra.mxu0 0.0
  %922 = vmatprep.subr.mxu0 0.0
  %923 = vmatpush1.msra.mxu0 0.0
  %924 = vmatprep.subr.mxu0 0.0
  %925 = vmatpush1.msra.mxu0 0.0
  %926 = vmatprep.subr.mxu0 0.0
  %927 = vmatpush1.msra.mxu0 0.0
  %928 = vmatprep.subr.mxu0 0.0
  %929 = vmatpush1.msra.mxu0 0.0
  %930 = vmatprep.subr.mxu0 0.0
  %931 = vmatpush1.msra.mxu0 0.0
  %932 = vmatprep.subr.mxu0 0.0
  %933 = vmatpush1.msra.mxu0 0.0
  %934 = vmatprep.subr.mxu0 0.0
  %935 = vmatpush1.msra.mxu0 0.0
  %936 = vmatprep.subr.mxu0 0.0
  %937 = vmatpush1.msra.mxu0 0.0
  %938 = vmatprep.subr.mxu0 0.0
  %939 = vmatpush1.msra.mxu0 %v906
  %940 = vmatprep.subr.mxu0 0.0
  %941 = vmatpush2.msra.mxu0 0.0
  %942 = vmatprep.subr.mxu0 0.0
  %943 = vmatpush2.msra.mxu0 0.0
  %944 = vmatprep.subr.mxu0 0.0
  %945 = vmatpush2.msra.mxu0 0.0
  %946 = vmatprep.subr.mxu0 0.0
  %947 = vmatpush2.msra.mxu0 0.0
  %948 = vmatprep.subr.mxu0 0.0
  %949 = vmatpush2.msra.mxu0 0.0
  %950 = vmatprep.subr.mxu0 0.0
  %951 = vmatpush2.msra.mxu0 0.0
  %952 = vmatprep.subr.mxu0 0.0
  %953 = vmatpush2.msra.mxu0 0.0
  %954 = vmatprep.subr.mxu0 0.0
  %955 = vmatpush2.msra.mxu0 0.0
  %956 = vmatprep.subr.mxu0 0.0
  %957 = vmatpush2.msra.mxu0 0.0
  %958 = vmatprep.subr.mxu0 0.0
  %959 = vmatpush2.msra.mxu0 0.0
  %960 = vmatprep.subr.mxu0 0.0
  %961 = vmatpush2.msra.mxu0 0.0
  %962 = vmatprep.subr.mxu0 0.0
  %963 = vmatpush2.msra.mxu0 0.0
  %964 = vmatprep.subr.mxu0 0.0
  %965 = vmatpush2.msra.mxu0 0.0
  %966 = vmatprep.subr.mxu0 0.0
  %967 = vmatpush2.msra.mxu0 0.0
  %968 = vmatprep.subr.mxu0 0.0
  %969 = vmatpush2.msra.mxu0 0.0
  %970 = vmatprep.subr.mxu0 0.0
  %971 = vmatpush2.msra.mxu0 0.0
  %972 = vmatprep.mubr.f32.mxu0 0.0
  %973 = vmatmul.mubr.f32.gmra.mxu0 %v796
  %v974 = vpop.f32.mrf.mxu0
  %v975 = vadd.f32 0.0, %v974
  %v976 = vpop.f32.mrf.mxu0
  %977 = vmatprep.mubr.f32.mxu0 0.0
  %978 = vmatmul.mubr.f32.gmra.mxu0 %v799
  %v979 = vpop.f32.mrf.mxu0
  %v980 = vadd.f32 0.0, %v979
  %v981 = vpop.f32.mrf.mxu0
  %982 = vmatprep.mubr.f32.mxu0 0.0
  %983 = vmatmul.mubr.f32.gmra.mxu0 %v802
  %v984 = vpop.f32.mrf.mxu0
  %v985 = vadd.f32 0.0, %v984
  %v986 = vpop.f32.mrf.mxu0
  %987 = vmatprep.mubr.f32.mxu0 0.0
  %988 = vmatmul.mubr.f32.gmra.mxu0 %v805
  %v989 = vpop.f32.mrf.mxu0
  %v990 = vadd.f32 0.0, %v989
  %v991 = vpop.f32.mrf.mxu0
  %992 = vmatprep.mubr.f32.mxu0 0.0
  %993 = vmatmul.mubr.f32.gmra.mxu0 %v808
  %v994 = vpop.f32.mrf.mxu0
  %v995 = vadd.f32 0.0, %v994
  %v996 = vpop.f32.mrf.mxu0
  %997 = vdwg.mxu0
  %v998 = vld [vmem:[%s4] sm:$0x1f]
  %v1000 = vsel %vm810, %v998, 0
  %1002 = vmatprep.subr.mxu0 0.0
  %1003 = vmatpush1.msra.mxu0 0.0
  %1004 = vmatprep.subr.mxu0 0.0
  %1005 = vmatpush1.msra.mxu0 0.0
  %1006 = vmatprep.subr.mxu0 0.0
  %1007 = vmatpush1.msra.mxu0 0.0
  %1008 = vmatprep.subr.mxu0 0.0
  %1009 = vmatpush1.msra.mxu0 0.0
  %1010 = vmatprep.subr.mxu0 0.0
  %1011 = vmatpush1.msra.mxu0 0.0
  %1012 = vmatprep.subr.mxu0 0.0
  %1013 = vmatpush1.msra.mxu0 0.0
  %1014 = vmatprep.subr.mxu0 0.0
  %1015 = vmatpush1.msra.mxu0 0.0
  %1016 = vmatprep.subr.mxu0 0.0
  %1017 = vmatpush1.msra.mxu0 0.0
  %1018 = vmatprep.subr.mxu0 0.0
  %1019 = vmatpush1.msra.mxu0 0.0
  %1020 = vmatprep.subr.mxu0 0.0
  %1021 = vmatpush1.msra.mxu0 0.0
  %1022 = vmatprep.subr.mxu0 0.0
  %1023 = vmatpush1.msra.mxu0 0.0
  %1024 = vmatprep.subr.mxu0 0.0
  %1025 = vmatpush1.msra.mxu0 0.0
  %1026 = vmatprep.subr.mxu0 0.0
  %1027 = vmatpush1.msra.mxu0 0.0
  %1028 = vmatprep.subr.mxu0 0.0
  %1029 = vmatpush1.msra.mxu0 0.0
  %1030 = vmatprep.subr.mxu0 0.0
  %1031 = vmatpush1.msra.mxu0 0.0
  %1032 = vmatprep.subr.mxu0 0.0
  %1033 = vmatpush1.msra.mxu0 %v1000
  %1034 = vmatprep.subr.mxu0 0.0
  %1035 = vmatpush2.msra.mxu0 0.0
  %1036 = vmatprep.subr.mxu0 0.0
  %1037 = vmatpush2.msra.mxu0 0.0
  %1038 = vmatprep.subr.mxu0 0.0
  %1039 = vmatpush2.msra.mxu0 0.0
  %1040 = vmatprep.subr.mxu0 0.0
  %1041 = vmatpush2.msra.mxu0 0.0
  %1042 = vmatprep.subr.mxu0 0.0
  %1043 = vmatpush2.msra.mxu0 0.0
  %1044 = vmatprep.subr.mxu0 0.0
  %1045 = vmatpush2.msra.mxu0 0.0
  %1046 = vmatprep.subr.mxu0 0.0
  %1047 = vmatpush2.msra.mxu0 0.0
  %1048 = vmatprep.subr.mxu0 0.0
  %1049 = vmatpush2.msra.mxu0 0.0
  %1050 = vmatprep.subr.mxu0 0.0
  %1051 = vmatpush2.msra.mxu0 0.0
  %1052 = vmatprep.subr.mxu0 0.0
  %1053 = vmatpush2.msra.mxu0 0.0
  %1054 = vmatprep.subr.mxu0 0.0
  %1055 = vmatpush2.msra.mxu0 0.0
  %1056 = vmatprep.subr.mxu0 0.0
  %1057 = vmatpush2.msra.mxu0 0.0
  %1058 = vmatprep.subr.mxu0 0.0
  %1059 = vmatpush2.msra.mxu0 0.0
  %1060 = vmatprep.subr.mxu0 0.0
  %1061 = vmatpush2.msra.mxu0 0.0
  %1062 = vmatprep.subr.mxu0 0.0
  %1063 = vmatpush2.msra.mxu0 0.0
  %1064 = vmatprep.subr.mxu0 0.0
  %1065 = vmatpush2.msra.mxu0 0.0
  %1066 = vmatprep.mubr.f32.mxu0 0.0
  %1067 = vmatmul.mubr.f32.gmra.mxu0 %v796
  %v1068 = vpop.f32.mrf.mxu0
  %v1069 = vadd.f32 0.0, %v1068
  %v1070 = vpop.f32.mrf.mxu0
  %1071 = vmatprep.mubr.f32.mxu0 0.0
  %1072 = vmatmul.mubr.f32.gmra.mxu0 %v799
  %v1073 = vpop.f32.mrf.mxu0
  %v1074 = vadd.f32 0.0, %v1073
  %v1075 = vpop.f32.mrf.mxu0
  %1076 = vmatprep.mubr.f32.mxu0 0.0
  %1077 = vmatmul.mubr.f32.gmra.mxu0 %v802
  %v1078 = vpop.f32.mrf.mxu0
  %v1079 = vadd.f32 0.0, %v1078
  %v1080 = vpop.f32.mrf.mxu0
  %1081 = vmatprep.mubr.f32.mxu0 0.0
  %1082 = vmatmul.mubr.f32.gmra.mxu0 %v805
  %v1083 = vpop.f32.mrf.mxu0
  %v1084 = vadd.f32 0.0, %v1083
  %v1085 = vpop.f32.mrf.mxu0
  %1086 = vmatprep.mubr.f32.mxu0 0.0
  %1087 = vmatmul.mubr.f32.gmra.mxu0 %v808
  %v1088 = vpop.f32.mrf.mxu0
  %v1089 = vadd.f32 0.0, %v1088
  %v1090 = vpop.f32.mrf.mxu0
  %1091 = vdwg.mxu0
  %vm1092 = vcmp.eq.s32.totalorder %v84, %v655
  %v1093 = vsel %vm1092, 1.0, 0.0
  %v1094 = vld [vmem:[%s0] sm:$0xff]
  %v1095 = vld [vmem:[%s0 + $0x8] sm:$0xff]
  %v1096 = vld [vmem:[%s0 + $0x10] sm:$0xff]
  %v1097 = vld [vmem:[%s0 + $0x18] sm:$0xff]
  %v1098 = vld [vmem:[%s0 + $0x20] sm:$0xff]
  %v1099 = vld [vmem:[%s1] sm:$0xf]
  %v1100 = vld [vmem:[%s1 + $0x4] sm:$0xf]
  %v1101 = vld [vmem:[%s1 + $0x8] sm:$0xf]
  %v1102 = vld [vmem:[%s1 + $0xc] sm:$0xf]
  %v1103 = vld [vmem:[%s1 + $0x10] sm:$0xf]
  %v1104 = vld [vmem:[%s1 + $0x14] sm:$0xf]
  %v1105 = vld [vmem:[%s1 + $0x18] sm:$0xf]
  %v1106 = vld [vmem:[%s1 + $0x1c] sm:$0xf]
  %v1107 = vld [vmem:[%s1 + $0x20] sm:$0xf]
  %v1108 = vld [vmem:[%s1 + $0x24] sm:$0xf]
  %v1109 = vld [vmem:[%s1 + $0x28] sm:$0xf]
  %v1110 = vld [vmem:[%s1 + $0x2c] sm:$0xf]
  %v1111 = vld [vmem:[%s1 + $0x30] sm:$0xf]
  %v1112 = vld [vmem:[%s1 + $0x34] sm:$0xf]
  %v1113 = vld [vmem:[%s1 + $0x38] sm:$0xf]
  %v1114 = vld [vmem:[%s1 + $0x3c] sm:$0xf]
  %v1115 = vld [vmem:[%s1 + $0x40] sm:$0xf]
  %v1116 = vld [vmem:[%s1 + $0x44] sm:$0xf]
  %v1117 = vld [vmem:[%s1 + $0x48] sm:$0xf]
  %v1118 = vld [vmem:[%s1 + $0x4c] sm:$0xf]
  %v1119 = vld [vmem:[%s1 + $0x50] sm:$0xf]
  %v1120 = vld [vmem:[%s1 + $0x54] sm:$0xf]
  %v1121 = vld [vmem:[%s1 + $0x58] sm:$0xf]
  %v1122 = vld [vmem:[%s1 + $0x5c] sm:$0xf]
  %v1128 = vunpack.c.l.b16 %v1094
  %v1129 = vunpack.c.h.b16 %v1094
  %v1130 = vunpack.c.l.b16 %v1095
  %v1131 = vunpack.c.h.b16 %v1095
  %v1132 = vunpack.c.l.b16 %v1096
  %v1133 = vunpack.c.h.b16 %v1096
  %v1134 = vunpack.c.l.b16 %v1097
  %v1135 = vunpack.c.h.b16 %v1097
  %v1136 = vunpack.c.l.b16 %v1098
  %v1137 = vunpack.c.h.b16 %v1098
  %v1138 = vpack.c.b16 %v1130, %v1128
  %v1139 = vpack.c.b16 %v1131, %v1129
  %v1140 = vpack.c.b16 %v1134, %v1132
  %v1141 = vpack.c.b16 %v1135, %v1133
  %v1142 = vpack.c.b16 %v1136, %v1136
  %v1143 = vpack.c.b16 %v1137, %v1137
  %v1171 = vunpack.c.l.b16 %v1099
  %v1172 = vunpack.c.l.b16 %v1100
  %v1173 = vunpack.c.l.b16 %v1101
  %v1174 = vunpack.c.l.b16 %v1102
  %v1175 = vunpack.c.l.b16 %v1103
  %v1176 = vunpack.c.l.b16 %v1104
  %v1177 = vunpack.c.l.b16 %v1105
  %v1178 = vunpack.c.l.b16 %v1106
  %v1179 = vunpack.c.l.b16 %v1107
  %v1180 = vunpack.c.l.b16 %v1108
  %v1181 = vunpack.c.l.b16 %v1109
  %v1182 = vunpack.c.l.b16 %v1110
  %v1183 = vunpack.c.l.b16 %v1111
  %v1184 = vunpack.c.l.b16 %v1112
  %v1185 = vunpack.c.l.b16 %v1113
  %v1186 = vunpack.c.l.b16 %v1114
  %v1187 = vunpack.c.l.b16 %v1115
  %v1188 = vunpack.c.l.b16 %v1116
  %v1189 = vunpack.c.l.b16 %v1117
  %v1190 = vunpack.c.l.b16 %v1118
  %v1191 = vunpack.c.l.b16 %v1119
  %v1192 = vunpack.c.l.b16 %v1120
  %v1193 = vunpack.c.l.b16 %v1121
  %v1194 = vunpack.c.l.b16 %v1122
  %v1195 = vpack.c.b16 %v1172, %v1171
  %v1196 = vpack.c.b16 %v1174, %v1173
  %v1197 = vpack.c.b16 %v1176, %v1175
  %v1198 = vpack.c.b16 %v1178, %v1177
  %v1199 = vpack.c.b16 %v1180, %v1179
  %v1200 = vpack.c.b16 %v1182, %v1181
  %v1201 = vpack.c.b16 %v1184, %v1183
  %v1202 = vpack.c.b16 %v1186, %v1185
  %v1203 = vpack.c.b16 %v1188, %v1187
  %v1204 = vpack.c.b16 %v1190, %v1189
  %v1205 = vpack.c.b16 %v1192, %v1191
  %v1206 = vpack.c.b16 %v1194, %v1193
  %vm1219 = vcmask 523264
  %v1221 = vsel %vm1219, %v1139, 0
  %v1224 = vsel %vm1219, %v1141, 0
  %v1227 = vsel %vm1219, %v1143, 0
  %1229 = vmatprep.subr.bf16.mxu0 0
  %1230 = vmatpush1.bf16.msra.mxu0 %v1202
  %1231 = vmatprep.subr.bf16.mxu0 0
  %1232 = vmatpush1.bf16.msra.mxu0 %v1201
  %1233 = vmatprep.subr.bf16.mxu0 0
  %1234 = vmatpush1.bf16.msra.mxu0 %v1200
  %1235 = vmatprep.subr.bf16.mxu0 0
  %1236 = vmatpush1.bf16.msra.mxu0 %v1199
  %1237 = vmatprep.subr.bf16.mxu0 0
  %1238 = vmatpush1.bf16.msra.mxu0 %v1198
  %1239 = vmatprep.subr.bf16.mxu0 0
  %1240 = vmatpush1.bf16.msra.mxu0 %v1197
  %1241 = vmatprep.subr.bf16.mxu0 0
  %1242 = vmatpush1.bf16.msra.mxu0 %v1196
  %1243 = vmatprep.subr.bf16.mxu0 0
  %1244 = vmatpush1.bf16.msra.mxu0 %v1195
  %1245 = vmatprep.subr.bf16.mxu0 0
  %1246 = vmatpush2.bf16.msra.mxu0 0
  %1247 = vmatprep.subr.bf16.mxu0 0
  %1248 = vmatpush2.bf16.msra.mxu0 0
  %1249 = vmatprep.subr.bf16.mxu0 0
  %1250 = vmatpush2.bf16.msra.mxu0 0
  %1251 = vmatprep.subr.bf16.mxu0 0
  %1252 = vmatpush2.bf16.msra.mxu0 0
  %1253 = vmatprep.subr.bf16.mxu0 0
  %1254 = vmatpush2.bf16.msra.mxu0 %v1206
  %1255 = vmatprep.subr.bf16.mxu0 0
  %1256 = vmatpush2.bf16.msra.mxu0 %v1205
  %1257 = vmatprep.subr.bf16.mxu0 0
  %1258 = vmatpush2.bf16.msra.mxu0 %v1204
  %1259 = vmatprep.subr.bf16.mxu0 0
  %1260 = vmatpush2.bf16.msra.mxu0 %v1203
  %1261 = vmatprep.mubr.bf16.mxu0 %v1221
  %1262 = vmatmul.mubr.bf16.gmra.mxu0 %v1138
  %v1263 = vpop.f32.mrf.mxu0
  %v1264 = vadd.f32 %v881, %v1263
  %v1265 = vpop.f32.mrf.mxu0
  %v1266 = vpop.f32.mrf.mxu0
  %v1267 = vadd.f32 %v886, %v1266
  %v1268 = vpop.f32.mrf.mxu0
  %1269 = vmatprep.mubr.bf16.mxu0 %v1224
  %1270 = vmatmul.mubr.bf16.gmra.mxu0 %v1140
  %v1271 = vpop.f32.mrf.mxu0
  %v1272 = vadd.f32 %v891, %v1271
  %v1273 = vpop.f32.mrf.mxu0
  %v1274 = vpop.f32.mrf.mxu0
  %v1275 = vadd.f32 %v896, %v1274
  %v1276 = vpop.f32.mrf.mxu0
  %1277 = vmatprep.mubr.bf16.mxu0 %v1227
  %1278 = vmatmul.mubr.bf16.gmra.mxu0 %v1142
  %v1279 = vpop.f32.mrf.mxu0
  %v1280 = vadd.f32 %v901, %v1279
  %v1281 = vpop.f32.mrf.mxu0
  %v1282 = vpop.f32.mrf.mxu0
  %v1283 = vpop.f32.mrf.mxu0
  %1284 = vdwg.mxu0
  %v1285 = vld [vmem:[%s5] sm:$0x1]
  %v1286 = vld [vmem:[%s6] sm:$0x1]
  %vm1287 = vcmask 261120
  %v1288 = vsel %vm1287, %v1264, 0.0
  %1289 = vadd.xlane.f32.xlu0 %v1288
  %v1290 = vpop.xlane.xlu0 %1289
  %v1291 = vsel %vm1287, %v1267, 0.0
  %1292 = vadd.xlane.f32.xlu0 %v1291
  %v1293 = vpop.xlane.xlu0 %1292
  %v1294 = vsel %vm1287, %v1272, 0.0
  %1295 = vadd.xlane.f32.xlu0 %v1294
  %v1296 = vpop.xlane.xlu0 %1295
  %v1297 = vsel %vm1287, %v1275, 0.0
  %1298 = vadd.xlane.f32.xlu0 %v1297
  %v1299 = vpop.xlane.xlu0 %1298
  %v1300 = vsel %vm1287, %v1280, 0.0
  %1301 = vadd.xlane.f32.xlu0 %v1300
  %v1302 = vpop.xlane.xlu0 %1301
  %v1303 = vrcp.pop 32.0
  %v1304 = vmul.f32 %v1290, %v1303
  %v1305 = vmul.f32 %v1293, %v1303
  %v1306 = vmul.f32 %v1296, %v1303
  %v1307 = vmul.f32 %v1299, %v1303
  %v1308 = vmul.f32 %v1302, %v1303
  %v1309 = vsub.f32 %v1264, %v1304
  %v1310 = vsub.f32 %v1267, %v1305
  %v1311 = vsub.f32 %v1272, %v1306
  %v1312 = vsub.f32 %v1275, %v1307
  %v1313 = vsub.f32 %v1280, %v1308
  %v1314 = vmul.f32 %v1309, %v1309
  %v1315 = vmul.f32 %v1310, %v1310
  %v1316 = vmul.f32 %v1311, %v1311
  %v1317 = vmul.f32 %v1312, %v1312
  %v1318 = vmul.f32 %v1313, %v1313
  %v1319 = vsel %vm1287, %v1314, 0.0
  %1320 = vadd.xlane.f32.xlu0 %v1319
  %v1321 = vpop.xlane.xlu0 %1320
  %v1322 = vsel %vm1287, %v1315, 0.0
  %1323 = vadd.xlane.f32.xlu0 %v1322
  %v1324 = vpop.xlane.xlu0 %1323
  %v1325 = vsel %vm1287, %v1316, 0.0
  %1326 = vadd.xlane.f32.xlu0 %v1325
  %v1327 = vpop.xlane.xlu0 %1326
  %v1328 = vsel %vm1287, %v1317, 0.0
  %1329 = vadd.xlane.f32.xlu0 %v1328
  %v1330 = vpop.xlane.xlu0 %1329
  %v1331 = vsel %vm1287, %v1318, 0.0
  %1332 = vadd.xlane.f32.xlu0 %v1331
  %v1333 = vpop.xlane.xlu0 %1332
  %v1334 = vmul.f32 %v1321, %v1303
  %v1335 = vmul.f32 %v1324, %v1303
  %v1336 = vmul.f32 %v1327, %v1303
  %v1337 = vmul.f32 %v1330, %v1303
  %v1338 = vmul.f32 %v1333, %v1303
  %v1339 = vadd.f32 %v1334, 1e-06
  %v1340 = vadd.f32 %v1335, 1e-06
  %v1341 = vadd.f32 %v1336, 1e-06
  %v1342 = vadd.f32 %v1337, 1e-06
  %v1343 = vadd.f32 %v1338, 1e-06
  %v1344 = vrsqrt.pop %v1339
  %v1345 = vrsqrt.pop %v1340
  %v1346 = vrsqrt.pop %v1341
  %v1347 = vrsqrt.pop %v1342
  %v1348 = vrsqrt.pop %v1343
  %v1349 = vmul.f32 %v1309, %v1344
  %v1350 = vmul.f32 %v1310, %v1345
  %v1351 = vmul.f32 %v1311, %v1346
  %v1352 = vmul.f32 %v1312, %v1347
  %v1353 = vmul.f32 %v1313, %v1348
  %v1355 = vlaneseq
  %v1356 = vshrl.u32 %v1355, 7
  %v1357 = vsub.s32 0, %v1356
  %v1358 = vrot.slane %v1285, %v1357
  %v1360 = vmul.f32 %v1349, %v1358
  %v1361 = vmul.f32 %v1350, %v1358
  %v1362 = vmul.f32 %v1351, %v1358
  %v1363 = vmul.f32 %v1352, %v1358
  %v1364 = vmul.f32 %v1353, %v1358
  %v1366 = vlaneseq
  %v1367 = vshrl.u32 %v1366, 7
  %v1368 = vsub.s32 0, %v1367
  %v1369 = vrot.slane %v1286, %v1368
  %v1371 = vadd.f32 %v1360, %v1369
  %v1372 = vadd.f32 %v1361, %v1369
  %v1373 = vadd.f32 %v1362, %v1369
  %v1374 = vadd.f32 %v1363, %v1369
  %v1375 = vadd.f32 %v1364, %v1369
  %v1376 = vpack.c.bf16 %v1372, %v1371
  %v1377 = vpack.c.bf16 %v1374, %v1373
  %v1378 = vpack.c.bf16 %v1375, %v1375
  %v1379 = vld [vmem:[%s7] sm:$0xff]
  %v1380 = vld [vmem:[%s7 + $0x8] sm:$0xff]
  %v1381 = vld [vmem:[%s7 + $0x10] sm:$0xff]
  %v1382 = vld [vmem:[%s7 + $0x18] sm:$0xff]
  %v1383 = vld [vmem:[%s8] sm:$0x3]
  %v1385 = vlaneseq
  %v1386 = vshrl.u32 %v1385, 7
  %v1387 = vsub.s32 0, %v1386
  %v1388 = vrot.slane %v1383, %v1387
  %v1389 = vlaneseq
  %v1390 = vshrl.u32 %v1389, 7
  %v1391 = vsub.s32 1, %v1390
  %v1392 = vrot.slane %v1383, %v1391
  %v1399 = vunpack.c.l.b16 %v1379
  %v1400 = vunpack.c.h.b16 %v1379
  %v1401 = vunpack.c.l.b16 %v1380
  %v1402 = vunpack.c.h.b16 %v1380
  %v1403 = vunpack.c.l.b16 %v1381
  %v1404 = vunpack.c.h.b16 %v1381
  %v1405 = vunpack.c.l.b16 %v1382
  %v1406 = vunpack.c.h.b16 %v1382
  %v1407 = vpack.c.b16 %v1401, %v1399
  %v1408 = vpack.c.b16 %v1402, %v1400
  %v1409 = vpack.c.b16 %v1405, %v1403
  %v1410 = vpack.c.b16 %v1406, %v1404
  %v1416 = vsel %vm1287, %v1376, 0
  %v1419 = vsel %vm1287, %v1377, 0
  %v1422 = vsel %vm1287, %v1378, 0
  %1424 = vmatprep.subr.bf16.mxu0 0
  %1425 = vmatpush1.bf16.msra.mxu0 0
  %1426 = vmatprep.subr.bf16.mxu0 0
  %1427 = vmatpush1.bf16.msra.mxu0 0
  %1428 = vmatprep.subr.bf16.mxu0 0
  %1429 = vmatpush1.bf16.msra.mxu0 0
  %1430 = vmatprep.subr.bf16.mxu0 0
  %1431 = vmatpush1.bf16.msra.mxu0 0
  %1432 = vmatprep.subr.bf16.mxu0 0
  %1433 = vmatpush1.bf16.msra.mxu0 0
  %1434 = vmatprep.subr.bf16.mxu0 0
  %1435 = vmatpush1.bf16.msra.mxu0 0
  %1436 = vmatprep.subr.bf16.mxu0 %v1410
  %1437 = vmatpush1.bf16.msra.mxu0 %v1409
  %1438 = vmatprep.subr.bf16.mxu0 %v1408
  %1439 = vmatpush1.bf16.msra.mxu0 %v1407
  %1440 = vmatprep.subr.bf16.mxu0 0
  %1441 = vmatpush2.bf16.msra.mxu0 0
  %1442 = vmatprep.subr.bf16.mxu0 0
  %1443 = vmatpush2.bf16.msra.mxu0 0
  %1444 = vmatprep.subr.bf16.mxu0 0
  %1445 = vmatpush2.bf16.msra.mxu0 0
  %1446 = vmatprep.subr.bf16.mxu0 0
  %1447 = vmatpush2.bf16.msra.mxu0 0
  %1448 = vmatprep.subr.bf16.mxu0 0
  %1449 = vmatpush2.bf16.msra.mxu0 0
  %1450 = vmatprep.subr.bf16.mxu0 0
  %1451 = vmatpush2.bf16.msra.mxu0 0
  %1452 = vmatprep.subr.bf16.mxu0 0
  %1453 = vmatpush2.bf16.msra.mxu0 0
  %1454 = vmatprep.subr.bf16.mxu0 0
  %1455 = vmatpush2.bf16.msra.mxu0 0
  %1456 = vmatprep.mubr.bf16.mxu0 0
  %1457 = vmatmul.mubr.bf16.gmra.mxu0 %v1416
  %v1458 = vpop.f32.mrf.mxu0
  %v1459 = vadd.f32 %v1388, %v1458
  %v1460 = vpop.f32.mrf.mxu0
  %v1461 = vadd.f32 %v1392, %v1460
  %v1462 = vpop.f32.mrf.mxu0
  %v1463 = vadd.f32 %v1388, %v1462
  %v1464 = vpop.f32.mrf.mxu0
  %v1465 = vadd.f32 %v1392, %v1464
  %1466 = vmatprep.mubr.bf16.mxu0 0
  %1467 = vmatmul.mubr.bf16.gmra.mxu0 %v1419
  %v1468 = vpop.f32.mrf.mxu0
  %v1469 = vadd.f32 %v1388, %v1468
  %v1470 = vpop.f32.mrf.mxu0
  %v1471 = vadd.f32 %v1392, %v1470
  %v1472 = vpop.f32.mrf.mxu0
  %v1473 = vadd.f32 %v1388, %v1472
  %v1474 = vpop.f32.mrf.mxu0
  %v1475 = vadd.f32 %v1392, %v1474
  %1476 = vmatprep.mubr.bf16.mxu0 0
  %1477 = vmatmul.mubr.bf16.gmra.mxu0 %v1422
  %v1478 = vpop.f32.mrf.mxu0
  %v1479 = vadd.f32 %v1388, %v1478
  %v1480 = vpop.f32.mrf.mxu0
  %v1481 = vadd.f32 %v1392, %v1480
  %v1482 = vpop.f32.mrf.mxu0
  %v1483 = vpop.f32.mrf.mxu0
  %1484 = vdwg.mxu0
  %v1485 = vmul.f32 %v1459, %v975
  %v1486 = vmul.f32 %v1463, %v980
  %v1487 = vmul.f32 %v1469, %v985
  %v1488 = vmul.f32 %v1473, %v990
  %v1489 = vmul.f32 %v1479, %v995
  %1495 = vrot.lane.b32.xlu0 %v1069, 32
  %v1496 = vpop.permute.xlu0 %1495
  %1497 = vrot.lane.b32.xlu0 %v1074, 32
  %v1498 = vpop.permute.xlu0 %1497
  %1499 = vrot.lane.b32.xlu0 %v1079, 32
  %v1500 = vpop.permute.xlu0 %1499
  %1501 = vrot.lane.b32.xlu0 %v1084, 32
  %v1502 = vpop.permute.xlu0 %1501
  %1503 = vrot.lane.b32.xlu0 %v1089, 32
  %v1504 = vpop.permute.xlu0 %1503
  %v1510 = vmul.f32 %v1459, %v1496
  %v1511 = vmul.f32 %v1463, %v1498
  %v1512 = vmul.f32 %v1469, %v1500
  %v1513 = vmul.f32 %v1473, %v1502
  %v1514 = vmul.f32 %v1479, %v1504
  %1520 = vrot.lane.b32.xlu0 %v1510, 96
  %v1521 = vpop.permute.xlu0 %1520
  %1522 = vrot.lane.b32.xlu0 %v1511, 96
  %v1523 = vpop.permute.xlu0 %1522
  %1524 = vrot.lane.b32.xlu0 %v1512, 96
  %v1525 = vpop.permute.xlu0 %1524
  %1526 = vrot.lane.b32.xlu0 %v1513, 96
  %v1527 = vpop.permute.xlu0 %1526
  %1528 = vrot.lane.b32.xlu0 %v1514, 96
  %v1529 = vpop.permute.xlu0 %1528
  %v1535 = vadd.f32 %v1485, %v1521
  %v1536 = vadd.f32 %v1486, %v1523
  %v1537 = vadd.f32 %v1487, %v1525
  %v1538 = vadd.f32 %v1488, %v1527
  %v1539 = vadd.f32 %v1489, %v1529
  %1545 = vrot.lane.b32.xlu0 %v975, 64
  %v1546 = vpop.permute.xlu0 %1545
  %1547 = vrot.lane.b32.xlu0 %v980, 64
  %v1548 = vpop.permute.xlu0 %1547
  %1549 = vrot.lane.b32.xlu0 %v985, 64
  %v1550 = vpop.permute.xlu0 %1549
  %1551 = vrot.lane.b32.xlu0 %v990, 64
  %v1552 = vpop.permute.xlu0 %1551
  %1553 = vrot.lane.b32.xlu0 %v995, 64
  %v1554 = vpop.permute.xlu0 %1553
  %v1560 = vmul.f32 %v1459, %v1546
  %v1561 = vmul.f32 %v1463, %v1548
  %v1562 = vmul.f32 %v1469, %v1550
  %v1563 = vmul.f32 %v1473, %v1552
  %v1564 = vmul.f32 %v1479, %v1554
  %1565 = vrot.lane.b32.xlu0 %v1069, 96
  %v1566 = vpop.permute.xlu0 %1565
  %1567 = vrot.lane.b32.xlu0 %v1074, 96
  %v1568 = vpop.permute.xlu0 %1567
  %1569 = vrot.lane.b32.xlu0 %v1079, 96
  %v1570 = vpop.permute.xlu0 %1569
  %1571 = vrot.lane.b32.xlu0 %v1084, 96
  %v1572 = vpop.permute.xlu0 %1571
  %1573 = vrot.lane.b32.xlu0 %v1089, 96
  %v1574 = vpop.permute.xlu0 %1573
  %v1580 = vmul.f32 %v1459, %v1566
  %v1581 = vmul.f32 %v1463, %v1568
  %v1582 = vmul.f32 %v1469, %v1570
  %v1583 = vmul.f32 %v1473, %v1572
  %v1584 = vmul.f32 %v1479, %v1574
  %1590 = vrot.lane.b32.xlu0 %v1580, 96
  %v1591 = vpop.permute.xlu0 %1590
  %1592 = vrot.lane.b32.xlu0 %v1581, 96
  %v1593 = vpop.permute.xlu0 %1592
  %1594 = vrot.lane.b32.xlu0 %v1582, 96
  %v1595 = vpop.permute.xlu0 %1594
  %1596 = vrot.lane.b32.xlu0 %v1583, 96
  %v1597 = vpop.permute.xlu0 %1596
  %1598 = vrot.lane.b32.xlu0 %v1584, 96
  %v1599 = vpop.permute.xlu0 %1598
  %v1605 = vadd.f32 %v1560, %v1591
  %v1606 = vadd.f32 %v1561, %v1593
  %v1607 = vadd.f32 %v1562, %v1595
  %v1608 = vadd.f32 %v1563, %v1597
  %v1609 = vadd.f32 %v1564, %v1599
  %1630 = vrot.lane.b32.xlu0 %v547, 64
  %v1631 = vpop.permute.xlu0 %1630
  %1632 = vrot.lane.b32.xlu0 %v552, 64
  %v1633 = vpop.permute.xlu0 %1632
  %1634 = vrot.lane.b32.xlu0 %v557, 64
  %v1635 = vpop.permute.xlu0 %1634
  %1636 = vrot.lane.b32.xlu0 %v562, 64
  %v1637 = vpop.permute.xlu0 %1636
  %1638 = vrot.lane.b32.xlu0 %v567, 64
  %v1639 = vpop.permute.xlu0 %1638
  %1640 = vrot.lane.b32.xlu0 %v572, 64
  %v1641 = vpop.permute.xlu0 %1640
  %1642 = vrot.lane.b32.xlu0 %v577, 64
  %v1643 = vpop.permute.xlu0 %1642
  %1644 = vrot.lane.b32.xlu0 %v582, 64
  %v1645 = vpop.permute.xlu0 %1644
  %1646 = vrot.lane.b32.xlu0 %v587, 64
  %v1647 = vpop.permute.xlu0 %1646
  %1648 = vrot.lane.b32.xlu0 %v592, 64
  %v1649 = vpop.permute.xlu0 %1648
  %1650 = vrot.lane.b32.xlu0 %v597, 64
  %v1651 = vpop.permute.xlu0 %1650
  %1652 = vrot.lane.b32.xlu0 %v602, 64
  %v1653 = vpop.permute.xlu0 %1652
  %1654 = vrot.lane.b32.xlu0 %v607, 64
  %v1655 = vpop.permute.xlu0 %1654
  %1656 = vrot.lane.b32.xlu0 %v612, 64
  %v1657 = vpop.permute.xlu0 %1656
  %1658 = vrot.lane.b32.xlu0 %v617, 64
  %v1659 = vpop.permute.xlu0 %1658
  %1660 = vrot.lane.b32.xlu0 %v622, 64
  %v1661 = vpop.permute.xlu0 %1660
  %1662 = vrot.lane.b32.xlu0 %v627, 64
  %v1663 = vpop.permute.xlu0 %1662
  %1664 = vrot.lane.b32.xlu0 %v632, 64
  %v1665 = vpop.permute.xlu0 %1664
  %1666 = vrot.lane.b32.xlu0 %v637, 64
  %v1667 = vpop.permute.xlu0 %1666
  %1668 = vrot.lane.b32.xlu0 %v642, 64
  %v1669 = vpop.permute.xlu0 %1668
  %v1690 = vmul.f32 %v1605, %v1631
  %v1691 = vmul.f32 %v1606, %v1633
  %v1692 = vmul.f32 %v1607, %v1635
  %v1693 = vmul.f32 %v1608, %v1637
  %v1694 = vmul.f32 %v1609, %v1639
  %v1695 = vmul.f32 %v1605, %v1641
  %v1696 = vmul.f32 %v1606, %v1643
  %v1697 = vmul.f32 %v1607, %v1645
  %v1698 = vmul.f32 %v1608, %v1647
  %v1699 = vmul.f32 %v1609, %v1649
  %v1700 = vmul.f32 %v1605, %v1651
  %v1701 = vmul.f32 %v1606, %v1653
  %v1702 = vmul.f32 %v1607, %v1655
  %v1703 = vmul.f32 %v1608, %v1657
  %v1704 = vmul.f32 %v1609, %v1659
  %v1705 = vmul.f32 %v1605, %v1661
  %v1706 = vmul.f32 %v1606, %v1663
  %v1707 = vmul.f32 %v1607, %v1665
  %v1708 = vmul.f32 %v1608, %v1667
  %v1709 = vmul.f32 %v1609, %v1669
  %v1710 = vpack.c.bf16 %v1691, %v1690
  %v1711 = vpack.c.bf16 %v1693, %v1692
  %v1712 = vpack.c.bf16 %v1695, %v1694
  %v1713 = vpack.c.bf16 %v1697, %v1696
  %v1714 = vpack.c.bf16 %v1699, %v1698
  %v1715 = vpack.c.bf16 %v1701, %v1700
  %v1716 = vpack.c.bf16 %v1703, %v1702
  %v1717 = vpack.c.bf16 %v1705, %v1704
  %v1718 = vpack.c.bf16 %v1707, %v1706
  %v1719 = vpack.c.bf16 %v1709, %v1708
  %v1720 = vmul.f32 %v1461, %v547
  %v1721 = vmul.f32 %v1465, %v552
  %v1722 = vmul.f32 %v1471, %v557
  %v1723 = vmul.f32 %v1475, %v562
  %v1724 = vmul.f32 %v1481, %v567
  %v1725 = vmul.f32 %v1461, %v572
  %v1726 = vmul.f32 %v1465, %v577
  %v1727 = vmul.f32 %v1471, %v582
  %v1728 = vmul.f32 %v1475, %v587
  %v1729 = vmul.f32 %v1481, %v592
  %v1730 = vmul.f32 %v1461, %v597
  %v1731 = vmul.f32 %v1465, %v602
  %v1732 = vmul.f32 %v1471, %v607
  %v1733 = vmul.f32 %v1475, %v612
  %v1734 = vmul.f32 %v1481, %v617
  %v1735 = vmul.f32 %v1461, %v622
  %v1736 = vmul.f32 %v1465, %v627
  %v1737 = vmul.f32 %v1471, %v632
  %v1738 = vmul.f32 %v1475, %v637
  %v1739 = vmul.f32 %v1481, %v642
  %v1740 = vpack.c.bf16 %v1721, %v1720
  %v1741 = vpack.c.bf16 %v1723, %v1722
  %v1742 = vpack.c.bf16 %v1725, %v1724
  %v1743 = vpack.c.bf16 %v1727, %v1726
  %v1744 = vpack.c.bf16 %v1729, %v1728
  %v1745 = vpack.c.bf16 %v1731, %v1730
  %v1746 = vpack.c.bf16 %v1733, %v1732
  %v1747 = vpack.c.bf16 %v1735, %v1734
  %v1748 = vpack.c.bf16 %v1737, %v1736
  %v1749 = vpack.c.bf16 %v1739, %v1738
  %v1750 = vpack.c.bf16 %v1536, %v1535
  %v1751 = vpack.c.bf16 %v1538, %v1537
  %v1752 = vpack.c.bf16 %v1539, %v1539
  %1763 = vrot.lane.b32.xlu0 %v1710, 64
  %v1764 = vpop.permute.xlu0 %1763
  %1765 = vrot.lane.b32.xlu0 %v1711, 64
  %v1766 = vpop.permute.xlu0 %1765
  %1767 = vrot.lane.b32.xlu0 %v1712, 64
  %v1768 = vpop.permute.xlu0 %1767
  %1769 = vrot.lane.b32.xlu0 %v1713, 64
  %v1770 = vpop.permute.xlu0 %1769
  %1771 = vrot.lane.b32.xlu0 %v1714, 64
  %v1772 = vpop.permute.xlu0 %1771
  %1773 = vrot.lane.b32.xlu0 %v1715, 64
  %v1774 = vpop.permute.xlu0 %1773
  %1775 = vrot.lane.b32.xlu0 %v1716, 64
  %v1776 = vpop.permute.xlu0 %1775
  %1777 = vrot.lane.b32.xlu0 %v1717, 64
  %v1778 = vpop.permute.xlu0 %1777
  %1779 = vrot.lane.b32.xlu0 %v1718, 64
  %v1780 = vpop.permute.xlu0 %1779
  %1781 = vrot.lane.b32.xlu0 %v1719, 64
  %v1782 = vpop.permute.xlu0 %1781
  %v1784 = vsel %vm1287, %v1750, 0
  %v1787 = vsel %vm1287, %v1751, 0
  %v1790 = vsel %vm1287, %v1752, 0
  %v1793 = vsel %vm1287, %v1764, 0
  %v1796 = vsel %vm1287, %v1766, 0
  %v1799 = vsel %vm1287, %v1768, 0
  %v1802 = vsel %vm1287, %v1770, 0
  %v1805 = vsel %vm1287, %v1772, 0
  %v1808 = vsel %vm1287, %v1774, 0
  %v1811 = vsel %vm1287, %v1776, 0
  %v1814 = vsel %vm1287, %v1778, 0
  %v1817 = vsel %vm1287, %v1780, 0
  %v1820 = vsel %vm1287, %v1782, 0
  %1822 = vmatprep.subr.bf16.mxu0 0
  %1823 = vmatpush1.bf16.xpose.msra.mxu0 %v1814
  %1824 = vmatprep.subr.bf16.mxu0 0
  %1825 = vmatpush1.bf16.xpose.msra.mxu0 %v1811
  %1826 = vmatprep.subr.bf16.mxu0 0
  %1827 = vmatpush1.bf16.xpose.msra.mxu0 %v1808
  %1828 = vmatprep.subr.bf16.mxu0 0
  %1829 = vmatpush1.bf16.xpose.msra.mxu0 %v1805
  %1830 = vmatprep.subr.bf16.mxu0 0
  %1831 = vmatpush1.bf16.xpose.msra.mxu0 %v1802
  %1832 = vmatprep.subr.bf16.mxu0 0
  %1833 = vmatpush1.bf16.xpose.msra.mxu0 %v1799
  %1834 = vmatprep.subr.bf16.mxu0 0
  %1835 = vmatpush1.bf16.xpose.msra.mxu0 %v1796
  %1836 = vmatprep.subr.bf16.mxu0 0
  %1837 = vmatpush1.bf16.xpose.msra.mxu0 %v1793
  %1838 = vmatprep.subr.bf16.mxu0 0
  %1839 = vmatpush2.bf16.xpose.msra.mxu0 0
  %1840 = vmatprep.subr.bf16.mxu0 0
  %1841 = vmatpush2.bf16.xpose.msra.mxu0 0
  %1842 = vmatprep.subr.bf16.mxu0 0
  %1843 = vmatpush2.bf16.xpose.msra.mxu0 0
  %1844 = vmatprep.subr.bf16.mxu0 0
  %1845 = vmatpush2.bf16.xpose.msra.mxu0 0
  %1846 = vmatprep.subr.bf16.mxu0 0
  %1847 = vmatpush2.bf16.xpose.msra.mxu0 0
  %1848 = vmatprep.subr.bf16.mxu0 0
  %1849 = vmatpush2.bf16.xpose.msra.mxu0 0
  %1850 = vmatprep.subr.bf16.mxu0 0
  %1851 = vmatpush2.bf16.xpose.msra.mxu0 %v1820
  %1852 = vmatprep.subr.bf16.mxu0 0
  %1853 = vmatpush2.bf16.xpose.msra.mxu0 %v1817
  %1854 = vmatprep.mubr.bf16.mxu0 0
  %1855 = vmatmul.mubr.bf16.gmra.mxu0 %v1784
  %v1856 = vpop.f32.mrf.mxu0
  %v1857 = vadd.f32 %v287, %v1856
  %v1858 = vpop.f32.mrf.mxu0
  %v1859 = vadd.f32 %v260, %v1858
  %v1860 = vpop.f32.mrf.mxu0
  %v1861 = vadd.f32 %v288, %v1860
  %v1862 = vpop.f32.mrf.mxu0
  %v1863 = vadd.f32 %v262, %v1862
  %1864 = vmatprep.mubr.bf16.mxu0 0
  %1865 = vmatmul.mubr.bf16.gmra.mxu0 %v1787
  %v1866 = vpop.f32.mrf.mxu0
  %v1867 = vadd.f32 %v289, %v1866
  %v1868 = vpop.f32.mrf.mxu0
  %v1869 = vadd.f32 %v264, %v1868
  %v1870 = vpop.f32.mrf.mxu0
  %v1871 = vadd.f32 %v290, %v1870
  %v1872 = vpop.f32.mrf.mxu0
  %v1873 = vadd.f32 %v266, %v1872
  %1874 = vmatprep.mubr.bf16.mxu0 0
  %1875 = vmatmul.mubr.bf16.gmra.mxu0 %v1790
  %v1876 = vpop.f32.mrf.mxu0
  %v1877 = vadd.f32 %v291, %v1876
  %v1878 = vpop.f32.mrf.mxu0
  %v1879 = vadd.f32 %v268, %v1878
  %v1880 = vpop.f32.mrf.mxu0
  %v1881 = vpop.f32.mrf.mxu0
  %1882 = vdwg.mxu0
  %v1883 = vsel %vm1287, %v1859, -inf
  %v1884 = vmax.f32 %v1857, %v1883
  %1885 = vmax.xlane.f32.xlu0 %v1884
  %v1886 = vpop.xlane.xlu0 %1885
  %v1887 = vsel %vm1287, %v1863, -inf
  %v1888 = vmax.f32 %v1861, %v1887
  %1889 = vmax.xlane.f32.xlu0 %v1888
  %v1890 = vpop.xlane.xlu0 %1889
  %v1891 = vsel %vm1287, %v1869, -inf
  %v1892 = vmax.f32 %v1867, %v1891
  %1893 = vmax.xlane.f32.xlu0 %v1892
  %v1894 = vpop.xlane.xlu0 %1893
  %v1895 = vsel %vm1287, %v1873, -inf
  %v1896 = vmax.f32 %v1871, %v1895
  %1897 = vmax.xlane.f32.xlu0 %v1896
  %v1898 = vpop.xlane.xlu0 %1897
  %v1899 = vsel %vm1287, %v1879, -inf
  %v1900 = vmax.f32 %v1877, %v1899
  %1901 = vmax.xlane.f32.xlu0 %v1900
  %v1902 = vpop.xlane.xlu0 %1901
  %v1903 = vsub.f32 %v1857, %v1886
  %v1904 = vsub.f32 %v1859, %v1886
  %v1905 = vsub.f32 %v1861, %v1890
  %v1906 = vsub.f32 %v1863, %v1890
  %v1907 = vsub.f32 %v1867, %v1894
  %v1908 = vsub.f32 %v1869, %v1894
  %v1909 = vsub.f32 %v1871, %v1898
  %v1910 = vsub.f32 %v1873, %v1898
  %v1911 = vsub.f32 %v1877, %v1902
  %v1912 = vsub.f32 %v1879, %v1902
  %v1913 = vmul.f32 %v1903, 1.442695
  %v1914 = vpow.pop %v1913
  %v1915 = vmul.f32 %v1904, 1.442695
  %v1916 = vpow.pop %v1915
  %v1917 = vmul.f32 %v1905, 1.442695
  %v1918 = vpow.pop %v1917
  %v1919 = vmul.f32 %v1906, 1.442695
  %v1920 = vpow.pop %v1919
  %v1921 = vmul.f32 %v1907, 1.442695
  %v1922 = vpow.pop %v1921
  %v1923 = vmul.f32 %v1908, 1.442695
  %v1924 = vpow.pop %v1923
  %v1925 = vmul.f32 %v1909, 1.442695
  %v1926 = vpow.pop %v1925
  %v1927 = vmul.f32 %v1910, 1.442695
  %v1928 = vpow.pop %v1927
  %v1929 = vmul.f32 %v1911, 1.442695
  %v1930 = vpow.pop %v1929
  %v1931 = vmul.f32 %v1912, 1.442695
  %v1932 = vpow.pop %v1931
  %v1933 = vpack.c.bf16 %v1918, %v1914
  %v1934 = vpack.c.bf16 %v1920, %v1916
  %v1935 = vpack.c.bf16 %v1926, %v1922
  %v1936 = vpack.c.bf16 %v1928, %v1924
  %v1937 = vpack.c.bf16 %v1930, %v1930
  %v1938 = vpack.c.bf16 %v1932, %v1932
  %v1940 = vsel %vm1287, %v1934, 0
  %v1943 = vsel %vm1287, %v1936, 0
  %v1946 = vsel %vm1287, %v1938, 0
  %1948 = vmatprep.subr.bf16.mxu0 0
  %1949 = vmatpush1.bf16.msra.mxu0 %v1747
  %1950 = vmatprep.subr.bf16.mxu0 0
  %1951 = vmatpush1.bf16.msra.mxu0 %v1746
  %1952 = vmatprep.subr.bf16.mxu0 0
  %1953 = vmatpush1.bf16.msra.mxu0 %v1745
  %1954 = vmatprep.subr.bf16.mxu0 0
  %1955 = vmatpush1.bf16.msra.mxu0 %v1744
  %1956 = vmatprep.subr.bf16.mxu0 0
  %1957 = vmatpush1.bf16.msra.mxu0 %v1743
  %1958 = vmatprep.subr.bf16.mxu0 0
  %1959 = vmatpush1.bf16.msra.mxu0 %v1742
  %1960 = vmatprep.subr.bf16.mxu0 0
  %1961 = vmatpush1.bf16.msra.mxu0 %v1741
  %1962 = vmatprep.subr.bf16.mxu0 0
  %1963 = vmatpush1.bf16.msra.mxu0 %v1740
  %1964 = vmatprep.subr.bf16.mxu0 0
  %1965 = vmatpush2.bf16.msra.mxu0 0
  %1966 = vmatprep.subr.bf16.mxu0 0
  %1967 = vmatpush2.bf16.msra.mxu0 0
  %1968 = vmatprep.subr.bf16.mxu0 0
  %1969 = vmatpush2.bf16.msra.mxu0 0
  %1970 = vmatprep.subr.bf16.mxu0 0
  %1971 = vmatpush2.bf16.msra.mxu0 0
  %1972 = vmatprep.subr.bf16.mxu0 0
  %1973 = vmatpush2.bf16.msra.mxu0 0
  %1974 = vmatprep.subr.bf16.mxu0 0
  %1975 = vmatpush2.bf16.msra.mxu0 0
  %1976 = vmatprep.subr.bf16.mxu0 0
  %1977 = vmatpush2.bf16.msra.mxu0 %v1749
  %1978 = vmatprep.subr.bf16.mxu0 0
  %1979 = vmatpush2.bf16.msra.mxu0 %v1748
  %1980 = vmatprep.mubr.bf16.mxu0 %v1940
  %1981 = vmatmul.mubr.bf16.gmra.mxu0 %v1933
  %v1982 = vpop.f32.mrf.mxu0
  %v1983 = vadd.f32 0.0, %v1982
  %v1984 = vpop.f32.mrf.mxu0
  %v1985 = vpop.f32.mrf.mxu0
  %v1986 = vadd.f32 0.0, %v1985
  %v1987 = vpop.f32.mrf.mxu0
  %1988 = vmatprep.mubr.bf16.mxu0 %v1943
  %1989 = vmatmul.mubr.bf16.gmra.mxu0 %v1935
  %v1990 = vpop.f32.mrf.mxu0
  %v1991 = vadd.f32 0.0, %v1990
  %v1992 = vpop.f32.mrf.mxu0
  %v1993 = vpop.f32.mrf.mxu0
  %v1994 = vadd.f32 0.0, %v1993
  %v1995 = vpop.f32.mrf.mxu0
  %1996 = vmatprep.mubr.bf16.mxu0 %v1946
  %1997 = vmatmul.mubr.bf16.gmra.mxu0 %v1937
  %v1998 = vpop.f32.mrf.mxu0
  %v1999 = vadd.f32 0.0, %v1998
  %v2000 = vpop.f32.mrf.mxu0
  %v2001 = vpop.f32.mrf.mxu0
  %v2002 = vpop.f32.mrf.mxu0
  %2003 = vdwg.mxu0
  %2004 = vmatprep.subr.bf16.mxu0 0
  %2005 = vmatpush1.bf16.msra.mxu0 %v652
  %2006 = vmatprep.subr.bf16.mxu0 0
  %2007 = vmatpush1.bf16.msra.mxu0 %v651
  %2008 = vmatprep.subr.bf16.mxu0 0
  %2009 = vmatpush1.bf16.msra.mxu0 %v650
  %2010 = vmatprep.subr.bf16.mxu0 0
  %2011 = vmatpush1.bf16.msra.mxu0 %v649
  %2012 = vmatprep.subr.bf16.mxu0 0
  %2013 = vmatpush1.bf16.msra.mxu0 %v648
  %2014 = vmatprep.subr.bf16.mxu0 0
  %2015 = vmatpush1.bf16.msra.mxu0 %v647
  %2016 = vmatprep.subr.bf16.mxu0 0
  %2017 = vmatpush1.bf16.msra.mxu0 %v646
  %2018 = vmatprep.subr.bf16.mxu0 0
  %2019 = vmatpush1.bf16.msra.mxu0 %v645
  %2020 = vmatprep.subr.bf16.mxu0 0
  %2021 = vmatpush2.bf16.msra.mxu0 0
  %2022 = vmatprep.subr.bf16.mxu0 0
  %2023 = vmatpush2.bf16.msra.mxu0 0
  %2024 = vmatprep.subr.bf16.mxu0 0
  %2025 = vmatpush2.bf16.msra.mxu0 0
  %2026 = vmatprep.subr.bf16.mxu0 0
  %2027 = vmatpush2.bf16.msra.mxu0 0
  %2028 = vmatprep.subr.bf16.mxu0 0
  %2029 = vmatpush2.bf16.msra.mxu0 0
  %2030 = vmatprep.subr.bf16.mxu0 0
  %2031 = vmatpush2.bf16.msra.mxu0 0
  %2032 = vmatprep.subr.bf16.mxu0 0
  %2033 = vmatpush2.bf16.msra.mxu0 %v654
  %2034 = vmatprep.subr.bf16.mxu0 0
  %2035 = vmatpush2.bf16.msra.mxu0 %v653
  %2036 = vmatprep.mubr.bf16.mxu0 %v1940
  %2037 = vmatmul.mubr.bf16.gmra.mxu0 %v1933
  %v2038 = vpop.f32.mrf.mxu0
  %v2039 = vadd.f32 0.0, %v2038
  %v2040 = vpop.f32.mrf.mxu0
  %v2041 = vpop.f32.mrf.mxu0
  %v2042 = vadd.f32 0.0, %v2041
  %v2043 = vpop.f32.mrf.mxu0
  %2044 = vmatprep.mubr.bf16.mxu0 %v1943
  %2045 = vmatmul.mubr.bf16.gmra.mxu0 %v1935
  %v2046 = vpop.f32.mrf.mxu0
  %v2047 = vadd.f32 0.0, %v2046
  %v2048 = vpop.f32.mrf.mxu0
  %v2049 = vpop.f32.mrf.mxu0
  %v2050 = vadd.f32 0.0, %v2049
  %v2051 = vpop.f32.mrf.mxu0
  %2052 = vmatprep.mubr.bf16.mxu0 %v1946
  %2053 = vmatmul.mubr.bf16.gmra.mxu0 %v1937
  %v2054 = vpop.f32.mrf.mxu0
  %v2055 = vadd.f32 0.0, %v2054
  %v2056 = vpop.f32.mrf.mxu0
  %v2057 = vpop.f32.mrf.mxu0
  %v2058 = vpop.f32.mrf.mxu0
  %2059 = vdwg.mxu0
  %v2060 = vrcp.pop %v2039
  %v2061 = vrcp.pop %v2042
  %v2062 = vrcp.pop %v2047
  %v2063 = vrcp.pop %v2050
  %v2064 = vrcp.pop %v2055
  %v2065 = vmul.f32 %v1983, %v2060
  %v2066 = vmul.f32 %v1986, %v2061
  %v2067 = vmul.f32 %v1991, %v2062
  %v2068 = vmul.f32 %v1994, %v2063
  %v2069 = vmul.f32 %v1999, %v2064
  %v2070 = vpack.c.bf16 %v2066, %v2065
  %v2071 = vpack.c.bf16 %v2068, %v2067
  %v2072 = vpack.c.bf16 %v2069, %v2069
  %v2073 = vld [vmem:[%s9] sm:$0xf]
  %v2074 = vld [vmem:[%s9 + $0x4] sm:$0xf]
  %v2075 = vld [vmem:[%s9 + $0x8] sm:$0xf]
  %v2076 = vld [vmem:[%s9 + $0xc] sm:$0xf]
  %v2077 = vld [vmem:[%s10] sm:$0x1]
  %v2079 = vlaneseq
  %v2080 = vshrl.u32 %v2079, 7
  %v2081 = vsub.s32 0, %v2080
  %v2082 = vrot.slane %v2077, %v2081
  %v2088 = vunpack.c.l.b16 %v2073
  %v2089 = vunpack.c.l.b16 %v2074
  %v2090 = vunpack.c.l.b16 %v2075
  %v2091 = vunpack.c.l.b16 %v2076
  %v2092 = vpack.c.b16 %v2089, %v2088
  %v2093 = vpack.c.b16 %v2091, %v2090
  %v2097 = vsel %vm1287, %v2070, 0
  %v2100 = vsel %vm1287, %v2071, 0
  %v2103 = vsel %vm1287, %v2072, 0
  %2105 = vmatprep.subr.bf16.mxu0 0
  %2106 = vmatpush1.bf16.msra.mxu0 0
  %2107 = vmatprep.subr.bf16.mxu0 0
  %2108 = vmatpush1.bf16.msra.mxu0 0
  %2109 = vmatprep.subr.bf16.mxu0 0
  %2110 = vmatpush1.bf16.msra.mxu0 0
  %2111 = vmatprep.subr.bf16.mxu0 0
  %2112 = vmatpush1.bf16.msra.mxu0 0
  %2113 = vmatprep.subr.bf16.mxu0 0
  %2114 = vmatpush1.bf16.msra.mxu0 0
  %2115 = vmatprep.subr.bf16.mxu0 0
  %2116 = vmatpush1.bf16.msra.mxu0 0
  %2117 = vmatprep.subr.bf16.mxu0 0
  %2118 = vmatpush1.bf16.msra.mxu0 %v2093
  %2119 = vmatprep.subr.bf16.mxu0 0
  %2120 = vmatpush1.bf16.msra.mxu0 %v2092
  %2121 = vmatprep.subr.bf16.mxu0 0
  %2122 = vmatpush2.bf16.msra.mxu0 0
  %2123 = vmatprep.subr.bf16.mxu0 0
  %2124 = vmatpush2.bf16.msra.mxu0 0
  %2125 = vmatprep.subr.bf16.mxu0 0
  %2126 = vmatpush2.bf16.msra.mxu0 0
  %2127 = vmatprep.subr.bf16.mxu0 0
  %2128 = vmatpush2.bf16.msra.mxu0 0
  %2129 = vmatprep.subr.bf16.mxu0 0
  %2130 = vmatpush2.bf16.msra.mxu0 0
  %2131 = vmatprep.subr.bf16.mxu0 0
  %2132 = vmatpush2.bf16.msra.mxu0 0
  %2133 = vmatprep.subr.bf16.mxu0 0
  %2134 = vmatpush2.bf16.msra.mxu0 0
  %2135 = vmatprep.subr.bf16.mxu0 0
  %2136 = vmatpush2.bf16.msra.mxu0 0
  %2137 = vmatprep.mubr.bf16.mxu0 0
  %2138 = vmatmul.mubr.bf16.gmra.mxu0 %v2097
  %v2139 = vpop.f32.mrf.mxu0
  %v2140 = vadd.f32 %v2082, %v2139
  %v2141 = vpop.f32.mrf.mxu0
  %v2142 = vpop.f32.mrf.mxu0
  %v2143 = vadd.f32 %v2082, %v2142
  %v2144 = vpop.f32.mrf.mxu0
  %2145 = vmatprep.mubr.bf16.mxu0 0
  %2146 = vmatmul.mubr.bf16.gmra.mxu0 %v2100
  %v2147 = vpop.f32.mrf.mxu0
  %v2148 = vadd.f32 %v2082, %v2147
  %v2149 = vpop.f32.mrf.mxu0
  %v2150 = vpop.f32.mrf.mxu0
  %v2151 = vadd.f32 %v2082, %v2150
  %v2152 = vpop.f32.mrf.mxu0
  %2153 = vmatprep.mubr.bf16.mxu0 0
  %2154 = vmatmul.mubr.bf16.gmra.mxu0 %v2103
  %v2155 = vpop.f32.mrf.mxu0
  %v2156 = vadd.f32 %v2082, %v2155
  %v2157 = vpop.f32.mrf.mxu0
  %v2158 = vpop.f32.mrf.mxu0
  %v2159 = vpop.f32.mrf.mxu0
  %2160 = vdwg.mxu0
  %v2161 = vadd.f32 %v1264, %v2140
  %v2162 = vadd.f32 %v1267, %v2143
  %v2163 = vadd.f32 %v1272, %v2148
  %v2164 = vadd.f32 %v1275, %v2151
  %v2165 = vadd.f32 %v1280, %v2156
  %v2166 = vld [vmem:[%s11] sm:$0x1]
  %v2167 = vld [vmem:[%s12] sm:$0x1]
  %v2168 = vsel %vm1287, %v2161, 0.0
  %2169 = vadd.xlane.f32.xlu0 %v2168
  %v2170 = vpop.xlane.xlu0 %2169
  %v2171 = vsel %vm1287, %v2162, 0.0
  %2172 = vadd.xlane.f32.xlu0 %v2171
  %v2173 = vpop.xlane.xlu0 %2172
  %v2174 = vsel %vm1287, %v2163, 0.0
  %2175 = vadd.xlane.f32.xlu0 %v2174
  %v2176 = vpop.xlane.xlu0 %2175
  %v2177 = vsel %vm1287, %v2164, 0.0
  %2178 = vadd.xlane.f32.xlu0 %v2177
  %v2179 = vpop.xlane.xlu0 %2178
  %v2180 = vsel %vm1287, %v2165, 0.0
  %2181 = vadd.xlane.f32.xlu0 %v2180
  %v2182 = vpop.xlane.xlu0 %2181
  %v2183 = vmul.f32 %v2170, %v1303
  %v2184 = vmul.f32 %v2173, %v1303
  %v2185 = vmul.f32 %v2176, %v1303
  %v2186 = vmul.f32 %v2179, %v1303
  %v2187 = vmul.f32 %v2182, %v1303
  %v2188 = vsub.f32 %v2161, %v2183
  %v2189 = vsub.f32 %v2162, %v2184
  %v2190 = vsub.f32 %v2163, %v2185
  %v2191 = vsub.f32 %v2164, %v2186
  %v2192 = vsub.f32 %v2165, %v2187
  %v2193 = vmul.f32 %v2188, %v2188
  %v2194 = vmul.f32 %v2189, %v2189
  %v2195 = vmul.f32 %v2190, %v2190
  %v2196 = vmul.f32 %v2191, %v2191
  %v2197 = vmul.f32 %v2192, %v2192
  %v2198 = vsel %vm1287, %v2193, 0.0
  %2199 = vadd.xlane.f32.xlu0 %v2198
  %v2200 = vpop.xlane.xlu0 %2199
  %v2201 = vsel %vm1287, %v2194, 0.0
  %2202 = vadd.xlane.f32.xlu0 %v2201
  %v2203 = vpop.xlane.xlu0 %2202
  %v2204 = vsel %vm1287, %v2195, 0.0
  %2205 = vadd.xlane.f32.xlu0 %v2204
  %v2206 = vpop.xlane.xlu0 %2205
  %v2207 = vsel %vm1287, %v2196, 0.0
  %2208 = vadd.xlane.f32.xlu0 %v2207
  %v2209 = vpop.xlane.xlu0 %2208
  %v2210 = vsel %vm1287, %v2197, 0.0
  %2211 = vadd.xlane.f32.xlu0 %v2210
  %v2212 = vpop.xlane.xlu0 %2211
  %v2213 = vmul.f32 %v2200, %v1303
  %v2214 = vmul.f32 %v2203, %v1303
  %v2215 = vmul.f32 %v2206, %v1303
  %v2216 = vmul.f32 %v2209, %v1303
  %v2217 = vmul.f32 %v2212, %v1303
  %v2218 = vadd.f32 %v2213, 1e-06
  %v2219 = vadd.f32 %v2214, 1e-06
  %v2220 = vadd.f32 %v2215, 1e-06
  %v2221 = vadd.f32 %v2216, 1e-06
  %v2222 = vadd.f32 %v2217, 1e-06
  %v2223 = vrsqrt.pop %v2218
  %v2224 = vrsqrt.pop %v2219
  %v2225 = vrsqrt.pop %v2220
  %v2226 = vrsqrt.pop %v2221
  %v2227 = vrsqrt.pop %v2222
  %v2228 = vmul.f32 %v2188, %v2223
  %v2229 = vmul.f32 %v2189, %v2224
  %v2230 = vmul.f32 %v2190, %v2225
  %v2231 = vmul.f32 %v2191, %v2226
  %v2232 = vmul.f32 %v2192, %v2227
  %v2234 = vlaneseq
  %v2235 = vshrl.u32 %v2234, 7
  %v2236 = vsub.s32 0, %v2235
  %v2237 = vrot.slane %v2166, %v2236
  %v2239 = vmul.f32 %v2228, %v2237
  %v2240 = vmul.f32 %v2229, %v2237
  %v2241 = vmul.f32 %v2230, %v2237
  %v2242 = vmul.f32 %v2231, %v2237
  %v2243 = vmul.f32 %v2232, %v2237
  %v2245 = vlaneseq
  %v2246 = vshrl.u32 %v2245, 7
  %v2247 = vsub.s32 0, %v2246
  %v2248 = vrot.slane %v2167, %v2247
  %v2250 = vadd.f32 %v2239, %v2248
  %v2251 = vadd.f32 %v2240, %v2248
  %v2252 = vadd.f32 %v2241, %v2248
  %v2253 = vadd.f32 %v2242, %v2248
  %v2254 = vadd.f32 %v2243, %v2248
  %v2255 = vpack.c.bf16 %v2251, %v2250
  %v2256 = vpack.c.bf16 %v2253, %v2252
  %v2257 = vpack.c.bf16 %v2254, %v2254
  %v2258 = vld [vmem:[%s13] sm:$0xf]
  %v2259 = vld [vmem:[%s13 + $0x4] sm:$0xf]
  %v2260 = vld [vmem:[%s13 + $0x8] sm:$0xf]
  %v2261 = vld [vmem:[%s13 + $0xc] sm:$0xf]
  %v2262 = vld [vmem:[%s14] sm:$0x1]
  %v2264 = vlaneseq
  %v2265 = vshrl.u32 %v2264, 7
  %v2266 = vsub.s32 0, %v2265
  %v2267 = vrot.slane %v2262, %v2266
  %v2273 = vunpack.c.l.b16 %v2258
  %v2274 = vunpack.c.l.b16 %v2259
  %v2275 = vunpack.c.l.b16 %v2260
  %v2276 = vunpack.c.l.b16 %v2261
  %v2277 = vpack.c.b16 %v2274, %v2273
  %v2278 = vpack.c.b16 %v2276, %v2275
  %v2282 = vsel %vm1287, %v2255, 0
  %v2285 = vsel %vm1287, %v2256, 0
  %v2288 = vsel %vm1287, %v2257, 0
  %2290 = vmatprep.subr.bf16.mxu0 0
  %2291 = vmatpush1.bf16.msra.mxu0 0
  %2292 = vmatprep.subr.bf16.mxu0 0
  %2293 = vmatpush1.bf16.msra.mxu0 0
  %2294 = vmatprep.subr.bf16.mxu0 0
  %2295 = vmatpush1.bf16.msra.mxu0 0
  %2296 = vmatprep.subr.bf16.mxu0 0
  %2297 = vmatpush1.bf16.msra.mxu0 0
  %2298 = vmatprep.subr.bf16.mxu0 0
  %2299 = vmatpush1.bf16.msra.mxu0 0
  %2300 = vmatprep.subr.bf16.mxu0 0
  %2301 = vmatpush1.bf16.msra.mxu0 0
  %2302 = vmatprep.subr.bf16.mxu0 0
  %2303 = vmatpush1.bf16.msra.mxu0 %v2278
  %2304 = vmatprep.subr.bf16.mxu0 0
  %2305 = vmatpush1.bf16.msra.mxu0 %v2277
  %2306 = vmatprep.subr.bf16.mxu0 0
  %2307 = vmatpush2.bf16.msra.mxu0 0
  %2308 = vmatprep.subr.bf16.mxu0 0
  %2309 = vmatpush2.bf16.msra.mxu0 0
  %2310 = vmatprep.subr.bf16.mxu0 0
  %2311 = vmatpush2.bf16.msra.mxu0 0
  %2312 = vmatprep.subr.bf16.mxu0 0
  %2313 = vmatpush2.bf16.msra.mxu0 0
  %2314 = vmatprep.subr.bf16.mxu0 0
  %2315 = vmatpush2.bf16.msra.mxu0 0
  %2316 = vmatprep.subr.bf16.mxu0 0
  %2317 = vmatpush2.bf16.msra.mxu0 0
  %2318 = vmatprep.subr.bf16.mxu0 0
  %2319 = vmatpush2.bf16.msra.mxu0 0
  %2320 = vmatprep.subr.bf16.mxu0 0
  %2321 = vmatpush2.bf16.msra.mxu0 0
  %2322 = vmatprep.mubr.bf16.mxu0 0
  %2323 = vmatmul.mubr.bf16.gmra.mxu0 %v2282
  %v2324 = vpop.f32.mrf.mxu0
  %v2325 = vadd.f32 %v2267, %v2324
  %v2326 = vpop.f32.mrf.mxu0
  %v2327 = vpop.f32.mrf.mxu0
  %v2328 = vadd.f32 %v2267, %v2327
  %v2329 = vpop.f32.mrf.mxu0
  %2330 = vmatprep.mubr.bf16.mxu0 0
  %2331 = vmatmul.mubr.bf16.gmra.mxu0 %v2285
  %v2332 = vpop.f32.mrf.mxu0
  %v2333 = vadd.f32 %v2267, %v2332
  %v2334 = vpop.f32.mrf.mxu0
  %v2335 = vpop.f32.mrf.mxu0
  %v2336 = vadd.f32 %v2267, %v2335
  %v2337 = vpop.f32.mrf.mxu0
  %2338 = vmatprep.mubr.bf16.mxu0 0
  %2339 = vmatmul.mubr.bf16.gmra.mxu0 %v2288
  %v2340 = vpop.f32.mrf.mxu0
  %v2341 = vadd.f32 %v2267, %v2340
  %v2342 = vpop.f32.mrf.mxu0
  %v2343 = vpop.f32.mrf.mxu0
  %v2344 = vpop.f32.mrf.mxu0
  %2345 = vdwg.mxu0
  %v2346 = vxor.u32 %v2325, 2147483648
  %v2347 = vxor.u32 %v2328, 2147483648
  %v2348 = vxor.u32 %v2333, 2147483648
  %v2349 = vxor.u32 %v2336, 2147483648
  %v2350 = vxor.u32 %v2341, 2147483648
  %v2351 = vmul.f32 %v2346, 1.442695
  %v2352 = vpow.pop %v2351
  %v2353 = vmul.f32 %v2347, 1.442695
  %v2354 = vpow.pop %v2353
  %v2355 = vmul.f32 %v2348, 1.442695
  %v2356 = vpow.pop %v2355
  %v2357 = vmul.f32 %v2349, 1.442695
  %v2358 = vpow.pop %v2357
  %v2359 = vmul.f32 %v2350, 1.442695
  %v2360 = vpow.pop %v2359
  %v2361 = vadd.f32 %v2352, 1.0
  %v2362 = vadd.f32 %v2354, 1.0
  %v2363 = vadd.f32 %v2356, 1.0
  %v2364 = vadd.f32 %v2358, 1.0
  %v2365 = vadd.f32 %v2360, 1.0
  %v2366 = vrcp.pop %v2361
  %v2367 = vmul.f32 1.0, %v2366
  %v2368 = vrcp.pop %v2362
  %v2369 = vmul.f32 1.0, %v2368
  %v2370 = vrcp.pop %v2363
  %v2371 = vmul.f32 1.0, %v2370
  %v2372 = vrcp.pop %v2364
  %v2373 = vmul.f32 1.0, %v2372
  %v2374 = vrcp.pop %v2365
  %v2375 = vmul.f32 1.0, %v2374
  %v2376 = vmul.f32 %v2325, %v2367
  %v2377 = vmul.f32 %v2328, %v2369
  %v2378 = vmul.f32 %v2333, %v2371
  %v2379 = vmul.f32 %v2336, %v2373
  %v2380 = vmul.f32 %v2341, %v2375
  %2386 = vrot.lane.b32.xlu0 %v2325, 64
  %v2387 = vpop.permute.xlu0 %2386
  %2388 = vrot.lane.b32.xlu0 %v2328, 64
  %v2389 = vpop.permute.xlu0 %2388
  %2390 = vrot.lane.b32.xlu0 %v2333, 64
  %v2391 = vpop.permute.xlu0 %2390
  %2392 = vrot.lane.b32.xlu0 %v2336, 64
  %v2393 = vpop.permute.xlu0 %2392
  %2394 = vrot.lane.b32.xlu0 %v2341, 64
  %v2395 = vpop.permute.xlu0 %2394
  %v2401 = vmul.f32 %v2376, %v2387
  %v2402 = vmul.f32 %v2377, %v2389
  %v2403 = vmul.f32 %v2378, %v2391
  %v2404 = vmul.f32 %v2379, %v2393
  %v2405 = vmul.f32 %v2380, %v2395
  %v2406 = vld [vmem:[%s15] sm:$0x1]
  %v2407 = vld [vmem:[%s16] sm:$0x1]
  %v2408 = vsel %vm1219, %v2401, 0.0
  %2409 = vadd.xlane.f32.xlu0 %v2408
  %v2410 = vpop.xlane.xlu0 %2409
  %v2411 = vsel %vm1219, %v2402, 0.0
  %2412 = vadd.xlane.f32.xlu0 %v2411
  %v2413 = vpop.xlane.xlu0 %2412
  %v2414 = vsel %vm1219, %v2403, 0.0
  %2415 = vadd.xlane.f32.xlu0 %v2414
  %v2416 = vpop.xlane.xlu0 %2415
  %v2417 = vsel %vm1219, %v2404, 0.0
  %2418 = vadd.xlane.f32.xlu0 %v2417
  %v2419 = vpop.xlane.xlu0 %2418
  %v2420 = vsel %vm1219, %v2405, 0.0
  %2421 = vadd.xlane.f32.xlu0 %v2420
  %v2422 = vpop.xlane.xlu0 %2421
  %v2423 = vrcp.pop 64.0
  %v2424 = vmul.f32 %v2410, %v2423
  %v2425 = vmul.f32 %v2413, %v2423
  %v2426 = vmul.f32 %v2416, %v2423
  %v2427 = vmul.f32 %v2419, %v2423
  %v2428 = vmul.f32 %v2422, %v2423
  %v2429 = vsub.f32 %v2401, %v2424
  %v2430 = vsub.f32 %v2402, %v2425
  %v2431 = vsub.f32 %v2403, %v2426
  %v2432 = vsub.f32 %v2404, %v2427
  %v2433 = vsub.f32 %v2405, %v2428
  %v2434 = vmul.f32 %v2429, %v2429
  %v2435 = vmul.f32 %v2430, %v2430
  %v2436 = vmul.f32 %v2431, %v2431
  %v2437 = vmul.f32 %v2432, %v2432
  %v2438 = vmul.f32 %v2433, %v2433
  %v2439 = vsel %vm1219, %v2434, 0.0
  %2440 = vadd.xlane.f32.xlu0 %v2439
  %v2441 = vpop.xlane.xlu0 %2440
  %v2442 = vsel %vm1219, %v2435, 0.0
  %2443 = vadd.xlane.f32.xlu0 %v2442
  %v2444 = vpop.xlane.xlu0 %2443
  %v2445 = vsel %vm1219, %v2436, 0.0
  %2446 = vadd.xlane.f32.xlu0 %v2445
  %v2447 = vpop.xlane.xlu0 %2446
  %v2448 = vsel %vm1219, %v2437, 0.0
  %2449 = vadd.xlane.f32.xlu0 %v2448
  %v2450 = vpop.xlane.xlu0 %2449
  %v2451 = vsel %vm1219, %v2438, 0.0
  %2452 = vadd.xlane.f32.xlu0 %v2451
  %v2453 = vpop.xlane.xlu0 %2452
  %v2454 = vmul.f32 %v2441, %v2423
  %v2455 = vmul.f32 %v2444, %v2423
  %v2456 = vmul.f32 %v2447, %v2423
  %v2457 = vmul.f32 %v2450, %v2423
  %v2458 = vmul.f32 %v2453, %v2423
  %v2459 = vadd.f32 %v2454, 1e-06
  %v2460 = vadd.f32 %v2455, 1e-06
  %v2461 = vadd.f32 %v2456, 1e-06
  %v2462 = vadd.f32 %v2457, 1e-06
  %v2463 = vadd.f32 %v2458, 1e-06
  %v2464 = vrsqrt.pop %v2459
  %v2465 = vrsqrt.pop %v2460
  %v2466 = vrsqrt.pop %v2461
  %v2467 = vrsqrt.pop %v2462
  %v2468 = vrsqrt.pop %v2463
  %v2469 = vmul.f32 %v2429, %v2464
  %v2470 = vmul.f32 %v2430, %v2465
  %v2471 = vmul.f32 %v2431, %v2466
  %v2472 = vmul.f32 %v2432, %v2467
  %v2473 = vmul.f32 %v2433, %v2468
  %v2475 = vlaneseq
  %v2476 = vshrl.u32 %v2475, 7
  %v2477 = vsub.s32 0, %v2476
  %v2478 = vrot.slane %v2406, %v2477
  %v2480 = vmul.f32 %v2469, %v2478
  %v2481 = vmul.f32 %v2470, %v2478
  %v2482 = vmul.f32 %v2471, %v2478
  %v2483 = vmul.f32 %v2472, %v2478
  %v2484 = vmul.f32 %v2473, %v2478
  %v2486 = vlaneseq
  %v2487 = vshrl.u32 %v2486, 7
  %v2488 = vsub.s32 0, %v2487
  %v2489 = vrot.slane %v2407, %v2488
  %v2491 = vadd.f32 %v2480, %v2489
  %v2492 = vadd.f32 %v2481, %v2489
  %v2493 = vadd.f32 %v2482, %v2489
  %v2494 = vadd.f32 %v2483, %v2489
  %v2495 = vadd.f32 %v2484, %v2489
  %v2496 = vpack.c.bf16 %v2492, %v2491
  %v2497 = vpack.c.bf16 %v2494, %v2493
  %v2498 = vpack.c.bf16 %v2495, %v2495
  %v2499 = vld [vmem:[%s17] sm:$0xf]
  %v2500 = vld [vmem:[%s17 + $0x4] sm:$0xf]
  %v2501 = vld [vmem:[%s17 + $0x8] sm:$0xf]
  %v2502 = vld [vmem:[%s17 + $0xc] sm:$0xf]
  %v2503 = vld [vmem:[%s17 + $0x10] sm:$0xf]
  %v2504 = vld [vmem:[%s17 + $0x14] sm:$0xf]
  %v2505 = vld [vmem:[%s17 + $0x18] sm:$0xf]
  %v2506 = vld [vmem:[%s17 + $0x1c] sm:$0xf]
  %v2515 = vunpack.c.l.b16 %v2499
  %v2516 = vunpack.c.l.b16 %v2500
  %v2517 = vunpack.c.l.b16 %v2501
  %v2518 = vunpack.c.l.b16 %v2502
  %v2519 = vunpack.c.l.b16 %v2503
  %v2520 = vunpack.c.l.b16 %v2504
  %v2521 = vunpack.c.l.b16 %v2505
  %v2522 = vunpack.c.l.b16 %v2506
  %v2523 = vpack.c.b16 %v2516, %v2515
  %v2524 = vpack.c.b16 %v2518, %v2517
  %v2525 = vpack.c.b16 %v2520, %v2519
  %v2526 = vpack.c.b16 %v2522, %v2521
  %v2532 = vsel %vm1219, %v2496, 0
  %v2535 = vsel %vm1219, %v2497, 0
  %v2538 = vsel %vm1219, %v2498, 0
  %2540 = vmatprep.subr.bf16.mxu0 0
  %2541 = vmatpush1.bf16.msra.mxu0 0
  %2542 = vmatprep.subr.bf16.mxu0 0
  %2543 = vmatpush1.bf16.msra.mxu0 0
  %2544 = vmatprep.subr.bf16.mxu0 0
  %2545 = vmatpush1.bf16.msra.mxu0 0
  %2546 = vmatprep.subr.bf16.mxu0 0
  %2547 = vmatpush1.bf16.msra.mxu0 0
  %2548 = vmatprep.subr.bf16.mxu0 0
  %2549 = vmatpush1.bf16.msra.mxu0 %v2526
  %2550 = vmatprep.subr.bf16.mxu0 0
  %2551 = vmatpush1.bf16.msra.mxu0 %v2525
  %2552 = vmatprep.subr.bf16.mxu0 0
  %2553 = vmatpush1.bf16.msra.mxu0 %v2524
  %2554 = vmatprep.subr.bf16.mxu0 0
  %2555 = vmatpush1.bf16.msra.mxu0 %v2523
  %2556 = vmatprep.subr.bf16.mxu0 0
  %2557 = vmatpush2.bf16.msra.mxu0 0
  %2558 = vmatprep.subr.bf16.mxu0 0
  %2559 = vmatpush2.bf16.msra.mxu0 0
  %2560 = vmatprep.subr.bf16.mxu0 0
  %2561 = vmatpush2.bf16.msra.mxu0 0
  %2562 = vmatprep.subr.bf16.mxu0 0
  %2563 = vmatpush2.bf16.msra.mxu0 0
  %2564 = vmatprep.subr.bf16.mxu0 0
  %2565 = vmatpush2.bf16.msra.mxu0 0
  %2566 = vmatprep.subr.bf16.mxu0 0
  %2567 = vmatpush2.bf16.msra.mxu0 0
  %2568 = vmatprep.subr.bf16.mxu0 0
  %2569 = vmatpush2.bf16.msra.mxu0 0
  %2570 = vmatprep.subr.bf16.mxu0 0
  %2571 = vmatpush2.bf16.msra.mxu0 0
  %2572 = vmatprep.mubr.bf16.mxu0 0
  %2573 = vmatmul.mubr.bf16.gmra.mxu0 %v2532
  %v2574 = vpop.f32.mrf.mxu0
  %v2575 = vadd.f32 0.0, %v2574
  %v2576 = vpop.f32.mrf.mxu0
  %v2577 = vpop.f32.mrf.mxu0
  %v2578 = vadd.f32 0.0, %v2577
  %v2579 = vpop.f32.mrf.mxu0
  %2580 = vmatprep.mubr.bf16.mxu0 0
  %2581 = vmatmul.mubr.bf16.gmra.mxu0 %v2535
  %v2582 = vpop.f32.mrf.mxu0
  %v2583 = vadd.f32 0.0, %v2582
  %v2584 = vpop.f32.mrf.mxu0
  %v2585 = vpop.f32.mrf.mxu0
  %v2586 = vadd.f32 0.0, %v2585
  %v2587 = vpop.f32.mrf.mxu0
  %2588 = vmatprep.mubr.bf16.mxu0 0
  %2589 = vmatmul.mubr.bf16.gmra.mxu0 %v2538
  %v2590 = vpop.f32.mrf.mxu0
  %v2591 = vadd.f32 0.0, %v2590
  %v2592 = vpop.f32.mrf.mxu0
  %v2593 = vpop.f32.mrf.mxu0
  %v2594 = vpop.f32.mrf.mxu0
  %2595 = vdwg.mxu0
  %v2596 = vadd.f32 %v2161, %v2575
  %v2597 = vadd.f32 %v2162, %v2578
  %v2598 = vadd.f32 %v2163, %v2583
  %v2599 = vadd.f32 %v2164, %v2586
  %v2600 = vadd.f32 %v2165, %v2591
  %v2601 = vld [vmem:[%s18] sm:$0x1]
  %v2603 = vlaneseq
  %v2604 = vshrl.u32 %v2603, 7
  %v2605 = vsub.s32 0, %v2604
  %v2606 = vrot.slane %v2601, %v2605
  %v2608 = vadd.f32 %v2596, %v2606
  %v2609 = vadd.f32 %v2597, %v2606
  %v2610 = vadd.f32 %v2598, %v2606
  %v2611 = vadd.f32 %v2599, %v2606
  %v2612 = vadd.f32 %v2600, %v2606
  %s2613 = scalar_lea.vmem %s5, 1
  %v2614 = vld [vmem:[%s2613] sm:$0x1]
  %s2615 = scalar_lea.vmem %s6, 1
  %v2616 = vld [vmem:[%s2615] sm:$0x1]
  %v2617 = vsel %vm1287, %v2608, 0.0
  %2618 = vadd.xlane.f32.xlu0 %v2617
  %v2619 = vpop.xlane.xlu0 %2618
  %v2620 = vsel %vm1287, %v2609, 0.0
  %2621 = vadd.xlane.f32.xlu0 %v2620
  %v2622 = vpop.xlane.xlu0 %2621
  %v2623 = vsel %vm1287, %v2610, 0.0
  %2624 = vadd.xlane.f32.xlu0 %v2623
  %v2625 = vpop.xlane.xlu0 %2624
  %v2626 = vsel %vm1287, %v2611, 0.0
  %2627 = vadd.xlane.f32.xlu0 %v2626
  %v2628 = vpop.xlane.xlu0 %2627
  %v2629 = vsel %vm1287, %v2612, 0.0
  %2630 = vadd.xlane.f32.xlu0 %v2629
  %v2631 = vpop.xlane.xlu0 %2630
  %v2632 = vmul.f32 %v2619, %v1303
  %v2633 = vmul.f32 %v2622, %v1303
  %v2634 = vmul.f32 %v2625, %v1303
  %v2635 = vmul.f32 %v2628, %v1303
  %v2636 = vmul.f32 %v2631, %v1303
  %v2637 = vsub.f32 %v2608, %v2632
  %v2638 = vsub.f32 %v2609, %v2633
  %v2639 = vsub.f32 %v2610, %v2634
  %v2640 = vsub.f32 %v2611, %v2635
  %v2641 = vsub.f32 %v2612, %v2636
  %v2642 = vmul.f32 %v2637, %v2637
  %v2643 = vmul.f32 %v2638, %v2638
  %v2644 = vmul.f32 %v2639, %v2639
  %v2645 = vmul.f32 %v2640, %v2640
  %v2646 = vmul.f32 %v2641, %v2641
  %v2647 = vsel %vm1287, %v2642, 0.0
  %2648 = vadd.xlane.f32.xlu0 %v2647
  %v2649 = vpop.xlane.xlu0 %2648
  %v2650 = vsel %vm1287, %v2643, 0.0
  %2651 = vadd.xlane.f32.xlu0 %v2650
  %v2652 = vpop.xlane.xlu0 %2651
  %v2653 = vsel %vm1287, %v2644, 0.0
  %2654 = vadd.xlane.f32.xlu0 %v2653
  %v2655 = vpop.xlane.xlu0 %2654
  %v2656 = vsel %vm1287, %v2645, 0.0
  %2657 = vadd.xlane.f32.xlu0 %v2656
  %v2658 = vpop.xlane.xlu0 %2657
  %v2659 = vsel %vm1287, %v2646, 0.0
  %2660 = vadd.xlane.f32.xlu0 %v2659
  %v2661 = vpop.xlane.xlu0 %2660
  %v2662 = vmul.f32 %v2649, %v1303
  %v2663 = vmul.f32 %v2652, %v1303
  %v2664 = vmul.f32 %v2655, %v1303
  %v2665 = vmul.f32 %v2658, %v1303
  %v2666 = vmul.f32 %v2661, %v1303
  %v2667 = vadd.f32 %v2662, 1e-06
  %v2668 = vadd.f32 %v2663, 1e-06
  %v2669 = vadd.f32 %v2664, 1e-06
  %v2670 = vadd.f32 %v2665, 1e-06
  %v2671 = vadd.f32 %v2666, 1e-06
  %v2672 = vrsqrt.pop %v2667
  %v2673 = vrsqrt.pop %v2668
  %v2674 = vrsqrt.pop %v2669
  %v2675 = vrsqrt.pop %v2670
  %v2676 = vrsqrt.pop %v2671
  %v2677 = vmul.f32 %v2637, %v2672
  %v2678 = vmul.f32 %v2638, %v2673
  %v2679 = vmul.f32 %v2639, %v2674
  %v2680 = vmul.f32 %v2640, %v2675
  %v2681 = vmul.f32 %v2641, %v2676
  %v2683 = vlaneseq
  %v2684 = vshrl.u32 %v2683, 7
  %v2685 = vsub.s32 0, %v2684
  %v2686 = vrot.slane %v2614, %v2685
  %v2688 = vmul.f32 %v2677, %v2686
  %v2689 = vmul.f32 %v2678, %v2686
  %v2690 = vmul.f32 %v2679, %v2686
  %v2691 = vmul.f32 %v2680, %v2686
  %v2692 = vmul.f32 %v2681, %v2686
  %v2694 = vlaneseq
  %v2695 = vshrl.u32 %v2694, 7
  %v2696 = vsub.s32 0, %v2695
  %v2697 = vrot.slane %v2616, %v2696
  %v2699 = vadd.f32 %v2688, %v2697
  %v2700 = vadd.f32 %v2689, %v2697
  %v2701 = vadd.f32 %v2690, %v2697
  %v2702 = vadd.f32 %v2691, %v2697
  %v2703 = vadd.f32 %v2692, %v2697
  %v2704 = vpack.c.bf16 %v2700, %v2699
  %v2705 = vpack.c.bf16 %v2702, %v2701
  %v2706 = vpack.c.bf16 %v2703, %v2703
  %s2707 = scalar_lea.vmem %s7, 32
  %v2708 = vld [vmem:[%s2707] sm:$0xff]
  %v2709 = vld [vmem:[%s2707 + $0x8] sm:$0xff]
  %v2710 = vld [vmem:[%s2707 + $0x10] sm:$0xff]
  %v2711 = vld [vmem:[%s2707 + $0x18] sm:$0xff]
  %s2712 = scalar_lea.vmem %s8, 2
  %v2713 = vld [vmem:[%s2712] sm:$0x3]
  %v2715 = vlaneseq
  %v2716 = vshrl.u32 %v2715, 7
  %v2717 = vsub.s32 0, %v2716
  %v2718 = vrot.slane %v2713, %v2717
  %v2719 = vlaneseq
  %v2720 = vshrl.u32 %v2719, 7
  %v2721 = vsub.s32 1, %v2720
  %v2722 = vrot.slane %v2713, %v2721
  %v2729 = vunpack.c.l.b16 %v2708
  %v2730 = vunpack.c.h.b16 %v2708
  %v2731 = vunpack.c.l.b16 %v2709
  %v2732 = vunpack.c.h.b16 %v2709
  %v2733 = vunpack.c.l.b16 %v2710
  %v2734 = vunpack.c.h.b16 %v2710
  %v2735 = vunpack.c.l.b16 %v2711
  %v2736 = vunpack.c.h.b16 %v2711
  %v2737 = vpack.c.b16 %v2731, %v2729
  %v2738 = vpack.c.b16 %v2732, %v2730
  %v2739 = vpack.c.b16 %v2735, %v2733
  %v2740 = vpack.c.b16 %v2736, %v2734
  %v2746 = vsel %vm1287, %v2704, 0
  %v2749 = vsel %vm1287, %v2705, 0
  %v2752 = vsel %vm1287, %v2706, 0
  %2754 = vmatprep.subr.bf16.mxu0 0
  %2755 = vmatpush1.bf16.msra.mxu0 0
  %2756 = vmatprep.subr.bf16.mxu0 0
  %2757 = vmatpush1.bf16.msra.mxu0 0
  %2758 = vmatprep.subr.bf16.mxu0 0
  %2759 = vmatpush1.bf16.msra.mxu0 0
  %2760 = vmatprep.subr.bf16.mxu0 0
  %2761 = vmatpush1.bf16.msra.mxu0 0
  %2762 = vmatprep.subr.bf16.mxu0 0
  %2763 = vmatpush1.bf16.msra.mxu0 0
  %2764 = vmatprep.subr.bf16.mxu0 0
  %2765 = vmatpush1.bf16.msra.mxu0 0
  %2766 = vmatprep.subr.bf16.mxu0 %v2740
  %2767 = vmatpush1.bf16.msra.mxu0 %v2739
  %2768 = vmatprep.subr.bf16.mxu0 %v2738
  %2769 = vmatpush1.bf16.msra.mxu0 %v2737
  %2770 = vmatprep.subr.bf16.mxu0 0
  %2771 = vmatpush2.bf16.msra.mxu0 0
  %2772 = vmatprep.subr.bf16.mxu0 0
  %2773 = vmatpush2.bf16.msra.mxu0 0
  %2774 = vmatprep.subr.bf16.mxu0 0
  %2775 = vmatpush2.bf16.msra.mxu0 0
  %2776 = vmatprep.subr.bf16.mxu0 0
  %2777 = vmatpush2.bf16.msra.mxu0 0
  %2778 = vmatprep.subr.bf16.mxu0 0
  %2779 = vmatpush2.bf16.msra.mxu0 0
  %2780 = vmatprep.subr.bf16.mxu0 0
  %2781 = vmatpush2.bf16.msra.mxu0 0
  %2782 = vmatprep.subr.bf16.mxu0 0
  %2783 = vmatpush2.bf16.msra.mxu0 0
  %2784 = vmatprep.subr.bf16.mxu0 0
  %2785 = vmatpush2.bf16.msra.mxu0 0
  %2786 = vmatprep.mubr.bf16.mxu0 0
  %2787 = vmatmul.mubr.bf16.gmra.mxu0 %v2746
  %v2788 = vpop.f32.mrf.mxu0
  %v2789 = vadd.f32 %v2718, %v2788
  %v2790 = vpop.f32.mrf.mxu0
  %v2791 = vadd.f32 %v2722, %v2790
  %v2792 = vpop.f32.mrf.mxu0
  %v2793 = vadd.f32 %v2718, %v2792
  %v2794 = vpop.f32.mrf.mxu0
  %v2795 = vadd.f32 %v2722, %v2794
  %2796 = vmatprep.mubr.bf16.mxu0 0
  %2797 = vmatmul.mubr.bf16.gmra.mxu0 %v2749
  %v2798 = vpop.f32.mrf.mxu0
  %v2799 = vadd.f32 %v2718, %v2798
  %v2800 = vpop.f32.mrf.mxu0
  %v2801 = vadd.f32 %v2722, %v2800
  %v2802 = vpop.f32.mrf.mxu0
  %v2803 = vadd.f32 %v2718, %v2802
  %v2804 = vpop.f32.mrf.mxu0
  %v2805 = vadd.f32 %v2722, %v2804
  %2806 = vmatprep.mubr.bf16.mxu0 0
  %2807 = vmatmul.mubr.bf16.gmra.mxu0 %v2752
  %v2808 = vpop.f32.mrf.mxu0
  %v2809 = vadd.f32 %v2718, %v2808
  %v2810 = vpop.f32.mrf.mxu0
  %v2811 = vadd.f32 %v2722, %v2810
  %v2812 = vpop.f32.mrf.mxu0
  %v2813 = vpop.f32.mrf.mxu0
  %2814 = vdwg.mxu0
  %v2815 = vmul.f32 %v2789, %v975
  %v2816 = vmul.f32 %v2793, %v980
  %v2817 = vmul.f32 %v2799, %v985
  %v2818 = vmul.f32 %v2803, %v990
  %v2819 = vmul.f32 %v2809, %v995
  %v2820 = vmul.f32 %v2789, %v1496
  %v2821 = vmul.f32 %v2793, %v1498
  %v2822 = vmul.f32 %v2799, %v1500
  %v2823 = vmul.f32 %v2803, %v1502
  %v2824 = vmul.f32 %v2809, %v1504
  %2830 = vrot.lane.b32.xlu0 %v2820, 96
  %v2831 = vpop.permute.xlu0 %2830
  %2832 = vrot.lane.b32.xlu0 %v2821, 96
  %v2833 = vpop.permute.xlu0 %2832
  %2834 = vrot.lane.b32.xlu0 %v2822, 96
  %v2835 = vpop.permute.xlu0 %2834
  %2836 = vrot.lane.b32.xlu0 %v2823, 96
  %v2837 = vpop.permute.xlu0 %2836
  %2838 = vrot.lane.b32.xlu0 %v2824, 96
  %v2839 = vpop.permute.xlu0 %2838
  %v2845 = vadd.f32 %v2815, %v2831
  %v2846 = vadd.f32 %v2816, %v2833
  %v2847 = vadd.f32 %v2817, %v2835
  %v2848 = vadd.f32 %v2818, %v2837
  %v2849 = vadd.f32 %v2819, %v2839
  %v2850 = vmul.f32 %v2789, %v1546
  %v2851 = vmul.f32 %v2793, %v1548
  %v2852 = vmul.f32 %v2799, %v1550
  %v2853 = vmul.f32 %v2803, %v1552
  %v2854 = vmul.f32 %v2809, %v1554
  %v2855 = vmul.f32 %v2789, %v1566
  %v2856 = vmul.f32 %v2793, %v1568
  %v2857 = vmul.f32 %v2799, %v1570
  %v2858 = vmul.f32 %v2803, %v1572
  %v2859 = vmul.f32 %v2809, %v1574
  %2865 = vrot.lane.b32.xlu0 %v2855, 96
  %v2866 = vpop.permute.xlu0 %2865
  %2867 = vrot.lane.b32.xlu0 %v2856, 96
  %v2868 = vpop.permute.xlu0 %2867
  %2869 = vrot.lane.b32.xlu0 %v2857, 96
  %v2870 = vpop.permute.xlu0 %2869
  %2871 = vrot.lane.b32.xlu0 %v2858, 96
  %v2872 = vpop.permute.xlu0 %2871
  %2873 = vrot.lane.b32.xlu0 %v2859, 96
  %v2874 = vpop.permute.xlu0 %2873
  %v2880 = vadd.f32 %v2850, %v2866
  %v2881 = vadd.f32 %v2851, %v2868
  %v2882 = vadd.f32 %v2852, %v2870
  %v2883 = vadd.f32 %v2853, %v2872
  %v2884 = vadd.f32 %v2854, %v2874
  %v2885 = vmul.f32 %v2880, %v1631
  %v2886 = vmul.f32 %v2881, %v1633
  %v2887 = vmul.f32 %v2882, %v1635
  %v2888 = vmul.f32 %v2883, %v1637
  %v2889 = vmul.f32 %v2884, %v1639
  %v2890 = vmul.f32 %v2880, %v1641
  %v2891 = vmul.f32 %v2881, %v1643
  %v2892 = vmul.f32 %v2882, %v1645
  %v2893 = vmul.f32 %v2883, %v1647
  %v2894 = vmul.f32 %v2884, %v1649
  %v2895 = vmul.f32 %v2880, %v1651
  %v2896 = vmul.f32 %v2881, %v1653
  %v2897 = vmul.f32 %v2882, %v1655
  %v2898 = vmul.f32 %v2883, %v1657
  %v2899 = vmul.f32 %v2884, %v1659
  %v2900 = vmul.f32 %v2880, %v1661
  %v2901 = vmul.f32 %v2881, %v1663
  %v2902 = vmul.f32 %v2882, %v1665
  %v2903 = vmul.f32 %v2883, %v1667
  %v2904 = vmul.f32 %v2884, %v1669
  %v2905 = vpack.c.bf16 %v2886, %v2885
  %v2906 = vpack.c.bf16 %v2888, %v2887
  %v2907 = vpack.c.bf16 %v2890, %v2889
  %v2908 = vpack.c.bf16 %v2892, %v2891
  %v2909 = vpack.c.bf16 %v2894, %v2893
  %v2910 = vpack.c.bf16 %v2896, %v2895
  %v2911 = vpack.c.bf16 %v2898, %v2897
  %v2912 = vpack.c.bf16 %v2900, %v2899
  %v2913 = vpack.c.bf16 %v2902, %v2901
  %v2914 = vpack.c.bf16 %v2904, %v2903
  %v2915 = vmul.f32 %v2791, %v547
  %v2916 = vmul.f32 %v2795, %v552
  %v2917 = vmul.f32 %v2801, %v557
  %v2918 = vmul.f32 %v2805, %v562
  %v2919 = vmul.f32 %v2811, %v567
  %v2920 = vmul.f32 %v2791, %v572
  %v2921 = vmul.f32 %v2795, %v577
  %v2922 = vmul.f32 %v2801, %v582
  %v2923 = vmul.f32 %v2805, %v587
  %v2924 = vmul.f32 %v2811, %v592
  %v2925 = vmul.f32 %v2791, %v597
  %v2926 = vmul.f32 %v2795, %v602
  %v2927 = vmul.f32 %v2801, %v607
  %v2928 = vmul.f32 %v2805, %v612
  %v2929 = vmul.f32 %v2811, %v617
  %v2930 = vmul.f32 %v2791, %v622
  %v2931 = vmul.f32 %v2795, %v627
  %v2932 = vmul.f32 %v2801, %v632
  %v2933 = vmul.f32 %v2805, %v637
  %v2934 = vmul.f32 %v2811, %v642
  %v2935 = vpack.c.bf16 %v2916, %v2915
  %v2936 = vpack.c.bf16 %v2918, %v2917
  %v2937 = vpack.c.bf16 %v2920, %v2919
  %v2938 = vpack.c.bf16 %v2922, %v2921
  %v2939 = vpack.c.bf16 %v2924, %v2923
  %v2940 = vpack.c.bf16 %v2926, %v2925
  %v2941 = vpack.c.bf16 %v2928, %v2927
  %v2942 = vpack.c.bf16 %v2930, %v2929
  %v2943 = vpack.c.bf16 %v2932, %v2931
  %v2944 = vpack.c.bf16 %v2934, %v2933
  %v2945 = vpack.c.bf16 %v2846, %v2845
  %v2946 = vpack.c.bf16 %v2848, %v2847
  %v2947 = vpack.c.bf16 %v2849, %v2849
  %2958 = vrot.lane.b32.xlu0 %v2905, 64
  %v2959 = vpop.permute.xlu0 %2958
  %2960 = vrot.lane.b32.xlu0 %v2906, 64
  %v2961 = vpop.permute.xlu0 %2960
  %2962 = vrot.lane.b32.xlu0 %v2907, 64
  %v2963 = vpop.permute.xlu0 %2962
  %2964 = vrot.lane.b32.xlu0 %v2908, 64
  %v2965 = vpop.permute.xlu0 %2964
  %2966 = vrot.lane.b32.xlu0 %v2909, 64
  %v2967 = vpop.permute.xlu0 %2966
  %2968 = vrot.lane.b32.xlu0 %v2910, 64
  %v2969 = vpop.permute.xlu0 %2968
  %2970 = vrot.lane.b32.xlu0 %v2911, 64
  %v2971 = vpop.permute.xlu0 %2970
  %2972 = vrot.lane.b32.xlu0 %v2912, 64
  %v2973 = vpop.permute.xlu0 %2972
  %2974 = vrot.lane.b32.xlu0 %v2913, 64
  %v2975 = vpop.permute.xlu0 %2974
  %2976 = vrot.lane.b32.xlu0 %v2914, 64
  %v2977 = vpop.permute.xlu0 %2976
  %v2979 = vsel %vm1287, %v2945, 0
  %v2982 = vsel %vm1287, %v2946, 0
  %v2985 = vsel %vm1287, %v2947, 0
  %v2988 = vsel %vm1287, %v2959, 0
  %v2991 = vsel %vm1287, %v2961, 0
  %v2994 = vsel %vm1287, %v2963, 0
  %v2997 = vsel %vm1287, %v2965, 0
  %v3000 = vsel %vm1287, %v2967, 0
  %v3003 = vsel %vm1287, %v2969, 0
  %v3006 = vsel %vm1287, %v2971, 0
  %v3009 = vsel %vm1287, %v2973, 0
  %v3012 = vsel %vm1287, %v2975, 0
  %v3015 = vsel %vm1287, %v2977, 0
  %3017 = vmatprep.subr.bf16.mxu0 0
  %3018 = vmatpush1.bf16.xpose.msra.mxu0 %v3009
  %3019 = vmatprep.subr.bf16.mxu0 0
  %3020 = vmatpush1.bf16.xpose.msra.mxu0 %v3006
  %3021 = vmatprep.subr.bf16.mxu0 0
  %3022 = vmatpush1.bf16.xpose.msra.mxu0 %v3003
  %3023 = vmatprep.subr.bf16.mxu0 0
  %3024 = vmatpush1.bf16.xpose.msra.mxu0 %v3000
  %3025 = vmatprep.subr.bf16.mxu0 0
  %3026 = vmatpush1.bf16.xpose.msra.mxu0 %v2997
  %3027 = vmatprep.subr.bf16.mxu0 0
  %3028 = vmatpush1.bf16.xpose.msra.mxu0 %v2994
  %3029 = vmatprep.subr.bf16.mxu0 0
  %3030 = vmatpush1.bf16.xpose.msra.mxu0 %v2991
  %3031 = vmatprep.subr.bf16.mxu0 0
  %3032 = vmatpush1.bf16.xpose.msra.mxu0 %v2988
  %3033 = vmatprep.subr.bf16.mxu0 0
  %3034 = vmatpush2.bf16.xpose.msra.mxu0 0
  %3035 = vmatprep.subr.bf16.mxu0 0
  %3036 = vmatpush2.bf16.xpose.msra.mxu0 0
  %3037 = vmatprep.subr.bf16.mxu0 0
  %3038 = vmatpush2.bf16.xpose.msra.mxu0 0
  %3039 = vmatprep.subr.bf16.mxu0 0
  %3040 = vmatpush2.bf16.xpose.msra.mxu0 0
  %3041 = vmatprep.subr.bf16.mxu0 0
  %3042 = vmatpush2.bf16.xpose.msra.mxu0 0
  %3043 = vmatprep.subr.bf16.mxu0 0
  %3044 = vmatpush2.bf16.xpose.msra.mxu0 0
  %3045 = vmatprep.subr.bf16.mxu0 0
  %3046 = vmatpush2.bf16.xpose.msra.mxu0 %v3015
  %3047 = vmatprep.subr.bf16.mxu0 0
  %3048 = vmatpush2.bf16.xpose.msra.mxu0 %v3012
  %3049 = vmatprep.mubr.bf16.mxu0 0
  %3050 = vmatmul.mubr.bf16.gmra.mxu0 %v2979
  %v3051 = vpop.f32.mrf.mxu0
  %v3052 = vadd.f32 %v287, %v3051
  %v3053 = vpop.f32.mrf.mxu0
  %v3054 = vadd.f32 %v260, %v3053
  %v3055 = vpop.f32.mrf.mxu0
  %v3056 = vadd.f32 %v288, %v3055
  %v3057 = vpop.f32.mrf.mxu0
  %v3058 = vadd.f32 %v262, %v3057
  %3059 = vmatprep.mubr.bf16.mxu0 0
  %3060 = vmatmul.mubr.bf16.gmra.mxu0 %v2982
  %v3061 = vpop.f32.mrf.mxu0
  %v3062 = vadd.f32 %v289, %v3061
  %v3063 = vpop.f32.mrf.mxu0
  %v3064 = vadd.f32 %v264, %v3063
  %v3065 = vpop.f32.mrf.mxu0
  %v3066 = vadd.f32 %v290, %v3065
  %v3067 = vpop.f32.mrf.mxu0
  %v3068 = vadd.f32 %v266, %v3067
  %3069 = vmatprep.mubr.bf16.mxu0 0
  %3070 = vmatmul.mubr.bf16.gmra.mxu0 %v2985
  %v3071 = vpop.f32.mrf.mxu0
  %v3072 = vadd.f32 %v291, %v3071
  %v3073 = vpop.f32.mrf.mxu0
  %v3074 = vadd.f32 %v268, %v3073
  %v3075 = vpop.f32.mrf.mxu0
  %v3076 = vpop.f32.mrf.mxu0
  %3077 = vdwg.mxu0
  %v3078 = vsel %vm1287, %v3054, -inf
  %v3079 = vmax.f32 %v3052, %v3078
  %3080 = vmax.xlane.f32.xlu0 %v3079
  %v3081 = vpop.xlane.xlu0 %3080
  %v3082 = vsel %vm1287, %v3058, -inf
  %v3083 = vmax.f32 %v3056, %v3082
  %3084 = vmax.xlane.f32.xlu0 %v3083
  %v3085 = vpop.xlane.xlu0 %3084
  %v3086 = vsel %vm1287, %v3064, -inf
  %v3087 = vmax.f32 %v3062, %v3086
  %3088 = vmax.xlane.f32.xlu0 %v3087
  %v3089 = vpop.xlane.xlu0 %3088
  %v3090 = vsel %vm1287, %v3068, -inf
  %v3091 = vmax.f32 %v3066, %v3090
  %3092 = vmax.xlane.f32.xlu0 %v3091
  %v3093 = vpop.xlane.xlu0 %3092
  %v3094 = vsel %vm1287, %v3074, -inf
  %v3095 = vmax.f32 %v3072, %v3094
  %3096 = vmax.xlane.f32.xlu0 %v3095
  %v3097 = vpop.xlane.xlu0 %3096
  %v3098 = vsub.f32 %v3052, %v3081
  %v3099 = vsub.f32 %v3054, %v3081
  %v3100 = vsub.f32 %v3056, %v3085
  %v3101 = vsub.f32 %v3058, %v3085
  %v3102 = vsub.f32 %v3062, %v3089
  %v3103 = vsub.f32 %v3064, %v3089
  %v3104 = vsub.f32 %v3066, %v3093
  %v3105 = vsub.f32 %v3068, %v3093
  %v3106 = vsub.f32 %v3072, %v3097
  %v3107 = vsub.f32 %v3074, %v3097
  %v3108 = vmul.f32 %v3098, 1.442695
  %v3109 = vpow.pop %v3108
  %v3110 = vmul.f32 %v3099, 1.442695
  %v3111 = vpow.pop %v3110
  %v3112 = vmul.f32 %v3100, 1.442695
  %v3113 = vpow.pop %v3112
  %v3114 = vmul.f32 %v3101, 1.442695
  %v3115 = vpow.pop %v3114
  %v3116 = vmul.f32 %v3102, 1.442695
  %v3117 = vpow.pop %v3116
  %v3118 = vmul.f32 %v3103, 1.442695
  %v3119 = vpow.pop %v3118
  %v3120 = vmul.f32 %v3104, 1.442695
  %v3121 = vpow.pop %v3120
  %v3122 = vmul.f32 %v3105, 1.442695
  %v3123 = vpow.pop %v3122
  %v3124 = vmul.f32 %v3106, 1.442695
  %v3125 = vpow.pop %v3124
  %v3126 = vmul.f32 %v3107, 1.442695
  %v3127 = vpow.pop %v3126
  %v3128 = vpack.c.bf16 %v3113, %v3109
  %v3129 = vpack.c.bf16 %v3115, %v3111
  %v3130 = vpack.c.bf16 %v3121, %v3117
  %v3131 = vpack.c.bf16 %v3123, %v3119
  %v3132 = vpack.c.bf16 %v3125, %v3125
  %v3133 = vpack.c.bf16 %v3127, %v3127
  %v3135 = vsel %vm1287, %v3129, 0
  %v3138 = vsel %vm1287, %v3131, 0
  %v3141 = vsel %vm1287, %v3133, 0
  %3143 = vmatprep.subr.bf16.mxu0 0
  %3144 = vmatpush1.bf16.msra.mxu0 %v2942
  %3145 = vmatprep.subr.bf16.mxu0 0
  %3146 = vmatpush1.bf16.msra.mxu0 %v2941
  %3147 = vmatprep.subr.bf16.mxu0 0
  %3148 = vmatpush1.bf16.msra.mxu0 %v2940
  %3149 = vmatprep.subr.bf16.mxu0 0
  %3150 = vmatpush1.bf16.msra.mxu0 %v2939
  %3151 = vmatprep.subr.bf16.mxu0 0
  %3152 = vmatpush1.bf16.msra.mxu0 %v2938
  %3153 = vmatprep.subr.bf16.mxu0 0
  %3154 = vmatpush1.bf16.msra.mxu0 %v2937
  %3155 = vmatprep.subr.bf16.mxu0 0
  %3156 = vmatpush1.bf16.msra.mxu0 %v2936
  %3157 = vmatprep.subr.bf16.mxu0 0
  %3158 = vmatpush1.bf16.msra.mxu0 %v2935
  %3159 = vmatprep.subr.bf16.mxu0 0
  %3160 = vmatpush2.bf16.msra.mxu0 0
  %3161 = vmatprep.subr.bf16.mxu0 0
  %3162 = vmatpush2.bf16.msra.mxu0 0
  %3163 = vmatprep.subr.bf16.mxu0 0
  %3164 = vmatpush2.bf16.msra.mxu0 0
  %3165 = vmatprep.subr.bf16.mxu0 0
  %3166 = vmatpush2.bf16.msra.mxu0 0
  %3167 = vmatprep.subr.bf16.mxu0 0
  %3168 = vmatpush2.bf16.msra.mxu0 0
  %3169 = vmatprep.subr.bf16.mxu0 0
  %3170 = vmatpush2.bf16.msra.mxu0 0
  %3171 = vmatprep.subr.bf16.mxu0 0
  %3172 = vmatpush2.bf16.msra.mxu0 %v2944
  %3173 = vmatprep.subr.bf16.mxu0 0
  %3174 = vmatpush2.bf16.msra.mxu0 %v2943
  %3175 = vmatprep.mubr.bf16.mxu0 %v3135
  %3176 = vmatmul.mubr.bf16.gmra.mxu0 %v3128
  %v3177 = vpop.f32.mrf.mxu0
  %v3178 = vadd.f32 0.0, %v3177
  %v3179 = vpop.f32.mrf.mxu0
  %v3180 = vpop.f32.mrf.mxu0
  %v3181 = vadd.f32 0.0, %v3180
  %v3182 = vpop.f32.mrf.mxu0
  %3183 = vmatprep.mubr.bf16.mxu0 %v3138
  %3184 = vmatmul.mubr.bf16.gmra.mxu0 %v3130
  %v3185 = vpop.f32.mrf.mxu0
  %v3186 = vadd.f32 0.0, %v3185
  %v3187 = vpop.f32.mrf.mxu0
  %v3188 = vpop.f32.mrf.mxu0
  %v3189 = vadd.f32 0.0, %v3188
  %v3190 = vpop.f32.mrf.mxu0
  %3191 = vmatprep.mubr.bf16.mxu0 %v3141
  %3192 = vmatmul.mubr.bf16.gmra.mxu0 %v3132
  %v3193 = vpop.f32.mrf.mxu0
  %v3194 = vadd.f32 0.0, %v3193
  %v3195 = vpop.f32.mrf.mxu0
  %v3196 = vpop.f32.mrf.mxu0
  %v3197 = vpop.f32.mrf.mxu0
  %3198 = vdwg.mxu0
  %3199 = vmatprep.subr.bf16.mxu0 0
  %3200 = vmatpush1.bf16.msra.mxu0 %v652
  %3201 = vmatprep.subr.bf16.mxu0 0
  %3202 = vmatpush1.bf16.msra.mxu0 %v651
  %3203 = vmatprep.subr.bf16.mxu0 0
  %3204 = vmatpush1.bf16.msra.mxu0 %v650
  %3205 = vmatprep.subr.bf16.mxu0 0
  %3206 = vmatpush1.bf16.msra.mxu0 %v649
  %3207 = vmatprep.subr.bf16.mxu0 0
  %3208 = vmatpush1.bf16.msra.mxu0 %v648
  %3209 = vmatprep.subr.bf16.mxu0 0
  %3210 = vmatpush1.bf16.msra.mxu0 %v647
  %3211 = vmatprep.subr.bf16.mxu0 0
  %3212 = vmatpush1.bf16.msra.mxu0 %v646
  %3213 = vmatprep.subr.bf16.mxu0 0
  %3214 = vmatpush1.bf16.msra.mxu0 %v645
  %3215 = vmatprep.subr.bf16.mxu0 0
  %3216 = vmatpush2.bf16.msra.mxu0 0
  %3217 = vmatprep.subr.bf16.mxu0 0
  %3218 = vmatpush2.bf16.msra.mxu0 0
  %3219 = vmatprep.subr.bf16.mxu0 0
  %3220 = vmatpush2.bf16.msra.mxu0 0
  %3221 = vmatprep.subr.bf16.mxu0 0
  %3222 = vmatpush2.bf16.msra.mxu0 0
  %3223 = vmatprep.subr.bf16.mxu0 0
  %3224 = vmatpush2.bf16.msra.mxu0 0
  %3225 = vmatprep.subr.bf16.mxu0 0
  %3226 = vmatpush2.bf16.msra.mxu0 0
  %3227 = vmatprep.subr.bf16.mxu0 0
  %3228 = vmatpush2.bf16.msra.mxu0 %v654
  %3229 = vmatprep.subr.bf16.mxu0 0
  %3230 = vmatpush2.bf16.msra.mxu0 %v653
  %3231 = vmatprep.mubr.bf16.mxu0 %v3135
  %3232 = vmatmul.mubr.bf16.gmra.mxu0 %v3128
  %v3233 = vpop.f32.mrf.mxu0
  %v3234 = vadd.f32 0.0, %v3233
  %v3235 = vpop.f32.mrf.mxu0
  %v3236 = vpop.f32.mrf.mxu0
  %v3237 = vadd.f32 0.0, %v3236
  %v3238 = vpop.f32.mrf.mxu0
  %3239 = vmatprep.mubr.bf16.mxu0 %v3138
  %3240 = vmatmul.mubr.bf16.gmra.mxu0 %v3130
  %v3241 = vpop.f32.mrf.mxu0
  %v3242 = vadd.f32 0.0, %v3241
  %v3243 = vpop.f32.mrf.mxu0
  %v3244 = vpop.f32.mrf.mxu0
  %v3245 = vadd.f32 0.0, %v3244
  %v3246 = vpop.f32.mrf.mxu0
  %3247 = vmatprep.mubr.bf16.mxu0 %v3141
  %3248 = vmatmul.mubr.bf16.gmra.mxu0 %v3132
  %v3249 = vpop.f32.mrf.mxu0
  %v3250 = vadd.f32 0.0, %v3249
  %v3251 = vpop.f32.mrf.mxu0
  %v3252 = vpop.f32.mrf.mxu0
  %v3253 = vpop.f32.mrf.mxu0
  %3254 = vdwg.mxu0
  %v3255 = vrcp.pop %v3234
  %v3256 = vrcp.pop %v3237
  %v3257 = vrcp.pop %v3242
  %v3258 = vrcp.pop %v3245
  %v3259 = vrcp.pop %v3250
  %v3260 = vmul.f32 %v3178, %v3255
  %v3261 = vmul.f32 %v3181, %v3256
  %v3262 = vmul.f32 %v3186, %v3257
  %v3263 = vmul.f32 %v3189, %v3258
  %v3264 = vmul.f32 %v3194, %v3259
  %v3265 = vpack.c.bf16 %v3261, %v3260
  %v3266 = vpack.c.bf16 %v3263, %v3262
  %v3267 = vpack.c.bf16 %v3264, %v3264
  %s3268 = scalar_lea.vmem %s9, 16
  %v3269 = vld [vmem:[%s3268] sm:$0xf]
  %v3270 = vld [vmem:[%s3268 + $0x4] sm:$0xf]
  %v3271 = vld [vmem:[%s3268 + $0x8] sm:$0xf]
  %v3272 = vld [vmem:[%s3268 + $0xc] sm:$0xf]
  %s3273 = scalar_lea.vmem %s10, 1
  %v3274 = vld [vmem:[%s3273] sm:$0x1]
  %v3276 = vlaneseq
  %v3277 = vshrl.u32 %v3276, 7
  %v3278 = vsub.s32 0, %v3277
  %v3279 = vrot.slane %v3274, %v3278
  %v3285 = vunpack.c.l.b16 %v3269
  %v3286 = vunpack.c.l.b16 %v3270
  %v3287 = vunpack.c.l.b16 %v3271
  %v3288 = vunpack.c.l.b16 %v3272
  %v3289 = vpack.c.b16 %v3286, %v3285
  %v3290 = vpack.c.b16 %v3288, %v3287
  %v3294 = vsel %vm1287, %v3265, 0
  %v3297 = vsel %vm1287, %v3266, 0
  %v3300 = vsel %vm1287, %v3267, 0
  %3302 = vmatprep.subr.bf16.mxu0 0
  %3303 = vmatpush1.bf16.msra.mxu0 0
  %3304 = vmatprep.subr.bf16.mxu0 0
  %3305 = vmatpush1.bf16.msra.mxu0 0
  %3306 = vmatprep.subr.bf16.mxu0 0
  %3307 = vmatpush1.bf16.msra.mxu0 0
  %3308 = vmatprep.subr.bf16.mxu0 0
  %3309 = vmatpush1.bf16.msra.mxu0 0
  %3310 = vmatprep.subr.bf16.mxu0 0
  %3311 = vmatpush1.bf16.msra.mxu0 0
  %3312 = vmatprep.subr.bf16.mxu0 0
  %3313 = vmatpush1.bf16.msra.mxu0 0
  %3314 = vmatprep.subr.bf16.mxu0 0
  %3315 = vmatpush1.bf16.msra.mxu0 %v3290
  %3316 = vmatprep.subr.bf16.mxu0 0
  %3317 = vmatpush1.bf16.msra.mxu0 %v3289
  %3318 = vmatprep.subr.bf16.mxu0 0
  %3319 = vmatpush2.bf16.msra.mxu0 0
  %3320 = vmatprep.subr.bf16.mxu0 0
  %3321 = vmatpush2.bf16.msra.mxu0 0
  %3322 = vmatprep.subr.bf16.mxu0 0
  %3323 = vmatpush2.bf16.msra.mxu0 0
  %3324 = vmatprep.subr.bf16.mxu0 0
  %3325 = vmatpush2.bf16.msra.mxu0 0
  %3326 = vmatprep.subr.bf16.mxu0 0
  %3327 = vmatpush2.bf16.msra.mxu0 0
  %3328 = vmatprep.subr.bf16.mxu0 0
  %3329 = vmatpush2.bf16.msra.mxu0 0
  %3330 = vmatprep.subr.bf16.mxu0 0
  %3331 = vmatpush2.bf16.msra.mxu0 0
  %3332 = vmatprep.subr.bf16.mxu0 0
  %3333 = vmatpush2.bf16.msra.mxu0 0
  %3334 = vmatprep.mubr.bf16.mxu0 0
  %3335 = vmatmul.mubr.bf16.gmra.mxu0 %v3294
  %v3336 = vpop.f32.mrf.mxu0
  %v3337 = vadd.f32 %v3279, %v3336
  %v3338 = vpop.f32.mrf.mxu0
  %v3339 = vpop.f32.mrf.mxu0
  %v3340 = vadd.f32 %v3279, %v3339
  %v3341 = vpop.f32.mrf.mxu0
  %3342 = vmatprep.mubr.bf16.mxu0 0
  %3343 = vmatmul.mubr.bf16.gmra.mxu0 %v3297
  %v3344 = vpop.f32.mrf.mxu0
  %v3345 = vadd.f32 %v3279, %v3344
  %v3346 = vpop.f32.mrf.mxu0
  %v3347 = vpop.f32.mrf.mxu0
  %v3348 = vadd.f32 %v3279, %v3347
  %v3349 = vpop.f32.mrf.mxu0
  %3350 = vmatprep.mubr.bf16.mxu0 0
  %3351 = vmatmul.mubr.bf16.gmra.mxu0 %v3300
  %v3352 = vpop.f32.mrf.mxu0
  %v3353 = vadd.f32 %v3279, %v3352
  %v3354 = vpop.f32.mrf.mxu0
  %v3355 = vpop.f32.mrf.mxu0
  %v3356 = vpop.f32.mrf.mxu0
  %3357 = vdwg.mxu0
  %v3358 = vadd.f32 %v2608, %v3337
  %v3359 = vadd.f32 %v2609, %v3340
  %v3360 = vadd.f32 %v2610, %v3345
  %v3361 = vadd.f32 %v2611, %v3348
  %v3362 = vadd.f32 %v2612, %v3353
  %s3363 = scalar_lea.vmem %s11, 1
  %v3364 = vld [vmem:[%s3363] sm:$0x1]
  %s3365 = scalar_lea.vmem %s12, 1
  %v3366 = vld [vmem:[%s3365] sm:$0x1]
  %v3367 = vsel %vm1287, %v3358, 0.0
  %3368 = vadd.xlane.f32.xlu0 %v3367
  %v3369 = vpop.xlane.xlu0 %3368
  %v3370 = vsel %vm1287, %v3359, 0.0
  %3371 = vadd.xlane.f32.xlu0 %v3370
  %v3372 = vpop.xlane.xlu0 %3371
  %v3373 = vsel %vm1287, %v3360, 0.0
  %3374 = vadd.xlane.f32.xlu0 %v3373
  %v3375 = vpop.xlane.xlu0 %3374
  %v3376 = vsel %vm1287, %v3361, 0.0
  %3377 = vadd.xlane.f32.xlu0 %v3376
  %v3378 = vpop.xlane.xlu0 %3377
  %v3379 = vsel %vm1287, %v3362, 0.0
  %3380 = vadd.xlane.f32.xlu0 %v3379
  %v3381 = vpop.xlane.xlu0 %3380
  %v3382 = vmul.f32 %v3369, %v1303
  %v3383 = vmul.f32 %v3372, %v1303
  %v3384 = vmul.f32 %v3375, %v1303
  %v3385 = vmul.f32 %v3378, %v1303
  %v3386 = vmul.f32 %v3381, %v1303
  %v3387 = vsub.f32 %v3358, %v3382
  %v3388 = vsub.f32 %v3359, %v3383
  %v3389 = vsub.f32 %v3360, %v3384
  %v3390 = vsub.f32 %v3361, %v3385
  %v3391 = vsub.f32 %v3362, %v3386
  %v3392 = vmul.f32 %v3387, %v3387
  %v3393 = vmul.f32 %v3388, %v3388
  %v3394 = vmul.f32 %v3389, %v3389
  %v3395 = vmul.f32 %v3390, %v3390
  %v3396 = vmul.f32 %v3391, %v3391
  %v3397 = vsel %vm1287, %v3392, 0.0
  %3398 = vadd.xlane.f32.xlu0 %v3397
  %v3399 = vpop.xlane.xlu0 %3398
  %v3400 = vsel %vm1287, %v3393, 0.0
  %3401 = vadd.xlane.f32.xlu0 %v3400
  %v3402 = vpop.xlane.xlu0 %3401
  %v3403 = vsel %vm1287, %v3394, 0.0
  %3404 = vadd.xlane.f32.xlu0 %v3403
  %v3405 = vpop.xlane.xlu0 %3404
  %v3406 = vsel %vm1287, %v3395, 0.0
  %3407 = vadd.xlane.f32.xlu0 %v3406
  %v3408 = vpop.xlane.xlu0 %3407
  %v3409 = vsel %vm1287, %v3396, 0.0
  %3410 = vadd.xlane.f32.xlu0 %v3409
  %v3411 = vpop.xlane.xlu0 %3410
  %v3412 = vmul.f32 %v3399, %v1303
  %v3413 = vmul.f32 %v3402, %v1303
  %v3414 = vmul.f32 %v3405, %v1303
  %v3415 = vmul.f32 %v3408, %v1303
  %v3416 = vmul.f32 %v3411, %v1303
  %v3417 = vadd.f32 %v3412, 1e-06
  %v3418 = vadd.f32 %v3413, 1e-06
  %v3419 = vadd.f32 %v3414, 1e-06
  %v3420 = vadd.f32 %v3415, 1e-06
  %v3421 = vadd.f32 %v3416, 1e-06
  %v3422 = vrsqrt.pop %v3417
  %v3423 = vrsqrt.pop %v3418
  %v3424 = vrsqrt.pop %v3419
  %v3425 = vrsqrt.pop %v3420
  %v3426 = vrsqrt.pop %v3421
  %v3427 = vmul.f32 %v3387, %v3422
  %v3428 = vmul.f32 %v3388, %v3423
  %v3429 = vmul.f32 %v3389, %v3424
  %v3430 = vmul.f32 %v3390, %v3425
  %v3431 = vmul.f32 %v3391, %v3426
  %v3433 = vlaneseq
  %v3434 = vshrl.u32 %v3433, 7
  %v3435 = vsub.s32 0, %v3434
  %v3436 = vrot.slane %v3364, %v3435
  %v3438 = vmul.f32 %v3427, %v3436
  %v3439 = vmul.f32 %v3428, %v3436
  %v3440 = vmul.f32 %v3429, %v3436
  %v3441 = vmul.f32 %v3430, %v3436
  %v3442 = vmul.f32 %v3431, %v3436
  %v3444 = vlaneseq
  %v3445 = vshrl.u32 %v3444, 7
  %v3446 = vsub.s32 0, %v3445
  %v3447 = vrot.slane %v3366, %v3446
  %v3449 = vadd.f32 %v3438, %v3447
  %v3450 = vadd.f32 %v3439, %v3447
  %v3451 = vadd.f32 %v3440, %v3447
  %v3452 = vadd.f32 %v3441, %v3447
  %v3453 = vadd.f32 %v3442, %v3447
  %v3454 = vpack.c.bf16 %v3450, %v3449
  %v3455 = vpack.c.bf16 %v3452, %v3451
  %v3456 = vpack.c.bf16 %v3453, %v3453
  %s3457 = scalar_lea.vmem %s13, 16
  %v3458 = vld [vmem:[%s3457] sm:$0xf]
  %v3459 = vld [vmem:[%s3457 + $0x4] sm:$0xf]
  %v3460 = vld [vmem:[%s3457 + $0x8] sm:$0xf]
  %v3461 = vld [vmem:[%s3457 + $0xc] sm:$0xf]
  %s3462 = scalar_lea.vmem %s14, 1
  %v3463 = vld [vmem:[%s3462] sm:$0x1]
  %v3465 = vlaneseq
  %v3466 = vshrl.u32 %v3465, 7
  %v3467 = vsub.s32 0, %v3466
  %v3468 = vrot.slane %v3463, %v3467
  %v3474 = vunpack.c.l.b16 %v3458
  %v3475 = vunpack.c.l.b16 %v3459
  %v3476 = vunpack.c.l.b16 %v3460
  %v3477 = vunpack.c.l.b16 %v3461
  %v3478 = vpack.c.b16 %v3475, %v3474
  %v3479 = vpack.c.b16 %v3477, %v3476
  %v3483 = vsel %vm1287, %v3454, 0
  %v3486 = vsel %vm1287, %v3455, 0
  %v3489 = vsel %vm1287, %v3456, 0
  %3491 = vmatprep.subr.bf16.mxu0 0
  %3492 = vmatpush1.bf16.msra.mxu0 0
  %3493 = vmatprep.subr.bf16.mxu0 0
  %3494 = vmatpush1.bf16.msra.mxu0 0
  %3495 = vmatprep.subr.bf16.mxu0 0
  %3496 = vmatpush1.bf16.msra.mxu0 0
  %3497 = vmatprep.subr.bf16.mxu0 0
  %3498 = vmatpush1.bf16.msra.mxu0 0
  %3499 = vmatprep.subr.bf16.mxu0 0
  %3500 = vmatpush1.bf16.msra.mxu0 0
  %3501 = vmatprep.subr.bf16.mxu0 0
  %3502 = vmatpush1.bf16.msra.mxu0 0
  %3503 = vmatprep.subr.bf16.mxu0 0
  %3504 = vmatpush1.bf16.msra.mxu0 %v3479
  %3505 = vmatprep.subr.bf16.mxu0 0
  %3506 = vmatpush1.bf16.msra.mxu0 %v3478
  %3507 = vmatprep.subr.bf16.mxu0 0
  %3508 = vmatpush2.bf16.msra.mxu0 0
  %3509 = vmatprep.subr.bf16.mxu0 0
  %3510 = vmatpush2.bf16.msra.mxu0 0
  %3511 = vmatprep.subr.bf16.mxu0 0
  %3512 = vmatpush2.bf16.msra.mxu0 0
  %3513 = vmatprep.subr.bf16.mxu0 0
  %3514 = vmatpush2.bf16.msra.mxu0 0
  %3515 = vmatprep.subr.bf16.mxu0 0
  %3516 = vmatpush2.bf16.msra.mxu0 0
  %3517 = vmatprep.subr.bf16.mxu0 0
  %3518 = vmatpush2.bf16.msra.mxu0 0
  %3519 = vmatprep.subr.bf16.mxu0 0
  %3520 = vmatpush2.bf16.msra.mxu0 0
  %3521 = vmatprep.subr.bf16.mxu0 0
  %3522 = vmatpush2.bf16.msra.mxu0 0
  %3523 = vmatprep.mubr.bf16.mxu0 0
  %3524 = vmatmul.mubr.bf16.gmra.mxu0 %v3483
  %v3525 = vpop.f32.mrf.mxu0
  %v3526 = vadd.f32 %v3468, %v3525
  %v3527 = vpop.f32.mrf.mxu0
  %v3528 = vpop.f32.mrf.mxu0
  %v3529 = vadd.f32 %v3468, %v3528
  %v3530 = vpop.f32.mrf.mxu0
  %3531 = vmatprep.mubr.bf16.mxu0 0
  %3532 = vmatmul.mubr.bf16.gmra.mxu0 %v3486
  %v3533 = vpop.f32.mrf.mxu0
  %v3534 = vadd.f32 %v3468, %v3533
  %v3535 = vpop.f32.mrf.mxu0
  %v3536 = vpop.f32.mrf.mxu0
  %v3537 = vadd.f32 %v3468, %v3536
  %v3538 = vpop.f32.mrf.mxu0
  %3539 = vmatprep.mubr.bf16.mxu0 0
  %3540 = vmatmul.mubr.bf16.gmra.mxu0 %v3489
  %v3541 = vpop.f32.mrf.mxu0
  %v3542 = vadd.f32 %v3468, %v3541
  %v3543 = vpop.f32.mrf.mxu0
  %v3544 = vpop.f32.mrf.mxu0
  %v3545 = vpop.f32.mrf.mxu0
  %3546 = vdwg.mxu0
  %v3547 = vxor.u32 %v3526, 2147483648
  %v3548 = vxor.u32 %v3529, 2147483648
  %v3549 = vxor.u32 %v3534, 2147483648
  %v3550 = vxor.u32 %v3537, 2147483648
  %v3551 = vxor.u32 %v3542, 2147483648
  %v3552 = vmul.f32 %v3547, 1.442695
  %v3553 = vpow.pop %v3552
  %v3554 = vmul.f32 %v3548, 1.442695
  %v3555 = vpow.pop %v3554
  %v3556 = vmul.f32 %v3549, 1.442695
  %v3557 = vpow.pop %v3556
  %v3558 = vmul.f32 %v3550, 1.442695
  %v3559 = vpow.pop %v3558
  %v3560 = vmul.f32 %v3551, 1.442695
  %v3561 = vpow.pop %v3560
  %v3562 = vadd.f32 %v3553, 1.0
  %v3563 = vadd.f32 %v3555, 1.0
  %v3564 = vadd.f32 %v3557, 1.0
  %v3565 = vadd.f32 %v3559, 1.0
  %v3566 = vadd.f32 %v3561, 1.0
  %v3567 = vrcp.pop %v3562
  %v3568 = vmul.f32 1.0, %v3567
  %v3569 = vrcp.pop %v3563
  %v3570 = vmul.f32 1.0, %v3569
  %v3571 = vrcp.pop %v3564
  %v3572 = vmul.f32 1.0, %v3571
  %v3573 = vrcp.pop %v3565
  %v3574 = vmul.f32 1.0, %v3573
  %v3575 = vrcp.pop %v3566
  %v3576 = vmul.f32 1.0, %v3575
  %v3577 = vmul.f32 %v3526, %v3568
  %v3578 = vmul.f32 %v3529, %v3570
  %v3579 = vmul.f32 %v3534, %v3572
  %v3580 = vmul.f32 %v3537, %v3574
  %v3581 = vmul.f32 %v3542, %v3576
  %3587 = vrot.lane.b32.xlu0 %v3526, 64
  %v3588 = vpop.permute.xlu0 %3587
  %3589 = vrot.lane.b32.xlu0 %v3529, 64
  %v3590 = vpop.permute.xlu0 %3589
  %3591 = vrot.lane.b32.xlu0 %v3534, 64
  %v3592 = vpop.permute.xlu0 %3591
  %3593 = vrot.lane.b32.xlu0 %v3537, 64
  %v3594 = vpop.permute.xlu0 %3593
  %3595 = vrot.lane.b32.xlu0 %v3542, 64
  %v3596 = vpop.permute.xlu0 %3595
  %v3602 = vmul.f32 %v3577, %v3588
  %v3603 = vmul.f32 %v3578, %v3590
  %v3604 = vmul.f32 %v3579, %v3592
  %v3605 = vmul.f32 %v3580, %v3594
  %v3606 = vmul.f32 %v3581, %v3596
  %s3607 = scalar_lea.vmem %s15, 1
  %v3608 = vld [vmem:[%s3607] sm:$0x1]
  %s3609 = scalar_lea.vmem %s16, 1
  %v3610 = vld [vmem:[%s3609] sm:$0x1]
  %v3611 = vsel %vm1219, %v3602, 0.0
  %3612 = vadd.xlane.f32.xlu0 %v3611
  %v3613 = vpop.xlane.xlu0 %3612
  %v3614 = vsel %vm1219, %v3603, 0.0
  %3615 = vadd.xlane.f32.xlu0 %v3614
  %v3616 = vpop.xlane.xlu0 %3615
  %v3617 = vsel %vm1219, %v3604, 0.0
  %3618 = vadd.xlane.f32.xlu0 %v3617
  %v3619 = vpop.xlane.xlu0 %3618
  %v3620 = vsel %vm1219, %v3605, 0.0
  %3621 = vadd.xlane.f32.xlu0 %v3620
  %v3622 = vpop.xlane.xlu0 %3621
  %v3623 = vsel %vm1219, %v3606, 0.0
  %3624 = vadd.xlane.f32.xlu0 %v3623
  %v3625 = vpop.xlane.xlu0 %3624
  %v3626 = vmul.f32 %v3613, %v2423
  %v3627 = vmul.f32 %v3616, %v2423
  %v3628 = vmul.f32 %v3619, %v2423
  %v3629 = vmul.f32 %v3622, %v2423
  %v3630 = vmul.f32 %v3625, %v2423
  %v3631 = vsub.f32 %v3602, %v3626
  %v3632 = vsub.f32 %v3603, %v3627
  %v3633 = vsub.f32 %v3604, %v3628
  %v3634 = vsub.f32 %v3605, %v3629
  %v3635 = vsub.f32 %v3606, %v3630
  %v3636 = vmul.f32 %v3631, %v3631
  %v3637 = vmul.f32 %v3632, %v3632
  %v3638 = vmul.f32 %v3633, %v3633
  %v3639 = vmul.f32 %v3634, %v3634
  %v3640 = vmul.f32 %v3635, %v3635
  %v3641 = vsel %vm1219, %v3636, 0.0
  %3642 = vadd.xlane.f32.xlu0 %v3641
  %v3643 = vpop.xlane.xlu0 %3642
  %v3644 = vsel %vm1219, %v3637, 0.0
  %3645 = vadd.xlane.f32.xlu0 %v3644
  %v3646 = vpop.xlane.xlu0 %3645
  %v3647 = vsel %vm1219, %v3638, 0.0
  %3648 = vadd.xlane.f32.xlu0 %v3647
  %v3649 = vpop.xlane.xlu0 %3648
  %v3650 = vsel %vm1219, %v3639, 0.0
  %3651 = vadd.xlane.f32.xlu0 %v3650
  %v3652 = vpop.xlane.xlu0 %3651
  %v3653 = vsel %vm1219, %v3640, 0.0
  %3654 = vadd.xlane.f32.xlu0 %v3653
  %v3655 = vpop.xlane.xlu0 %3654
  %v3656 = vmul.f32 %v3643, %v2423
  %v3657 = vmul.f32 %v3646, %v2423
  %v3658 = vmul.f32 %v3649, %v2423
  %v3659 = vmul.f32 %v3652, %v2423
  %v3660 = vmul.f32 %v3655, %v2423
  %v3661 = vadd.f32 %v3656, 1e-06
  %v3662 = vadd.f32 %v3657, 1e-06
  %v3663 = vadd.f32 %v3658, 1e-06
  %v3664 = vadd.f32 %v3659, 1e-06
  %v3665 = vadd.f32 %v3660, 1e-06
  %v3666 = vrsqrt.pop %v3661
  %v3667 = vrsqrt.pop %v3662
  %v3668 = vrsqrt.pop %v3663
  %v3669 = vrsqrt.pop %v3664
  %v3670 = vrsqrt.pop %v3665
  %v3671 = vmul.f32 %v3631, %v3666
  %v3672 = vmul.f32 %v3632, %v3667
  %v3673 = vmul.f32 %v3633, %v3668
  %v3674 = vmul.f32 %v3634, %v3669
  %v3675 = vmul.f32 %v3635, %v3670
  %v3677 = vlaneseq
  %v3678 = vshrl.u32 %v3677, 7
  %v3679 = vsub.s32 0, %v3678
  %v3680 = vrot.slane %v3608, %v3679
  %v3682 = vmul.f32 %v3671, %v3680
  %v3683 = vmul.f32 %v3672, %v3680
  %v3684 = vmul.f32 %v3673, %v3680
  %v3685 = vmul.f32 %v3674, %v3680
  %v3686 = vmul.f32 %v3675, %v3680
  %v3688 = vlaneseq
  %v3689 = vshrl.u32 %v3688, 7
  %v3690 = vsub.s32 0, %v3689
  %v3691 = vrot.slane %v3610, %v3690
  %v3693 = vadd.f32 %v3682, %v3691
  %v3694 = vadd.f32 %v3683, %v3691
  %v3695 = vadd.f32 %v3684, %v3691
  %v3696 = vadd.f32 %v3685, %v3691
  %v3697 = vadd.f32 %v3686, %v3691
  %v3698 = vpack.c.bf16 %v3694, %v3693
  %v3699 = vpack.c.bf16 %v3696, %v3695
  %v3700 = vpack.c.bf16 %v3697, %v3697
  %s3701 = scalar_lea.vmem %s17, 32
  %v3702 = vld [vmem:[%s3701] sm:$0xf]
  %v3703 = vld [vmem:[%s3701 + $0x4] sm:$0xf]
  %v3704 = vld [vmem:[%s3701 + $0x8] sm:$0xf]
  %v3705 = vld [vmem:[%s3701 + $0xc] sm:$0xf]
  %v3706 = vld [vmem:[%s3701 + $0x10] sm:$0xf]
  %v3707 = vld [vmem:[%s3701 + $0x14] sm:$0xf]
  %v3708 = vld [vmem:[%s3701 + $0x18] sm:$0xf]
  %v3709 = vld [vmem:[%s3701 + $0x1c] sm:$0xf]
  %v3718 = vunpack.c.l.b16 %v3702
  %v3719 = vunpack.c.l.b16 %v3703
  %v3720 = vunpack.c.l.b16 %v3704
  %v3721 = vunpack.c.l.b16 %v3705
  %v3722 = vunpack.c.l.b16 %v3706
  %v3723 = vunpack.c.l.b16 %v3707
  %v3724 = vunpack.c.l.b16 %v3708
  %v3725 = vunpack.c.l.b16 %v3709
  %v3726 = vpack.c.b16 %v3719, %v3718
  %v3727 = vpack.c.b16 %v3721, %v3720
  %v3728 = vpack.c.b16 %v3723, %v3722
  %v3729 = vpack.c.b16 %v3725, %v3724
  %v3735 = vsel %vm1219, %v3698, 0
  %v3738 = vsel %vm1219, %v3699, 0
  %v3741 = vsel %vm1219, %v3700, 0
  %3743 = vmatprep.subr.bf16.mxu0 0
  %3744 = vmatpush1.bf16.msra.mxu0 0
  %3745 = vmatprep.subr.bf16.mxu0 0
  %3746 = vmatpush1.bf16.msra.mxu0 0
  %3747 = vmatprep.subr.bf16.mxu0 0
  %3748 = vmatpush1.bf16.msra.mxu0 0
  %3749 = vmatprep.subr.bf16.mxu0 0
  %3750 = vmatpush1.bf16.msra.mxu0 0
  %3751 = vmatprep.subr.bf16.mxu0 0
  %3752 = vmatpush1.bf16.msra.mxu0 %v3729
  %3753 = vmatprep.subr.bf16.mxu0 0
  %3754 = vmatpush1.bf16.msra.mxu0 %v3728
  %3755 = vmatprep.subr.bf16.mxu0 0
  %3756 = vmatpush1.bf16.msra.mxu0 %v3727
  %3757 = vmatprep.subr.bf16.mxu0 0
  %3758 = vmatpush1.bf16.msra.mxu0 %v3726
  %3759 = vmatprep.subr.bf16.mxu0 0
  %3760 = vmatpush2.bf16.msra.mxu0 0
  %3761 = vmatprep.subr.bf16.mxu0 0
  %3762 = vmatpush2.bf16.msra.mxu0 0
  %3763 = vmatprep.subr.bf16.mxu0 0
  %3764 = vmatpush2.bf16.msra.mxu0 0
  %3765 = vmatprep.subr.bf16.mxu0 0
  %3766 = vmatpush2.bf16.msra.mxu0 0
  %3767 = vmatprep.subr.bf16.mxu0 0
  %3768 = vmatpush2.bf16.msra.mxu0 0
  %3769 = vmatprep.subr.bf16.mxu0 0
  %3770 = vmatpush2.bf16.msra.mxu0 0
  %3771 = vmatprep.subr.bf16.mxu0 0
  %3772 = vmatpush2.bf16.msra.mxu0 0
  %3773 = vmatprep.subr.bf16.mxu0 0
  %3774 = vmatpush2.bf16.msra.mxu0 0
  %3775 = vmatprep.mubr.bf16.mxu0 0
  %3776 = vmatmul.mubr.bf16.gmra.mxu0 %v3735
  %v3777 = vpop.f32.mrf.mxu0
  %v3778 = vadd.f32 0.0, %v3777
  %v3779 = vpop.f32.mrf.mxu0
  %v3780 = vpop.f32.mrf.mxu0
  %v3781 = vadd.f32 0.0, %v3780
  %v3782 = vpop.f32.mrf.mxu0
  %3783 = vmatprep.mubr.bf16.mxu0 0
  %3784 = vmatmul.mubr.bf16.gmra.mxu0 %v3738
  %v3785 = vpop.f32.mrf.mxu0
  %v3786 = vadd.f32 0.0, %v3785
  %v3787 = vpop.f32.mrf.mxu0
  %v3788 = vpop.f32.mrf.mxu0
  %v3789 = vadd.f32 0.0, %v3788
  %v3790 = vpop.f32.mrf.mxu0
  %3791 = vmatprep.mubr.bf16.mxu0 0
  %3792 = vmatmul.mubr.bf16.gmra.mxu0 %v3741
  %v3793 = vpop.f32.mrf.mxu0
  %v3794 = vadd.f32 0.0, %v3793
  %v3795 = vpop.f32.mrf.mxu0
  %v3796 = vpop.f32.mrf.mxu0
  %v3797 = vpop.f32.mrf.mxu0
  %3798 = vdwg.mxu0
  %v3799 = vadd.f32 %v3358, %v3778
  %v3800 = vadd.f32 %v3359, %v3781
  %v3801 = vadd.f32 %v3360, %v3786
  %v3802 = vadd.f32 %v3361, %v3789
  %v3803 = vadd.f32 %v3362, %v3794
  %s3804 = scalar_lea.vmem %s18, 1
  %v3805 = vld [vmem:[%s3804] sm:$0x1]
  %v3807 = vlaneseq
  %v3808 = vshrl.u32 %v3807, 7
  %v3809 = vsub.s32 0, %v3808
  %v3810 = vrot.slane %v3805, %v3809
  %v3812 = vadd.f32 %v3799, %v3810
  %v3813 = vadd.f32 %v3800, %v3810
  %v3814 = vadd.f32 %v3801, %v3810
  %v3815 = vadd.f32 %v3802, %v3810
  %v3816 = vadd.f32 %v3803, %v3810
  %v3818 = vsel %vm274, %v1093, 0
  %3820 = vmatprep.subr.mxu0 0.0
  %3821 = vmatpush1.msra.mxu0 0.0
  %3822 = vmatprep.subr.mxu0 0.0
  %3823 = vmatpush1.msra.mxu0 0.0
  %3824 = vmatprep.subr.mxu0 0.0
  %3825 = vmatpush1.msra.mxu0 0.0
  %3826 = vmatprep.subr.mxu0 0.0
  %3827 = vmatpush1.msra.mxu0 0.0
  %3828 = vmatprep.subr.mxu0 0.0
  %3829 = vmatpush1.msra.mxu0 0.0
  %3830 = vmatprep.subr.mxu0 0.0
  %3831 = vmatpush1.msra.mxu0 0.0
  %3832 = vmatprep.subr.mxu0 0.0
  %3833 = vmatpush1.msra.mxu0 0.0
  %3834 = vmatprep.subr.mxu0 0.0
  %3835 = vmatpush1.msra.mxu0 0.0
  %3836 = vmatprep.subr.mxu0 0.0
  %3837 = vmatpush1.msra.mxu0 0.0
  %3838 = vmatprep.subr.mxu0 0.0
  %3839 = vmatpush1.msra.mxu0 0.0
  %3840 = vmatprep.subr.mxu0 0.0
  %3841 = vmatpush1.msra.mxu0 0.0
  %3842 = vmatprep.subr.mxu0 0.0
  %3843 = vmatpush1.msra.mxu0 %v3816
  %3844 = vmatprep.subr.mxu0 0.0
  %3845 = vmatpush1.msra.mxu0 %v3815
  %3846 = vmatprep.subr.mxu0 0.0
  %3847 = vmatpush1.msra.mxu0 %v3814
  %3848 = vmatprep.subr.mxu0 0.0
  %3849 = vmatpush1.msra.mxu0 %v3813
  %3850 = vmatprep.subr.mxu0 0.0
  %3851 = vmatpush1.msra.mxu0 %v3812
  %3852 = vmatprep.subr.mxu0 0.0
  %3853 = vmatpush2.msra.mxu0 0.0
  %3854 = vmatprep.subr.mxu0 0.0
  %3855 = vmatpush2.msra.mxu0 0.0
  %3856 = vmatprep.subr.mxu0 0.0
  %3857 = vmatpush2.msra.mxu0 0.0
  %3858 = vmatprep.subr.mxu0 0.0
  %3859 = vmatpush2.msra.mxu0 0.0
  %3860 = vmatprep.subr.mxu0 0.0
  %3861 = vmatpush2.msra.mxu0 0.0
  %3862 = vmatprep.subr.mxu0 0.0
  %3863 = vmatpush2.msra.mxu0 0.0
  %3864 = vmatprep.subr.mxu0 0.0
  %3865 = vmatpush2.msra.mxu0 0.0
  %3866 = vmatprep.subr.mxu0 0.0
  %3867 = vmatpush2.msra.mxu0 0.0
  %3868 = vmatprep.subr.mxu0 0.0
  %3869 = vmatpush2.msra.mxu0 0.0
  %3870 = vmatprep.subr.mxu0 0.0
  %3871 = vmatpush2.msra.mxu0 0.0
  %3872 = vmatprep.subr.mxu0 0.0
  %3873 = vmatpush2.msra.mxu0 0.0
  %3874 = vmatprep.subr.mxu0 0.0
  %3875 = vmatpush2.msra.mxu0 0.0
  %3876 = vmatprep.subr.mxu0 0.0
  %3877 = vmatpush2.msra.mxu0 0.0
  %3878 = vmatprep.subr.mxu0 0.0
  %3879 = vmatpush2.msra.mxu0 0.0
  %3880 = vmatprep.subr.mxu0 0.0
  %3881 = vmatpush2.msra.mxu0 0.0
  %3882 = vmatprep.subr.mxu0 0.0
  %3883 = vmatpush2.msra.mxu0 0.0
  %3884 = vmatprep.mubr.f32.mxu0 0.0
  %3885 = vmatmul.mubr.f32.gmra.mxu0 %v3818
  %v3886 = vpop.f32.mrf.mxu0
  %v3887 = vadd.f32 0.0, %v3886
  %v3888 = vpop.f32.mrf.mxu0
  %3889 = vdwg.mxu0
  %v3890 = vld [vmem:[%s19] sm:$0x1]
  %v3891 = vld [vmem:[%s20] sm:$0x1]
  %v3892 = vsel %vm1287, %v3887, 0.0
  %3893 = vadd.xlane.f32.xlu0 %v3892
  %v3894 = vpop.xlane.xlu0 %3893
  %v3895 = vmul.f32 %v3894, %v1303
  %v3896 = vsub.f32 %v3887, %v3895
  %v3897 = vmul.f32 %v3896, %v3896
  %v3898 = vsel %vm1287, %v3897, 0.0
  %3899 = vadd.xlane.f32.xlu0 %v3898
  %v3900 = vpop.xlane.xlu0 %3899
  %v3901 = vmul.f32 %v3900, %v1303
  %v3902 = vadd.f32 %v3901, 1e-06
  %v3903 = vrsqrt.pop %v3902
  %v3904 = vmul.f32 %v3896, %v3903
  %v3906 = vlaneseq
  %v3907 = vshrl.u32 %v3906, 7
  %v3908 = vsub.s32 0, %v3907
  %v3909 = vrot.slane %v3890, %v3908
  %v3911 = vmul.f32 %v3904, %v3909
  %v3913 = vlaneseq
  %v3914 = vshrl.u32 %v3913, 7
  %v3915 = vsub.s32 0, %v3914
  %v3916 = vrot.slane %v3891, %v3915
  %v3918 = vadd.f32 %v3911, %v3916
  %v3919 = vpack.c.bf16 %v3918, %v3918
  %v3920 = vld [vmem:[%s21] sm:$0xf]
  %v3921 = vld [vmem:[%s21 + $0x4] sm:$0xf]
  %v3922 = vld [vmem:[%s21 + $0x8] sm:$0xf]
  %v3923 = vld [vmem:[%s21 + $0xc] sm:$0xf]
  %v3924 = vld [vmem:[#allocation2] sm:$0x1]
  %v3926 = vlaneseq
  %v3927 = vshrl.u32 %v3926, 7
  %v3928 = vsub.s32 0, %v3927
  %v3929 = vrot.slane %v3924, %v3928
  %v3935 = vunpack.c.l.b16 %v3920
  %v3936 = vunpack.c.l.b16 %v3921
  %v3937 = vunpack.c.l.b16 %v3922
  %v3938 = vunpack.c.l.b16 %v3923
  %v3939 = vpack.c.b16 %v3936, %v3935
  %v3940 = vpack.c.b16 %v3938, %v3937
  %v3944 = vsel %vm1287, %v3919, 0
  %3946 = vmatprep.subr.bf16.mxu0 0
  %3947 = vmatpush1.bf16.msra.mxu0 0
  %3948 = vmatprep.subr.bf16.mxu0 0
  %3949 = vmatpush1.bf16.msra.mxu0 0
  %3950 = vmatprep.subr.bf16.mxu0 0
  %3951 = vmatpush1.bf16.msra.mxu0 0
  %3952 = vmatprep.subr.bf16.mxu0 0
  %3953 = vmatpush1.bf16.msra.mxu0 0
  %3954 = vmatprep.subr.bf16.mxu0 0
  %3955 = vmatpush1.bf16.msra.mxu0 0
  %3956 = vmatprep.subr.bf16.mxu0 0
  %3957 = vmatpush1.bf16.msra.mxu0 0
  %3958 = vmatprep.subr.bf16.mxu0 0
  %3959 = vmatpush1.bf16.msra.mxu0 %v3940
  %3960 = vmatprep.subr.bf16.mxu0 0
  %3961 = vmatpush1.bf16.msra.mxu0 %v3939
  %3962 = vmatprep.subr.bf16.mxu0 0
  %3963 = vmatpush2.bf16.msra.mxu0 0
  %3964 = vmatprep.subr.bf16.mxu0 0
  %3965 = vmatpush2.bf16.msra.mxu0 0
  %3966 = vmatprep.subr.bf16.mxu0 0
  %3967 = vmatpush2.bf16.msra.mxu0 0
  %3968 = vmatprep.subr.bf16.mxu0 0
  %3969 = vmatpush2.bf16.msra.mxu0 0
  %3970 = vmatprep.subr.bf16.mxu0 0
  %3971 = vmatpush2.bf16.msra.mxu0 0
  %3972 = vmatprep.subr.bf16.mxu0 0
  %3973 = vmatpush2.bf16.msra.mxu0 0
  %3974 = vmatprep.subr.bf16.mxu0 0
  %3975 = vmatpush2.bf16.msra.mxu0 0
  %3976 = vmatprep.subr.bf16.mxu0 0
  %3977 = vmatpush2.bf16.msra.mxu0 0
  %3978 = vmatprep.mubr.bf16.mxu0 0
  %3979 = vmatmul.mubr.bf16.gmra.mxu0 %v3944
  %v3980 = vpop.f32.mrf.mxu0
  %v3981 = vadd.f32 %v3929, %v3980
  %v3982 = vpop.f32.mrf.mxu0
  %v3983 = vpop.f32.mrf.mxu0
  %v3984 = vpop.f32.mrf.mxu0
  %3985 = vdwg.mxu0
  %v3986 = vxor.u32 %v3981, 2147483648
  %v3987 = vmul.f32 %v3986, 1.442695
  %v3988 = vpow.pop %v3987
  %v3989 = vadd.f32 %v3988, 1.0
  %v3990 = vrcp.pop %v3989
  %v3991 = vmul.f32 1.0, %v3990
  %vm3992 = vcmask 7168
  %3993 = vst.msk [vmem:[%s23] sm:$0xff] %vm3992, %v3991
  // Predicated region
  $region94: #{eva02_forward.1} parent=0 // pred_check
    _
  $region95: #{eva02_forward.1} parent=0 // pred_check_branch
    %3995 = sbr.rel (0) target = $region97
  $region96: #{eva02_forward.1} parent=0 // pred_region
    _
  $region97: #{eva02_forward.1} parent=0 // pred_fallthru
    _
  // Predicated region
  $region98: #{eva02_forward.1} parent=0 // pred_check
    _
  $region99: #{eva02_forward.1} parent=0 // pred_check_branch
    %3997 = sbr.rel (0) target = $region101
  $region100: #{eva02_forward.1} parent=0 // pred_region
    _
  $region101: #{eva02_forward.1} parent=0 // pred_fallthru
    _

</llo_original>
